<compile_context>
chip_gen: v7x
topology: tpu7x:2x2x1
jax: 0.10.0
libtpu: 0.0.40
codegen_flags: <defaults>
</compile_context>

<pallas_src>
import functools

import jax
import jax.numpy as jnp
from jax import lax
from jax.experimental import pallas as pl
from jax.experimental.pallas import tpu as pltpu


def _round_up(x, m):
    return (x + m - 1) // m * m


# ----------------------- conv matmul kernel -----------------------

def _matmul_bias_kernel(x_ref, w_ref, b_ref, o_ref, *, relu):
    acc = jnp.dot(x_ref[...], w_ref[...], preferred_element_type=jnp.float32)
    acc = acc + b_ref[...]
    if relu:
        acc = jnp.maximum(acc, 0.0)
    o_ref[...] = acc.astype(o_ref.dtype)


def matmul_bias(x, w_pad, b_pad, n_out, relu, out_dtype=jnp.bfloat16,
                tm_max=512):
    """(M,K) bf16 @ (K,Np) bf16 + (1,Np) f32 [+ReLU] -> (M, n_out) out_dtype.

    M is split into balanced row blocks (parallel grid axis, >=2 blocks when
    M >= 16 so a megacore chip can shard them); N is lane-padded to a multiple
    of 128 so every store is unmasked; K is kept whole per block.
    """
    M, K = x.shape
    Np = w_pad.shape[1]
    n_blocks = max(1, -(-M // tm_max))
    if n_blocks == 1 and M >= 16:
        n_blocks = 2                       # keep both v7x TensorCores busy
    tm = _round_up(-(-M // n_blocks), 16)  # 16-row align (bf16 sublane pack)
    Mp = n_blocks * tm
    if Mp != M:
        x = jnp.pad(x, ((0, Mp - M), (0, 0)))
    out = pl.pallas_call(
        functools.partial(_matmul_bias_kernel, relu=relu),
        grid=(n_blocks,),
        in_specs=[
            pl.BlockSpec((tm, K), lambda i: (i, 0)),
            pl.BlockSpec((K, Np), lambda i: (0, 0)),
            pl.BlockSpec((1, Np), lambda i: (0, 0)),
        ],
        out_specs=pl.BlockSpec((tm, Np), lambda i: (i, 0)),
        out_shape=jax.ShapeDtypeStruct((Mp, Np), out_dtype),
        compiler_params=pltpu.CompilerParams(
            dimension_semantics=("parallel",),
            vmem_limit_bytes=32 * 1024 * 1024),
    )(x, w_pad, b_pad)
    return out[:M, :n_out]


# ----------------------- fused LSTM + heads kernel -----------------------

def _lstm_heads_kernel(x_ref, wih_ref, whh_ref, bg_ref, wh_ref, bh_ref,
                       h0_ref, c0_ref,
                       out_ref, hT_ref, cT_ref,
                       gx_sc, hist_sc, h_sc, c_sc,
                       *, t_valid, mask_tail, unroll):
    """One (batch-block, T-chunk) tile of the LSTM recurrence + pi/v heads.

    Gate layout is padded: each of the 4 gates occupies a full 128-lane block
    (columns g*128 .. g*128+H hold real weights, rest zero), so gate slices
    are whole-vreg views and padded h/c lanes stay exactly zero through the
    recurrence (pre-activation 0 -> f=i=o=0.5, g=0 -> pads stay 0).
    """
    ti = pl.program_id(1)
    Tc, bb, F = x_ref.shape
    HP = h_sc.shape[-1]      # 128 (padded hidden)
    NP = out_ref.shape[-1]   # 128 (padded num_outputs + 1)

    @pl.when(ti == 0)
    def _():
        h_sc[...] = h0_ref[...]
        c_sc[...] = c0_ref[...]

    # x-side gate pre-activations for the whole chunk: one bf16 MXU matmul,
    # hoisted off the serial recurrence path.
    x2d = x_ref[...].reshape(Tc * bb, F)
    gx = jnp.dot(x2d, wih_ref[...], preferred_element_type=jnp.float32)
    gx_sc[...] = (gx + bg_ref[...]).reshape(Tc, bb, 4 * HP)

    def step(t, carry):
        h_prev, c_prev = carry          # h_prev bf16 (bb,HP), c_prev f32 (bb,HP)
        gates = gx_sc[t] + jnp.dot(h_prev, whh_ref[...],
                                   preferred_element_type=jnp.float32)
        # PyTorch gate order: input, forget, cell(g), output.
        i_g = jax.nn.sigmoid(gates[:, 0 * HP:1 * HP])
        f_g = jax.nn.sigmoid(gates[:, 1 * HP:2 * HP])
        g_g = jnp.tanh(gates[:, 2 * HP:3 * HP])
        o_g = jax.nn.sigmoid(gates[:, 3 * HP:4 * HP])
        c_new = f_g * c_prev + i_g * g_g
        h_new = o_g * jnp.tanh(c_new)
        hist_sc[t] = h_new              # heads consume this after the loop
        h_new_b = h_new.astype(jnp.bfloat16)
        if mask_tail:                   # static: only when T was padded up
            valid = (ti * Tc + t) < t_valid
            h_new_b = jnp.where(valid, h_new_b, h_prev)
            c_new = jnp.where(valid, c_new, c_prev)
        return h_new_b, c_new

    h_fin, c_fin = lax.fori_loop(
        0, Tc, step, (h_sc[...].astype(jnp.bfloat16), c_sc[...]),
        unroll=unroll)
    h_sc[...] = h_fin.astype(jnp.float32)
    c_sc[...] = c_fin
    hT_ref[...] = h_sc[...]
    cT_ref[...] = c_sc[...]

    # Fused pi/v heads, hoisted out of the recurrence: one well-shaped matmul
    # per chunk.  Columns [0:num_outputs] = pi logits, [num_outputs] = value.
    h_all = hist_sc[...].reshape(Tc * bb, HP).astype(jnp.bfloat16)
    head = jnp.dot(h_all, wh_ref[...], preferred_element_type=jnp.float32)
    out_ref[...] = (head + bh_ref[...]).reshape(Tc, bb, NP)


def lstm_heads_forward(x_seq, wih_p, whh_p, bg_p, wh_p, bh_p, h0, c0,
                       *, lstm_cell_size, num_outputs,
                       t_chunk=16, batch_block=8):
    """Batch-first LSTM + fused pi/v heads.  x_seq: (B, T, F)."""
    B, T, F = x_seq.shape
    H = lstm_cell_size
    HP = whh_p.shape[0]       # 128
    NP = wh_p.shape[1]        # 128
    bb = batch_block
    Bp = _round_up(max(B, bb), bb)
    Tc = min(t_chunk, T)
    Tp = _round_up(T, Tc)

    x_tb = jnp.transpose(x_seq, (1, 0, 2)).astype(jnp.bfloat16)   # (T, B, F)
    x_tb = jnp.pad(x_tb, ((0, Tp - T), (0, Bp - B), (0, 0)))
    h0p = jnp.zeros((Bp, HP), jnp.float32).at[:B, :H].set(h0.astype(jnp.float32))
    c0p = jnp.zeros((Bp, HP), jnp.float32).at[:B, :H].set(c0.astype(jnp.float32))

    grid = (Bp // bb, Tp // Tc)
    unroll = True if Tc <= 8 else 4        # bounded partial unroll at larger T

    out, hT, cT = pl.pallas_call(
        functools.partial(_lstm_heads_kernel,
                          t_valid=T, mask_tail=(Tp != T), unroll=unroll),
        grid=grid,
        in_specs=[
            pl.BlockSpec((Tc, bb, F), lambda bi, ti: (ti, bi, 0)),
            pl.BlockSpec(wih_p.shape, lambda bi, ti: (0, 0)),
            pl.BlockSpec(whh_p.shape, lambda bi, ti: (0, 0)),
            pl.BlockSpec(bg_p.shape, lambda bi, ti: (0, 0)),
            pl.BlockSpec(wh_p.shape, lambda bi, ti: (0, 0)),
            pl.BlockSpec(bh_p.shape, lambda bi, ti: (0, 0)),
            pl.BlockSpec((bb, HP), lambda bi, ti: (bi, 0)),
            pl.BlockSpec((bb, HP), lambda bi, ti: (bi, 0)),
        ],
        out_specs=[
            pl.BlockSpec((Tc, bb, NP), lambda bi, ti: (ti, bi, 0)),
            pl.BlockSpec((bb, HP), lambda bi, ti: (bi, 0)),
            pl.BlockSpec((bb, HP), lambda bi, ti: (bi, 0)),
        ],
        out_shape=[
            jax.ShapeDtypeStruct((Tp, Bp, NP), jnp.float32),
            jax.ShapeDtypeStruct((Bp, HP), jnp.float32),
            jax.ShapeDtypeStruct((Bp, HP), jnp.float32),
        ],
        scratch_shapes=[
            pltpu.VMEM((Tc, bb, 4 * HP), jnp.float32),   # per-chunk x-gates
            pltpu.VMEM((Tc, bb, HP), jnp.float32),       # per-chunk h history
            pltpu.VMEM((bb, HP), jnp.float32),           # h carry across chunks
            pltpu.VMEM((bb, HP), jnp.float32),           # c carry across chunks
        ],
        compiler_params=pltpu.CompilerParams(
            dimension_semantics=("parallel", "arbitrary"),
            vmem_limit_bytes=32 * 1024 * 1024),
    )(x_tb, wih_p, whh_p, bg_p, wh_p, bh_p, h0p, c0p)

    flat = jnp.transpose(out, (1, 0, 2))[:B, :T].reshape(B * T, NP)
    logits = flat[:, :num_outputs]
    value = flat[:, num_outputs]
    return logits, value, hT[:B, :H], cT[:B, :H]


# ----------------------- glue (plain JAX) -----------------------

def _im2col(x_nhwc, kh, kw, stride):
    """Patch matrix via kh*kw strided slices + concat (no gather).

    Feature order is (kh, kw, C), matching the packed conv weight layout.
    """
    N, Hh, Ww, C = x_nhwc.shape
    oh = (Hh - kh) // stride + 1
    ow = (Ww - kw) // stride + 1
    cols = []
    for dh in range(kh):
        for dw in range(kw):
            cols.append(lax.slice(
                x_nhwc,
                (0, dh, dw, 0),
                (N, dh + stride * (oh - 1) + 1, dw + stride * (ow - 1) + 1, C),
                (1, stride, stride, 1)))
    patches = jnp.concatenate(cols, axis=-1)            # (N, oh, ow, kh*kw*C)
    return patches.reshape(N * oh * ow, kh * kw * C), oh, ow


def conv2d_relu(x_nhwc, w_mat, b_pad, n_out, kh, kw, stride):
    """Valid-padding strided conv + ReLU via im2col + tiled Pallas matmul."""
    N = x_nhwc.shape[0]
    patches, oh, ow = _im2col(x_nhwc.astype(jnp.bfloat16), kh, kw, stride)
    out = matmul_bias(patches, w_mat, b_pad, n_out, relu=True)
    return out.reshape(N, oh, ow, n_out)


def init_params(key, in_channels, num_outputs, lstm_cell_size, lstm_in):
    def u(k, shape, bound=0.05):
        return jax.random.uniform(k, shape, jnp.float32, -bound, bound)

    ks = jax.random.split(key, 14)
    H = lstm_cell_size
    return dict(
        conv1_w=u(ks[0], (32, in_channels, 8, 8)), conv1_b=u(ks[1], (32,)),
        conv2_w=u(ks[2], (64, 32, 4, 4)), conv2_b=u(ks[3], (64,)),
        conv3_w=u(ks[4], (64, 64, 3, 3)), conv3_b=u(ks[5], (64,)),
        lstm_w_ih=u(ks[6], (4 * H, lstm_in)), lstm_w_hh=u(ks[7], (4 * H, H)),
        lstm_b_ih=u(ks[8], (4 * H,)), lstm_b_hh=u(ks[9], (4 * H,)),
        pi_w=u(ks[10], (num_outputs, H)), pi_b=u(ks[11], (num_outputs,)),
        v_w=u(ks[12], (1, H)), v_b=u(ks[13], (1,)),
    )


def prepare_params(params, num_outputs, lstm_cell_size):
    """One-time weight prep: transpose/pack/pad/bf16 so the forward is lean."""
    H = lstm_cell_size
    HP = 128                       # padded hidden / per-gate lane block
    NP = 128                       # padded head lane width (num_outputs + 1 <= 128)
    assert num_outputs + 1 <= NP and H <= HP

    def conv_w_mat(w_oihw, scale=None):
        cout, cin, kh, kw = w_oihw.shape
        w = jnp.transpose(w_oihw, (2, 3, 1, 0)).reshape(kh * kw * cin, cout)
        if scale is not None:
            w = w * scale
        return jnp.pad(w, ((0, 0), (0, _round_up(cout, 128) - cout))
                       ).astype(jnp.bfloat16)

    def conv_b_pad(b):
        n = b.shape[0]
        return jnp.pad(b, (0, _round_up(n, 128) - n)
                       ).astype(jnp.float32).reshape(1, -1)

    def pack_gate_cols(w_t):
        # (rows, 4H) -> (rows, 4*HP): each gate's H columns at the start of a
        # 128-lane block, zeros elsewhere (keeps padded h/c lanes at 0).
        rows = w_t.shape[0]
        out = jnp.zeros((rows, 4 * HP), jnp.float32)
        for g in range(4):
            out = out.at[:, g * HP:g * HP + H].set(w_t[:, g * H:(g + 1) * H])
        return out

    # LSTM weights: torch stores (4H, in); transpose to (in, 4H), pack, bf16.
    wih_p = pack_gate_cols(params["lstm_w_ih"].T.astype(jnp.float32)
                           ).astype(jnp.bfloat16)                       # (F, 4*HP)
    whh_p = pack_gate_cols(params["lstm_w_hh"].T.astype(jnp.float32))   # (H, 4*HP)
    whh_p = jnp.pad(whh_p, ((0, HP - H), (0, 0))).astype(jnp.bfloat16)  # (HP, 4*HP)
    bg_p = pack_gate_cols((params["lstm_b_ih"] + params["lstm_b_hh"]
                           ).astype(jnp.float32).reshape(1, -1))        # (1, 4*HP) f32

    # Fused heads: columns [0:num_outputs] = pi, [num_outputs] = v.
    w_head = jnp.concatenate([params["pi_w"], params["v_w"]], axis=0).T  # (H, no+1)
    wh_p = (jnp.zeros((HP, NP), jnp.float32)
            .at[:H, :num_outputs + 1].set(w_head).astype(jnp.bfloat16))
    b_head = jnp.concatenate([params["pi_b"], params["v_b"]])            # (no+1,)
    bh_p = jnp.pad(b_head, (0, NP - (num_outputs + 1))
                   ).astype(jnp.float32).reshape(1, NP)

    return dict(
        # /255 obs normalization folded into conv1 weights (bf16-quantized).
        conv1_w=conv_w_mat(params["conv1_w"], scale=1.0 / 255.0),
        conv1_b=conv_b_pad(params["conv1_b"]),
        conv2_w=conv_w_mat(params["conv2_w"]), conv2_b=conv_b_pad(params["conv2_b"]),
        conv3_w=conv_w_mat(params["conv3_w"]), conv3_b=conv_b_pad(params["conv3_b"]),
        lstm_w_ih=wih_p, lstm_w_hh=whh_p, lstm_b=bg_p,
        head_w=wh_p, head_b=bh_p,
    )


def dqn_lstm_forward(prepped, obs, h0, c0, *, B, T, num_outputs, lstm_cell_size):
    """Returns (logits, value, (h_out, c_out)) like TorchDQNLSTMModel.forward."""
    # /255 is folded into conv1 weights; uint8-range values are exact in bf16.
    x = obs.astype(jnp.bfloat16)                                      # NHWC
    x = conv2d_relu(x, prepped["conv1_w"], prepped["conv1_b"], 32, 8, 8, 4)
    x = conv2d_relu(x, prepped["conv2_w"], prepped["conv2_b"], 64, 4, 4, 2)
    x = conv2d_relu(x, prepped["conv3_w"], prepped["conv3_b"], 64, 3, 3, 1)
    x_nchw = jnp.transpose(x, (0, 3, 1, 2))                           # torch flatten order
    x_flat = x_nchw.reshape(x_nchw.shape[0], -1)                      # (B*T, F)
    x_seq = x_flat.reshape(B, T, -1)                                  # add_time_dimension

    logits, value, hT, cT = lstm_heads_forward(
        x_seq, prepped["lstm_w_ih"], prepped["lstm_w_hh"], prepped["lstm_b"],
        prepped["head_w"], prepped["head_b"], h0, c0,
        lstm_cell_size=lstm_cell_size, num_outputs=num_outputs)
    return logits, value, (hT, cT)


if __name__ == "__main__":
    B, T = 2, 4                  # 2 sequences of length 4 -> CNN batch = 8
    HW, C_IN = 36, 4             # 36x36x4 obs -> DQN CNN output 1x1x64
    NUM_OUTPUTS = 6
    LSTM_CELL = 32
    LSTM_IN = 64                 # 64 * 1 * 1 after the three convs

    key = jax.random.PRNGKey(0)
    k_obs, k_params = jax.random.split(key)
    obs = jax.random.randint(k_obs, (B * T, HW, HW, C_IN), 0, 256,
                             dtype=jnp.int32)
    params = init_params(k_params, C_IN, NUM_OUTPUTS, LSTM_CELL, LSTM_IN)
    prepped = prepare_params(params, NUM_OUTPUTS, LSTM_CELL)

    # get_initial_state(): zeros of shape (lstm_cell_size,) per sequence.
    h0 = jnp.zeros((B, LSTM_CELL), jnp.float32)
    c0 = jnp.zeros((B, LSTM_CELL), jnp.float32)

    fwd = jax.jit(functools.partial(dqn_lstm_forward, B=B, T=T,
                                    num_outputs=NUM_OUTPUTS,
                                    lstm_cell_size=LSTM_CELL))
    logits, value, (h_out, c_out) = fwd(prepped, obs, h0, c0)
    jax.block_until_ready((logits, value, h_out, c_out))

    assert logits.shape == (B * T, NUM_OUTPUTS)
    assert value.shape == (B * T,)
    assert h_out.shape == (B, LSTM_CELL) and c_out.shape == (B, LSTM_CELL)
    assert bool(jnp.all(jnp.isfinite(logits))) and bool(jnp.all(jnp.isfinite(value)))
    print("KERNEL_OK")
</pallas_src>

<mosaic_0001>
module attributes {stable_mosaic.version = 11 : i64} {
  func.func @_matmul_bias_kernel(%arg0: i32, %arg1: memref<256x256xbf16, #tpu.memory_space<vmem>>, %arg2: memref<256x128xbf16, #tpu.memory_space<vmem>>, %arg3: memref<1x128xf32, #tpu.memory_space<vmem>>, %arg4: memref<256x128xbf16, #tpu.memory_space<vmem>>) attributes {dimension_semantics = [#tpu.dimension_semantics<parallel>], iteration_bounds = array<i64: 2>, scalar_prefetch = 0 : i64, scratch_operands = 0 : i64, tpu.core_type = #tpu.core_type<tc>, window_params = [{transform_indices = @transform_0, window_bounds = array<i64: 256, 256>}, {pipeline_mode = #tpu.pipeline_mode<synchronous>, transform_indices = @transform_1, window_bounds = array<i64: 256, 128>}, {pipeline_mode = #tpu.pipeline_mode<synchronous>, transform_indices = @transform_2, window_bounds = array<i64: 1, 128>}, {transform_indices = @transform_3, window_bounds = array<i64: 256, 128>}]} {
    %c0 = arith.constant 0 : index
    %c0_0 = arith.constant 0 : index
    %0 = vector.load %arg1[%c0, %c0_0] : memref<256x256xbf16, #tpu.memory_space<vmem>>, vector<256x256xbf16>
    %c0_1 = arith.constant 0 : index
    %c0_2 = arith.constant 0 : index
    %1 = vector.load %arg2[%c0_1, %c0_2] : memref<256x128xbf16, #tpu.memory_space<vmem>>, vector<256x128xbf16>
    %cst = arith.constant dense<0.000000e+00> : vector<256x128xf32>
    %2 = tpu.matmul %0, %1, %cst {dimension_numbers = #tpu.dot_dimension_numbers<[1], [0], [0], [1], [0, 0, 1, 1], [], []>} : vector<256x256xbf16>, vector<256x128xbf16>, vector<256x128xf32> -> vector<256x128xf32>
    %c0_3 = arith.constant 0 : index
    %c0_4 = arith.constant 0 : index
    %3 = vector.load %arg3[%c0_3, %c0_4] : memref<1x128xf32, #tpu.memory_space<vmem>>, vector<1x128xf32>
    %4 = vector.broadcast %3 : vector<1x128xf32> to vector<256x128xf32>
    %5 = arith.addf %2, %4 : vector<256x128xf32>
    %cst_5 = arith.constant 0.000000e+00 : f32
    %6 = vector.broadcast %cst_5 : f32 to vector<256x128xf32>
    %7 = arith.maximumf %5, %6 : vector<256x128xf32>
    %8 = arith.truncf %7 : vector<256x128xf32> to vector<256x128xbf16>
    %c0_6 = arith.constant 0 : index
    %c0_7 = arith.constant 0 : index
    %9 = vector.load %arg4[%c0_6, %c0_7] : memref<256x128xbf16, #tpu.memory_space<vmem>>, vector<256x128xbf16>
    tpu.vector_store %arg4[%c0_6, %c0_7], %8 {strides = array<i32>} : memref<256x128xbf16, #tpu.memory_space<vmem>>, vector<256x128xbf16>,
    return
  }
  func.func @transform_0(%arg0: i32) -> (i32, i32) {
    %c0_i32 = arith.constant 0 : i32
    %c0_i32_0 = arith.constant 0 : i32
    return %arg0, %c0_i32 : i32, i32
  }
  func.func @transform_1(%arg0: i32) -> (i32, i32) {
    %c0_i32 = arith.constant 0 : i32
    %c0_i32_0 = arith.constant 0 : i32
    %c0_i32_1 = arith.constant 0 : i32
    return %c0_i32, %c0_i32_0 : i32, i32
  }
  func.func @transform_2(%arg0: i32) -> (i32, i32) {
    %c0_i32 = arith.constant 0 : i32
    %c0_i32_0 = arith.constant 0 : i32
    %c0_i32_1 = arith.constant 0 : i32
    return %c0_i32, %c0_i32_0 : i32, i32
  }
  func.func @transform_3(%arg0: i32) -> (i32, i32) {
    %c0_i32 = arith.constant 0 : i32
    %c0_i32_0 = arith.constant 0 : i32
    return %arg0, %c0_i32 : i32, i32
  }
}

module attributes {stable_mosaic.version = 11 : i64} {
  func.func @_matmul_bias_kernel(%arg0: i32, %arg1: memref<48x512xbf16, #tpu.memory_space<vmem>>, %arg2: memref<512x128xbf16, #tpu.memory_space<vmem>>, %arg3: memref<1x128xf32, #tpu.memory_space<vmem>>, %arg4: memref<48x128xbf16, #tpu.memory_space<vmem>>) attributes {dimension_semantics = [#tpu.dimension_semantics<parallel>], iteration_bounds = array<i64: 2>, scalar_prefetch = 0 : i64, scratch_operands = 0 : i64, tpu.core_type = #tpu.core_type<tc>, window_params = [{transform_indices = @transform_0, window_bounds = array<i64: 48, 512>}, {pipeline_mode = #tpu.pipeline_mode<synchronous>, transform_indices = @transform_1, window_bounds = array<i64: 512, 128>}, {pipeline_mode = #tpu.pipeline_mode<synchronous>, transform_indices = @transform_2, window_bounds = array<i64: 1, 128>}, {transform_indices = @transform_3, window_bounds = array<i64: 48, 128>}]} {
    %c0 = arith.constant 0 : index
    %c0_0 = arith.constant 0 : index
    %0 = vector.load %arg1[%c0, %c0_0] : memref<48x512xbf16, #tpu.memory_space<vmem>>, vector<48x512xbf16>
    %c0_1 = arith.constant 0 : index
    %c0_2 = arith.constant 0 : index
    %1 = vector.load %arg2[%c0_1, %c0_2] : memref<512x128xbf16, #tpu.memory_space<vmem>>, vector<512x128xbf16>
    %cst = arith.constant dense<0.000000e+00> : vector<48x128xf32>
    %2 = tpu.matmul %0, %1, %cst {dimension_numbers = #tpu.dot_dimension_numbers<[1], [0], [0], [1], [0, 0, 1, 1], [], []>} : vector<48x512xbf16>, vector<512x128xbf16>, vector<48x128xf32> -> vector<48x128xf32>
    %c0_3 = arith.constant 0 : index
    %c0_4 = arith.constant 0 : index
    %3 = vector.load %arg3[%c0_3, %c0_4] : memref<1x128xf32, #tpu.memory_space<vmem>>, vector<1x128xf32>
    %4 = vector.broadcast %3 : vector<1x128xf32> to vector<48x128xf32>
    %5 = arith.addf %2, %4 : vector<48x128xf32>
    %cst_5 = arith.constant 0.000000e+00 : f32
    %6 = vector.broadcast %cst_5 : f32 to vector<48x128xf32>
    %7 = arith.maximumf %5, %6 : vector<48x128xf32>
    %8 = arith.truncf %7 : vector<48x128xf32> to vector<48x128xbf16>
    %c0_6 = arith.constant 0 : index
    %c0_7 = arith.constant 0 : index
    %9 = vector.load %arg4[%c0_6, %c0_7] : memref<48x128xbf16, #tpu.memory_space<vmem>>, vector<48x128xbf16>
    tpu.vector_store %arg4[%c0_6, %c0_7], %8 {strides = array<i32>} : memref<48x128xbf16, #tpu.memory_space<vmem>>, vector<48x128xbf16>,
    return
  }
  func.func @transform_0(%arg0: i32) -> (i32, i32) {
    %c0_i32 = arith.constant 0 : i32
    %c0_i32_0 = arith.constant 0 : i32
    return %arg0, %c0_i32 : i32, i32
  }
  func.func @transform_1(%arg0: i32) -> (i32, i32) {
    %c0_i32 = arith.constant 0 : i32
    %c0_i32_0 = arith.constant 0 : i32
    %c0_i32_1 = arith.constant 0 : i32
    return %c0_i32, %c0_i32_0 : i32, i32
  }
  func.func @transform_2(%arg0: i32) -> (i32, i32) {
    %c0_i32 = arith.constant 0 : i32
    %c0_i32_0 = arith.constant 0 : i32
    %c0_i32_1 = arith.constant 0 : i32
    return %c0_i32, %c0_i32_0 : i32, i32
  }
  func.func @transform_3(%arg0: i32) -> (i32, i32) {
    %c0_i32 = arith.constant 0 : i32
    %c0_i32_0 = arith.constant 0 : i32
    return %arg0, %c0_i32 : i32, i32
  }
}

module attributes {stable_mosaic.version = 11 : i64} {
  func.func @_matmul_bias_kernel(%arg0: i32, %arg1: memref<16x576xbf16, #tpu.memory_space<vmem>>, %arg2: memref<576x128xbf16, #tpu.memory_space<vmem>>, %arg3: memref<1x128xf32, #tpu.memory_space<vmem>>, %arg4: memref<16x128xbf16, #tpu.memory_space<vmem>>) attributes {dimension_semantics = [#tpu.dimension_semantics<parallel>], iteration_bounds = array<i64: 1>, scalar_prefetch = 0 : i64, scratch_operands = 0 : i64, tpu.core_type = #tpu.core_type<tc>, window_params = [{transform_indices = @transform_0, window_bounds = array<i64: 16, 576>}, {pipeline_mode = #tpu.pipeline_mode<synchronous>, transform_indices = @transform_1, window_bounds = array<i64: 576, 128>}, {pipeline_mode = #tpu.pipeline_mode<synchronous>, transform_indices = @transform_2, window_bounds = array<i64: 1, 128>}, {transform_indices = @transform_3, window_bounds = array<i64: 16, 128>}]} {
    %c0 = arith.constant 0 : index
    %c0_0 = arith.constant 0 : index
    %0 = vector.load %arg1[%c0, %c0_0] : memref<16x576xbf16, #tpu.memory_space<vmem>>, vector<16x576xbf16>
    %c0_1 = arith.constant 0 : index
    %c0_2 = arith.constant 0 : index
    %1 = vector.load %arg2[%c0_1, %c0_2] : memref<576x128xbf16, #tpu.memory_space<vmem>>, vector<576x128xbf16>
    %cst = arith.constant dense<0.000000e+00> : vector<16x128xf32>
    %2 = tpu.matmul %0, %1, %cst {dimension_numbers = #tpu.dot_dimension_numbers<[1], [0], [0], [1], [0, 0, 1, 1], [], []>} : vector<16x576xbf16>, vector<576x128xbf16>, vector<16x128xf32> -> vector<16x128xf32>
    %c0_3 = arith.constant 0 : index
    %c0_4 = arith.constant 0 : index
    %3 = vector.load %arg3[%c0_3, %c0_4] : memref<1x128xf32, #tpu.memory_space<vmem>>, vector<1x128xf32>
    %4 = vector.broadcast %3 : vector<1x128xf32> to vector<16x128xf32>
    %5 = arith.addf %2, %4 : vector<16x128xf32>
    %cst_5 = arith.constant 0.000000e+00 : f32
    %6 = vector.broadcast %cst_5 : f32 to vector<16x128xf32>
    %7 = arith.maximumf %5, %6 : vector<16x128xf32>
    %8 = arith.truncf %7 : vector<16x128xf32> to vector<16x128xbf16>
    %c0_6 = arith.constant 0 : index
    %c0_7 = arith.constant 0 : index
    %9 = vector.load %arg4[%c0_6, %c0_7] : memref<16x128xbf16, #tpu.memory_space<vmem>>, vector<16x128xbf16>
    tpu.vector_store %arg4[%c0_6, %c0_7], %8 {strides = array<i32>} : memref<16x128xbf16, #tpu.memory_space<vmem>>, vector<16x128xbf16>,
    return
  }
  func.func @transform_0(%arg0: i32) -> (i32, i32) {
    %c0_i32 = arith.constant 0 : i32
    %c0_i32_0 = arith.constant 0 : i32
    return %arg0, %c0_i32 : i32, i32
  }
  func.func @transform_1(%arg0: i32) -> (i32, i32) {
    %c0_i32 = arith.constant 0 : i32
    %c0_i32_0 = arith.constant 0 : i32
    %c0_i32_1 = arith.constant 0 : i32
    return %c0_i32, %c0_i32_0 : i32, i32
  }
  func.func @transform_2(%arg0: i32) -> (i32, i32) {
    %c0_i32 = arith.constant 0 : i32
    %c0_i32_0 = arith.constant 0 : i32
    %c0_i32_1 = arith.constant 0 : i32
    return %c0_i32, %c0_i32_0 : i32, i32
  }
  func.func @transform_3(%arg0: i32) -> (i32, i32) {
    %c0_i32 = arith.constant 0 : i32
    %c0_i32_0 = arith.constant 0 : i32
    return %arg0, %c0_i32 : i32, i32
  }
}

module attributes {stable_mosaic.version = 11 : i64} {
  func.func @_lstm_heads_kernel(%arg0: i32, %arg1: i32, %arg2: memref<4x8x64xbf16, #tpu.memory_space<vmem>>, %arg3: memref<64x512xbf16, #tpu.memory_space<vmem>>, %arg4: memref<128x512xbf16, #tpu.memory_space<vmem>>, %arg5: memref<1x512xf32, #tpu.memory_space<vmem>>, %arg6: memref<128x128xbf16, #tpu.memory_space<vmem>>, %arg7: memref<1x128xf32, #tpu.memory_space<vmem>>, %arg8: memref<8x128xf32, #tpu.memory_space<vmem>>, %arg9: memref<8x128xf32, #tpu.memory_space<vmem>>, %arg10: memref<4x8x128xf32, #tpu.memory_space<vmem>>, %arg11: memref<8x128xf32, #tpu.memory_space<vmem>>, %arg12: memref<8x128xf32, #tpu.memory_space<vmem>>, %arg13: memref<4x8x512xf32, #tpu.memory_space<vmem>>, %arg14: memref<4x8x128xf32, #tpu.memory_space<vmem>>, %arg15: memref<8x128xf32, #tpu.memory_space<vmem>>, %arg16: memref<8x128xf32, #tpu.memory_space<vmem>>) attributes {dimension_semantics = [#tpu.dimension_semantics<parallel>, #tpu.dimension_semantics<arbitrary>], iteration_bounds = array<i64: 1, 1>, scalar_prefetch = 0 : i64, scratch_operands = 4 : i64, tpu.core_type = #tpu.core_type<tc>, window_params = [{transform_indices = @transform_0, window_bounds = array<i64: 4, 8, 64>}, {pipeline_mode = #tpu.pipeline_mode<synchronous>, transform_indices = @transform_1, window_bounds = array<i64: 64, 512>}, {pipeline_mode = #tpu.pipeline_mode<synchronous>, transform_indices = @transform_2, window_bounds = array<i64: 128, 512>}, {pipeline_mode = #tpu.pipeline_mode<synchronous>, transform_indices = @transform_3, window_bounds = array<i64: 1, 512>}, {pipeline_mode = #tpu.pipeline_mode<synchronous>, transform_indices = @transform_4, window_bounds = array<i64: 128, 128>}, {pipeline_mode = #tpu.pipeline_mode<synchronous>, transform_indices = @transform_5, window_bounds = array<i64: 1, 128>}, {transform_indices = @transform_6, window_bounds = array<i64: 8, 128>}, {transform_indices = @transform_7, window_bounds = array<i64: 8, 128>}, {transform_indices = @transform_8, window_bounds = array<i64: 4, 8, 128>}, {transform_indices = @transform_9, window_bounds = array<i64: 8, 128>}, {transform_indices = @transform_10, window_bounds = array<i64: 8, 128>}]} {
    %c0_i32 = arith.constant 0 : i32
    %0 = arith.cmpi eq, %arg1, %c0_i32 : i32
    %1 = arith.extui %0 : i1 to i32
    %c0_i32_0 = arith.constant 0 : i32
    %2 = arith.cmpi ne, %1, %c0_i32_0 : i32
    scf.if %2 {
      %c0_78 = arith.constant 0 : index
      %c0_79 = arith.constant 0 : index
      %176 = vector.load %arg8[%c0_78, %c0_79] : memref<8x128xf32, #tpu.memory_space<vmem>>, vector<8x128xf32>
      %c0_80 = arith.constant 0 : index
      %c0_81 = arith.constant 0 : index
      %177 = vector.load %arg15[%c0_80, %c0_81] : memref<8x128xf32, #tpu.memory_space<vmem>>, vector<8x128xf32>
      tpu.vector_store %arg15[%c0_80, %c0_81], %176 {strides = array<i32>} : memref<8x128xf32, #tpu.memory_space<vmem>>, vector<8x128xf32>,
      %c0_82 = arith.constant 0 : index
      %c0_83 = arith.constant 0 : index
      %178 = vector.load %arg9[%c0_82, %c0_83] : memref<8x128xf32, #tpu.memory_space<vmem>>, vector<8x128xf32>
      %c0_84 = arith.constant 0 : index
      %c0_85 = arith.constant 0 : index
      %179 = vector.load %arg16[%c0_84, %c0_85] : memref<8x128xf32, #tpu.memory_space<vmem>>, vector<8x128xf32>
      tpu.vector_store %arg16[%c0_84, %c0_85], %178 {strides = array<i32>} : memref<8x128xf32, #tpu.memory_space<vmem>>, vector<8x128xf32>,
    } else {
    }
    %c0 = arith.constant 0 : index
    %c0_1 = arith.constant 0 : index
    %c0_2 = arith.constant 0 : index
    %3 = vector.load %arg2[%c0, %c0_1, %c0_2] : memref<4x8x64xbf16, #tpu.memory_space<vmem>>, vector<4x8x64xbf16>
    %4 = vector.shape_cast %3 : vector<4x8x64xbf16> to vector<32x64xbf16>
    %c0_3 = arith.constant 0 : index
    %c0_4 = arith.constant 0 : index
    %5 = vector.load %arg3[%c0_3, %c0_4] : memref<64x512xbf16, #tpu.memory_space<vmem>>, vector<64x512xbf16>
    %cst = arith.constant dense<0.000000e+00> : vector<32x512xf32>
    %6 = tpu.matmul %4, %5, %cst {dimension_numbers = #tpu.dot_dimension_numbers<[1], [0], [0], [1], [0, 0, 1, 1], [], []>} : vector<32x64xbf16>, vector<64x512xbf16>, vector<32x512xf32> -> vector<32x512xf32>
    %c0_5 = arith.constant 0 : index
    %c0_6 = arith.constant 0 : index
    %7 = vector.load %arg5[%c0_5, %c0_6] : memref<1x512xf32, #tpu.memory_space<vmem>>, vector<1x512xf32>
    %8 = vector.broadcast %7 : vector<1x512xf32> to vector<32x512xf32>
    %9 = arith.addf %6, %8 : vector<32x512xf32>
    %10 = vector.shape_cast %9 : vector<32x512xf32> to vector<4x8x512xf32>
    %c0_7 = arith.constant 0 : index
    %c0_8 = arith.constant 0 : index
    %c0_9 = arith.constant 0 : index
    %11 = vector.load %arg13[%c0_7, %c0_8, %c0_9] : memref<4x8x512xf32, #tpu.memory_space<vmem>>, vector<4x8x512xf32>
    tpu.vector_store %arg13[%c0_7, %c0_8, %c0_9], %10 {strides = array<i32>} : memref<4x8x512xf32, #tpu.memory_space<vmem>>, vector<4x8x512xf32>,
    %c0_10 = arith.constant 0 : index
    %c0_11 = arith.constant 0 : index
    %12 = vector.load %arg15[%c0_10, %c0_11] : memref<8x128xf32, #tpu.memory_space<vmem>>, vector<8x128xf32>
    %13 = arith.truncf %12 : vector<8x128xf32> to vector<8x128xbf16>
    %c0_12 = arith.constant 0 : index
    %c0_13 = arith.constant 0 : index
    %14 = vector.load %arg16[%c0_12, %c0_13] : memref<8x128xf32, #tpu.memory_space<vmem>>, vector<8x128xf32>
    %c0_i32_14 = arith.constant 0 : i32
    %15 = arith.index_cast %c0_i32_14 : i32 to index
    %c0_15 = arith.constant 0 : index
    %c0_16 = arith.constant 0 : index
    %16 = vector.load %arg13[%15, %c0_15, %c0_16] : memref<4x8x512xf32, #tpu.memory_space<vmem>>, vector<1x8x512xf32>
    %17 = vector.shape_cast %16 : vector<1x8x512xf32> to vector<8x512xf32>
    %c0_17 = arith.constant 0 : index
    %c0_18 = arith.constant 0 : index
    %18 = vector.load %arg4[%c0_17, %c0_18] : memref<128x512xbf16, #tpu.memory_space<vmem>>, vector<128x512xbf16>
    %cst_19 = arith.constant dense<0.000000e+00> : vector<8x512xf32>
    %19 = tpu.matmul %13, %18, %cst_19 {dimension_numbers = #tpu.dot_dimension_numbers<[1], [0], [0], [1], [0, 0, 1, 1], [], []>} : vector<8x128xbf16>, vector<128x512xbf16>, vector<8x512xf32> -> vector<8x512xf32>
    %20 = arith.addf %17, %19 : vector<8x512xf32>
    %21 = vector.extract_strided_slice %20 {offsets = [0, 0], sizes = [8, 128], strides = [1, 1]} : vector<8x512xf32> to vector<8x128xf32>
    %22 = arith.negf %21 : vector<8x128xf32>
    %23 = math.exp %22 : vector<8x128xf32>
    %cst_20 = arith.constant 1.000000e+00 : f32
    %24 = vector.broadcast %cst_20 : f32 to vector<8x128xf32>
    %25 = arith.addf %24, %23 : vector<8x128xf32>
    %26 = arith.divf %24, %25 : vector<8x128xf32>
    %27 = vector.extract_strided_slice %20 {offsets = [0, 128], sizes = [8, 128], strides = [1, 1]} : vector<8x512xf32> to vector<8x128xf32>
    %28 = arith.negf %27 : vector<8x128xf32>
    %29 = math.exp %28 : vector<8x128xf32>
    %cst_21 = arith.constant 1.000000e+00 : f32
    %30 = vector.broadcast %cst_21 : f32 to vector<8x128xf32>
    %31 = arith.addf %30, %29 : vector<8x128xf32>
    %32 = arith.divf %30, %31 : vector<8x128xf32>
    %33 = vector.extract_strided_slice %20 {offsets = [0, 256], sizes = [8, 128], strides = [1, 1]} : vector<8x512xf32> to vector<8x128xf32>
    %34 = math.tanh %33 : vector<8x128xf32>
    %35 = vector.extract_strided_slice %20 {offsets = [0, 384], sizes = [8, 128], strides = [1, 1]} : vector<8x512xf32> to vector<8x128xf32>
    %36 = arith.negf %35 : vector<8x128xf32>
    %37 = math.exp %36 : vector<8x128xf32>
    %cst_22 = arith.constant 1.000000e+00 : f32
    %38 = vector.broadcast %cst_22 : f32 to vector<8x128xf32>
    %39 = arith.addf %38, %37 : vector<8x128xf32>
    %40 = arith.divf %38, %39 : vector<8x128xf32>
    %41 = arith.mulf %32, %14 : vector<8x128xf32>
    %42 = arith.mulf %26, %34 : vector<8x128xf32>
    %43 = arith.addf %41, %42 : vector<8x128xf32>
    %44 = math.tanh %43 : vector<8x128xf32>
    %45 = arith.mulf %40, %44 : vector<8x128xf32>
    %46 = arith.index_cast %c0_i32_14 : i32 to index
    %c0_23 = arith.constant 0 : index
    %c0_24 = arith.constant 0 : index
    %47 = vector.load %arg14[%46, %c0_23, %c0_24] : memref<4x8x128xf32, #tpu.memory_space<vmem>>, vector<1x8x128xf32>
    %48 = vector.shape_cast %47 : vector<1x8x128xf32> to vector<8x128xf32>
    %49 = vector.shape_cast %45 : vector<8x128xf32> to vector<1x8x128xf32>
    tpu.vector_store %arg14[%46, %c0_23, %c0_24], %49 {strides = array<i32>} : memref<4x8x128xf32, #tpu.memory_space<vmem>>, vector<1x8x128xf32>,
    %50 = arith.truncf %45 : vector<8x128xf32> to vector<8x128xbf16>
    %c1_i32 = arith.constant 1 : i32
    %51 = arith.index_cast %c1_i32 : i32 to index
    %c0_25 = arith.constant 0 : index
    %c0_26 = arith.constant 0 : index
    %52 = vector.load %arg13[%51, %c0_25, %c0_26] : memref<4x8x512xf32, #tpu.memory_space<vmem>>, vector<1x8x512xf32>
    %53 = vector.shape_cast %52 : vector<1x8x512xf32> to vector<8x512xf32>
    %c0_27 = arith.constant 0 : index
    %c0_28 = arith.constant 0 : index
    %54 = vector.load %arg4[%c0_27, %c0_28] : memref<128x512xbf16, #tpu.memory_space<vmem>>, vector<128x512xbf16>
    %cst_29 = arith.constant dense<0.000000e+00> : vector<8x512xf32>
    %55 = tpu.matmul %50, %54, %cst_29 {dimension_numbers = #tpu.dot_dimension_numbers<[1], [0], [0], [1], [0, 0, 1, 1], [], []>} : vector<8x128xbf16>, vector<128x512xbf16>, vector<8x512xf32> -> vector<8x512xf32>
    %56 = arith.addf %53, %55 : vector<8x512xf32>
    %57 = vector.extract_strided_slice %56 {offsets = [0, 0], sizes = [8, 128], strides = [1, 1]} : vector<8x512xf32> to vector<8x128xf32>
    %58 = arith.negf %57 : vector<8x128xf32>
    %59 = math.exp %58 : vector<8x128xf32>
    %cst_30 = arith.constant 1.000000e+00 : f32
    %60 = vector.broadcast %cst_30 : f32 to vector<8x128xf32>
    %61 = arith.addf %60, %59 : vector<8x128xf32>
    %62 = arith.divf %60, %61 : vector<8x128xf32>
    %63 = vector.extract_strided_slice %56 {offsets = [0, 128], sizes = [8, 128], strides = [1, 1]} : vector<8x512xf32> to vector<8x128xf32>
    %64 = arith.negf %63 : vector<8x128xf32>
    %65 = math.exp %64 : vector<8x128xf32>
    %cst_31 = arith.constant 1.000000e+00 : f32
    %66 = vector.broadcast %cst_31 : f32 to vector<8x128xf32>
    %67 = arith.addf %66, %65 : vector<8x128xf32>
    %68 = arith.divf %66, %67 : vector<8x128xf32>
    %69 = vector.extract_strided_slice %56 {offsets = [0, 256], sizes = [8, 128], strides = [1, 1]} : vector<8x512xf32> to vector<8x128xf32>
    %70 = math.tanh %69 : vector<8x128xf32>
    %71 = vector.extract_strided_slice %56 {offsets = [0, 384], sizes = [8, 128], strides = [1, 1]} : vector<8x512xf32> to vector<8x128xf32>
    %72 = arith.negf %71 : vector<8x128xf32>
    %73 = math.exp %72 : vector<8x128xf32>
    %cst_32 = arith.constant 1.000000e+00 : f32
    %74 = vector.broadcast %cst_32 : f32 to vector<8x128xf32>
    %75 = arith.addf %74, %73 : vector<8x128xf32>
    %76 = arith.divf %74, %75 : vector<8x128xf32>
    %77 = arith.mulf %68, %43 : vector<8x128xf32>
    %78 = arith.mulf %62, %70 : vector<8x128xf32>
    %79 = arith.addf %77, %78 : vector<8x128xf32>
    %80 = math.tanh %79 : vector<8x128xf32>
    %81 = arith.mulf %76, %80 : vector<8x128xf32>
    %82 = arith.index_cast %c1_i32 : i32 to index
    %c0_33 = arith.constant 0 : index
    %c0_34 = arith.constant 0 : index
    %83 = vector.load %arg14[%82, %c0_33, %c0_34] : memref<4x8x128xf32, #tpu.memory_space<vmem>>, vector<1x8x128xf32>
    %84 = vector.shape_cast %83 : vector<1x8x128xf32> to vector<8x128xf32>
    %85 = vector.shape_cast %81 : vector<8x128xf32> to vector<1x8x128xf32>
    tpu.vector_store %arg14[%82, %c0_33, %c0_34], %85 {strides = array<i32>} : memref<4x8x128xf32, #tpu.memory_space<vmem>>, vector<1x8x128xf32>,
    %86 = arith.truncf %81 : vector<8x128xf32> to vector<8x128xbf16>
    %c2_i32 = arith.constant 2 : i32
    %87 = arith.index_cast %c2_i32 : i32 to index
    %c0_35 = arith.constant 0 : index
    %c0_36 = arith.constant 0 : index
    %88 = vector.load %arg13[%87, %c0_35, %c0_36] : memref<4x8x512xf32, #tpu.memory_space<vmem>>, vector<1x8x512xf32>
    %89 = vector.shape_cast %88 : vector<1x8x512xf32> to vector<8x512xf32>
    %c0_37 = arith.constant 0 : index
    %c0_38 = arith.constant 0 : index
    %90 = vector.load %arg4[%c0_37, %c0_38] : memref<128x512xbf16, #tpu.memory_space<vmem>>, vector<128x512xbf16>
    %cst_39 = arith.constant dense<0.000000e+00> : vector<8x512xf32>
    %91 = tpu.matmul %86, %90, %cst_39 {dimension_numbers = #tpu.dot_dimension_numbers<[1], [0], [0], [1], [0, 0, 1, 1], [], []>} : vector<8x128xbf16>, vector<128x512xbf16>, vector<8x512xf32> -> vector<8x512xf32>
    %92 = arith.addf %89, %91 : vector<8x512xf32>
    %93 = vector.extract_strided_slice %92 {offsets = [0, 0], sizes = [8, 128], strides = [1, 1]} : vector<8x512xf32> to vector<8x128xf32>
    %94 = arith.negf %93 : vector<8x128xf32>
    %95 = math.exp %94 : vector<8x128xf32>
    %cst_40 = arith.constant 1.000000e+00 : f32
    %96 = vector.broadcast %cst_40 : f32 to vector<8x128xf32>
    %97 = arith.addf %96, %95 : vector<8x128xf32>
    %98 = arith.divf %96, %97 : vector<8x128xf32>
    %99 = vector.extract_strided_slice %92 {offsets = [0, 128], sizes = [8, 128], strides = [1, 1]} : vector<8x512xf32> to vector<8x128xf32>
    %100 = arith.negf %99 : vector<8x128xf32>
    %101 = math.exp %100 : vector<8x128xf32>
    %cst_41 = arith.constant 1.000000e+00 : f32
    %102 = vector.broadcast %cst_41 : f32 to vector<8x128xf32>
    %103 = arith.addf %102, %101 : vector<8x128xf32>
    %104 = arith.divf %102, %103 : vector<8x128xf32>
    %105 = vector.extract_strided_slice %92 {offsets = [0, 256], sizes = [8, 128], strides = [1, 1]} : vector<8x512xf32> to vector<8x128xf32>
    %106 = math.tanh %105 : vector<8x128xf32>
    %107 = vector.extract_strided_slice %92 {offsets = [0, 384], sizes = [8, 128], strides = [1, 1]} : vector<8x512xf32> to vector<8x128xf32>
    %108 = arith.negf %107 : vector<8x128xf32>
    %109 = math.exp %108 : vector<8x128xf32>
    %cst_42 = arith.constant 1.000000e+00 : f32
    %110 = vector.broadcast %cst_42 : f32 to vector<8x128xf32>
    %111 = arith.addf %110, %109 : vector<8x128xf32>
    %112 = arith.divf %110, %111 : vector<8x128xf32>
    %113 = arith.mulf %104, %79 : vector<8x128xf32>
    %114 = arith.mulf %98, %106 : vector<8x128xf32>
    %115 = arith.addf %113, %114 : vector<8x128xf32>
    %116 = math.tanh %115 : vector<8x128xf32>
    %117 = arith.mulf %112, %116 : vector<8x128xf32>
    %118 = arith.index_cast %c2_i32 : i32 to index
    %c0_43 = arith.constant 0 : index
    %c0_44 = arith.constant 0 : index
    %119 = vector.load %arg14[%118, %c0_43, %c0_44] : memref<4x8x128xf32, #tpu.memory_space<vmem>>, vector<1x8x128xf32>
    %120 = vector.shape_cast %119 : vector<1x8x128xf32> to vector<8x128xf32>
    %121 = vector.shape_cast %117 : vector<8x128xf32> to vector<1x8x128xf32>
    tpu.vector_store %arg14[%118, %c0_43, %c0_44], %121 {strides = array<i32>} : memref<4x8x128xf32, #tpu.memory_space<vmem>>, vector<1x8x128xf32>,
    %122 = arith.truncf %117 : vector<8x128xf32> to vector<8x128xbf16>
    %c3_i32 = arith.constant 3 : i32
    %123 = arith.index_cast %c3_i32 : i32 to index
    %c0_45 = arith.constant 0 : index
    %c0_46 = arith.constant 0 : index
    %124 = vector.load %arg13[%123, %c0_45, %c0_46] : memref<4x8x512xf32, #tpu.memory_space<vmem>>, vector<1x8x512xf32>
    %125 = vector.shape_cast %124 : vector<1x8x512xf32> to vector<8x512xf32>
    %c0_47 = arith.constant 0 : index
    %c0_48 = arith.constant 0 : index
    %126 = vector.load %arg4[%c0_47, %c0_48] : memref<128x512xbf16, #tpu.memory_space<vmem>>, vector<128x512xbf16>
    %cst_49 = arith.constant dense<0.000000e+00> : vector<8x512xf32>
    %127 = tpu.matmul %122, %126, %cst_49 {dimension_numbers = #tpu.dot_dimension_numbers<[1], [0], [0], [1], [0, 0, 1, 1], [], []>} : vector<8x128xbf16>, vector<128x512xbf16>, vector<8x512xf32> -> vector<8x512xf32>
    %128 = arith.addf %125, %127 : vector<8x512xf32>
    %129 = vector.extract_strided_slice %128 {offsets = [0, 0], sizes = [8, 128], strides = [1, 1]} : vector<8x512xf32> to vector<8x128xf32>
    %130 = arith.negf %129 : vector<8x128xf32>
    %131 = math.exp %130 : vector<8x128xf32>
    %cst_50 = arith.constant 1.000000e+00 : f32
    %132 = vector.broadcast %cst_50 : f32 to vector<8x128xf32>
    %133 = arith.addf %132, %131 : vector<8x128xf32>
    %134 = arith.divf %132, %133 : vector<8x128xf32>
    %135 = vector.extract_strided_slice %128 {offsets = [0, 128], sizes = [8, 128], strides = [1, 1]} : vector<8x512xf32> to vector<8x128xf32>
    %136 = arith.negf %135 : vector<8x128xf32>
    %137 = math.exp %136 : vector<8x128xf32>
    %cst_51 = arith.constant 1.000000e+00 : f32
    %138 = vector.broadcast %cst_51 : f32 to vector<8x128xf32>
    %139 = arith.addf %138, %137 : vector<8x128xf32>
    %140 = arith.divf %138, %139 : vector<8x128xf32>
    %141 = vector.extract_strided_slice %128 {offsets = [0, 256], sizes = [8, 128], strides = [1, 1]} : vector<8x512xf32> to vector<8x128xf32>
    %142 = math.tanh %141 : vector<8x128xf32>
    %143 = vector.extract_strided_slice %128 {offsets = [0, 384], sizes = [8, 128], strides = [1, 1]} : vector<8x512xf32> to vector<8x128xf32>
    %144 = arith.negf %143 : vector<8x128xf32>
    %145 = math.exp %144 : vector<8x128xf32>
    %cst_52 = arith.constant 1.000000e+00 : f32
    %146 = vector.broadcast %cst_52 : f32 to vector<8x128xf32>
    %147 = arith.addf %146, %145 : vector<8x128xf32>
    %148 = arith.divf %146, %147 : vector<8x128xf32>
    %149 = arith.mulf %140, %115 : vector<8x128xf32>
    %150 = arith.mulf %134, %142 : vector<8x128xf32>
    %151 = arith.addf %149, %150 : vector<8x128xf32>
    %152 = math.tanh %151 : vector<8x128xf32>
    %153 = arith.mulf %148, %152 : vector<8x128xf32>
    %154 = arith.index_cast %c3_i32 : i32 to index
    %c0_53 = arith.constant 0 : index
    %c0_54 = arith.constant 0 : index
    %155 = vector.load %arg14[%154, %c0_53, %c0_54] : memref<4x8x128xf32, #tpu.memory_space<vmem>>, vector<1x8x128xf32>
    %156 = vector.shape_cast %155 : vector<1x8x128xf32> to vector<8x128xf32>
    %157 = vector.shape_cast %153 : vector<8x128xf32> to vector<1x8x128xf32>
    tpu.vector_store %arg14[%154, %c0_53, %c0_54], %157 {strides = array<i32>} : memref<4x8x128xf32, #tpu.memory_space<vmem>>, vector<1x8x128xf32>,
    %158 = arith.truncf %153 : vector<8x128xf32> to vector<8x128xbf16>
    %c4_i32 = arith.constant 4 : i32
    %159 = arith.extf %158 : vector<8x128xbf16> to vector<8x128xf32>
    %c0_55 = arith.constant 0 : index
    %c0_56 = arith.constant 0 : index
    %160 = vector.load %arg15[%c0_55, %c0_56] : memref<8x128xf32, #tpu.memory_space<vmem>>, vector<8x128xf32>
    tpu.vector_store %arg15[%c0_55, %c0_56], %159 {strides = array<i32>} : memref<8x128xf32, #tpu.memory_space<vmem>>, vector<8x128xf32>,
    %c0_57 = arith.constant 0 : index
    %c0_58 = arith.constant 0 : index
    %161 = vector.load %arg16[%c0_57, %c0_58] : memref<8x128xf32, #tpu.memory_space<vmem>>, vector<8x128xf32>
    tpu.vector_store %arg16[%c0_57, %c0_58], %151 {strides = array<i32>} : memref<8x128xf32, #tpu.memory_space<vmem>>, vector<8x128xf32>,
    %c0_59 = arith.constant 0 : index
    %c0_60 = arith.constant 0 : index
    %162 = vector.load %arg15[%c0_59, %c0_60] : memref<8x128xf32, #tpu.memory_space<vmem>>, vector<8x128xf32>
    %c0_61 = arith.constant 0 : index
    %c0_62 = arith.constant 0 : index
    %163 = vector.load %arg11[%c0_61, %c0_62] : memref<8x128xf32, #tpu.memory_space<vmem>>, vector<8x128xf32>
    tpu.vector_store %arg11[%c0_61, %c0_62], %162 {strides = array<i32>} : memref<8x128xf32, #tpu.memory_space<vmem>>, vector<8x128xf32>,
    %c0_63 = arith.constant 0 : index
    %c0_64 = arith.constant 0 : index
    %164 = vector.load %arg16[%c0_63, %c0_64] : memref<8x128xf32, #tpu.memory_space<vmem>>, vector<8x128xf32>
    %c0_65 = arith.constant 0 : index
    %c0_66 = arith.constant 0 : index
    %165 = vector.load %arg12[%c0_65, %c0_66] : memref<8x128xf32, #tpu.memory_space<vmem>>, vector<8x128xf32>
    tpu.vector_store %arg12[%c0_65, %c0_66], %164 {strides = array<i32>} : memref<8x128xf32, #tpu.memory_space<vmem>>, vector<8x128xf32>,
    %c0_67 = arith.constant 0 : index
    %c0_68 = arith.constant 0 : index
    %c0_69 = arith.constant 0 : index
    %166 = vector.load %arg14[%c0_67, %c0_68, %c0_69] : memref<4x8x128xf32, #tpu.memory_space<vmem>>, vector<4x8x128xf32>
    %167 = vector.shape_cast %166 : vector<4x8x128xf32> to vector<32x128xf32>
    %168 = arith.truncf %167 : vector<32x128xf32> to vector<32x128xbf16>
    %c0_70 = arith.constant 0 : index
    %c0_71 = arith.constant 0 : index
    %169 = vector.load %arg6[%c0_70, %c0_71] : memref<128x128xbf16, #tpu.memory_space<vmem>>, vector<128x128xbf16>
    %cst_72 = arith.constant dense<0.000000e+00> : vector<32x128xf32>
    %170 = tpu.matmul %168, %169, %cst_72 {dimension_numbers = #tpu.dot_dimension_numbers<[1], [0], [0], [1], [0, 0, 1, 1], [], []>} : vector<32x128xbf16>, vector<128x128xbf16>, vector<32x128xf32> -> vector<32x128xf32>
    %c0_73 = arith.constant 0 : index
    %c0_74 = arith.constant 0 : index
    %171 = vector.load %arg7[%c0_73, %c0_74] : memref<1x128xf32, #tpu.memory_space<vmem>>, vector<1x128xf32>
    %172 = vector.broadcast %171 : vector<1x128xf32> to vector<32x128xf32>
    %173 = arith.addf %170, %172 : vector<32x128xf32>
    %174 = vector.shape_cast %173 : vector<32x128xf32> to vector<4x8x128xf32>
    %c0_75 = arith.constant 0 : index
    %c0_76 = arith.constant 0 : index
    %c0_77 = arith.constant 0 : index
    %175 = vector.load %arg10[%c0_75, %c0_76, %c0_77] : memref<4x8x128xf32, #tpu.memory_space<vmem>>, vector<4x8x128xf32>
    tpu.vector_store %arg10[%c0_75, %c0_76, %c0_77], %174 {strides = array<i32>} : memref<4x8x128xf32, #tpu.memory_space<vmem>>, vector<4x8x128xf32>,
    return
  }
  func.func @transform_0(%arg0: i32, %arg1: i32) -> (i32, i32, i32) {
    %c0_i32 = arith.constant 0 : i32
    %c0_i32_0 = arith.constant 0 : i32
    return %arg1, %arg0, %c0_i32 : i32, i32, i32
  }
  func.func @transform_1(%arg0: i32, %arg1: i32) -> (i32, i32) {
    %c0_i32 = arith.constant 0 : i32
    %c0_i32_0 = arith.constant 0 : i32
    %c0_i32_1 = arith.constant 0 : i32
    return %c0_i32, %c0_i32_0 : i32, i32
  }
  func.func @transform_2(%arg0: i32, %arg1: i32) -> (i32, i32) {
    %c0_i32 = arith.constant 0 : i32
    %c0_i32_0 = arith.constant 0 : i32
    %c0_i32_1 = arith.constant 0 : i32
    return %c0_i32, %c0_i32_0 : i32, i32
  }
  func.func @transform_3(%arg0: i32, %arg1: i32) -> (i32, i32) {
    %c0_i32 = arith.constant 0 : i32
    %c0_i32_0 = arith.constant 0 : i32
    %c0_i32_1 = arith.constant 0 : i32
    return %c0_i32, %c0_i32_0 : i32, i32
  }
  func.func @transform_4(%arg0: i32, %arg1: i32) -> (i32, i32) {
    %c0_i32 = arith.constant 0 : i32
    %c0_i32_0 = arith.constant 0 : i32
    %c0_i32_1 = arith.constant 0 : i32
    return %c0_i32, %c0_i32_0 : i32, i32
  }
  func.func @transform_5(%arg0: i32, %arg1: i32) -> (i32, i32) {
    %c0_i32 = arith.constant 0 : i32
    %c0_i32_0 = arith.constant 0 : i32
    %c0_i32_1 = arith.constant 0 : i32
    return %c0_i32, %c0_i32_0 : i32, i32
  }
  func.func @transform_6(%arg0: i32, %arg1: i32) -> (i32, i32) {
    %c0_i32 = arith.constant 0 : i32
    %c0_i32_0 = arith.constant 0 : i32
    return %arg0, %c0_i32 : i32, i32
  }
  func.func @transform_7(%arg0: i32, %arg1: i32) -> (i32, i32) {
    %c0_i32 = arith.constant 0 : i32
    %c0_i32_0 = arith.constant 0 : i32
    return %arg0, %c0_i32 : i32, i32
  }
  func.func @transform_8(%arg0: i32, %arg1: i32) -> (i32, i32, i32) {
    %c0_i32 = arith.constant 0 : i32
    %c0_i32_0 = arith.constant 0 : i32
    return %arg1, %arg0, %c0_i32 : i32, i32, i32
  }
  func.func @transform_9(%arg0: i32, %arg1: i32) -> (i32, i32) {
    %c0_i32 = arith.constant 0 : i32
    %c0_i32_0 = arith.constant 0 : i32
    return %arg0, %c0_i32 : i32, i32
  }
  func.func @transform_10(%arg0: i32, %arg1: i32) -> (i32, i32) {
    %c0_i32 = arith.constant 0 : i32
    %c0_i32_0 = arith.constant 0 : i32
    return %arg0, %c0_i32 : i32, i32
  }
}

</mosaic_0001>

<llo_original>
// kernel: dqn_lstm_forward.4
$region0: #{dqn_lstm_forward.4}
  #allocation0 [shape = 'u32[]', space=smem, size = 0x4, offset = 0x4, fixed_abs, tag = 'smem constant byte address 0x4 - core index']
  #allocation1 [shape = 'u32[144,128]{1,0:T(1,128)}', space=vmem, size = 0x12000, scoped, tag = 'internal scratch']
  %s0 = inlined_call_operand.vmem [shape: bf16[512,256], index: 0, kind: input, shape index: {}]
  %s1 = inlined_call_operand.vmem [shape: bf16[256,128], index: 1, kind: input, shape index: {}]
  %s2 = inlined_call_operand.vmem [shape: f32[1,128], index: 2, kind: input, shape index: {}]
  %s3 = inlined_call_operand.vmem [shape: bf16[512,128], index: 3, kind: output, shape index: {}]
  %s4 = sld [smem:[#allocation0]]
  $region45: #{dqn_lstm_forward.4} parent=0
    _
  %s6 = ssub.s32 1, %s4
  %s7 = scalar_select 0, %s6, %s4
  loop: start=0, step=1, limit=4
  $region2: #{dqn_lstm_forward.4} parent=0 // loop_pre_header
    _
  $region3: #{dqn_lstm_forward.4} parent=0 // loop_header
    %s9 = sphi 0, %s13
    %p10 = scmp.ge.s32.totalorder %s9, 4
    %s19 = sphi 0, %s21
    %s22 = sphi 0, %s19
    %s23 = sphi 0, %s22
    %s39 = sphi 0, %s23
    %s43 = sphi 0, %s43
    %s45 = sphi 0, %s43
    %s46 = sphi 0, %s45
    %s60 = sphi 0, %s46
    %s64 = sphi 0, %s64
    %s66 = sphi 0, %s64
    %s67 = sphi 0, %s66
    %s81 = sphi 0, %s67
    %s87 = sphi 0, %s89
    %s90 = sphi 0, %s87
    %s91 = sphi 0, %s90
    %s107 = sphi 0, %s91
  $region4: #{dqn_lstm_forward.4} parent=0 // loop_header_branch
    %12 = sbr.rel (%p10) target = $region8
  $region5: #{dqn_lstm_forward.4} parent=0 // loop_body
    %s14 = ssub.s32 %s9, 1
    %s15 = ssub.s32 %s9, 2
    %s16 = sadd.s32 %s9, 1
    %s17 = ssub.s32 %s9, %s16
    %p18 = scmp.eq.s32.totalorder %s17, 0
    %s20 = sadd.s32 %s19, 1
    %s21 = scalar_select %p18, %s19, %s20
    %p24 = pneg %p18
    %p25 = scmp.eq.s32.totalorder %s9, 1
    %p26 = por %p24, %p25
    %p27 = scmp.ne.s32.totalorder %s19, %s22
    %p28 = scmp.eq.s32.totalorder %s9, 0
    %p29 = por %p27, %p28
    %p30 = scmp.ne.s32.totalorder %s19, %s22
    %p31 = scmp.eq.s32.totalorder %s14, 1
    %p32 = por %p30, %p31
    %p33 = scmp.ne.s32.totalorder %s22, %s23
    %p34 = scmp.eq.s32.totalorder %s14, 0
    %p35 = por %p33, %p34
    %p36 = scmp.ne.s32.totalorder %s22, %s23
    %p37 = scmp.eq.s32.totalorder %s15, 1
    %p38 = por %p36, %p37
    %p40 = scmp.ne.s32.totalorder %s23, %s39
    %p41 = scmp.eq.s32.totalorder %s15, 0
    %p42 = por %p40, %p41
    %s44 = sadd.s32 %s43, 1
    %p47 = scmp.eq.s32.totalorder %s9, 1
    %p48 = scmp.ne.s32.totalorder %s43, %s45
    %p49 = scmp.eq.s32.totalorder %s9, 0
    %p50 = por %p48, %p49
    %p51 = scmp.ne.s32.totalorder %s43, %s45
    %p52 = scmp.eq.s32.totalorder %s14, 1
    %p53 = por %p51, %p52
    %p54 = scmp.ne.s32.totalorder %s45, %s46
    %p55 = scmp.eq.s32.totalorder %s14, 0
    %p56 = por %p54, %p55
    %p57 = scmp.ne.s32.totalorder %s45, %s46
    %p58 = scmp.eq.s32.totalorder %s15, 1
    %p59 = por %p57, %p58
    %p61 = scmp.ne.s32.totalorder %s46, %s60
    %p62 = scmp.eq.s32.totalorder %s15, 0
    %p63 = por %p61, %p62
    %s65 = sadd.s32 %s64, 1
    %p68 = scmp.eq.s32.totalorder %s9, 1
    %p69 = scmp.ne.s32.totalorder %s64, %s66
    %p70 = scmp.eq.s32.totalorder %s9, 0
    %p71 = por %p69, %p70
    %p72 = scmp.ne.s32.totalorder %s64, %s66
    %p73 = scmp.eq.s32.totalorder %s14, 1
    %p74 = por %p72, %p73
    %p75 = scmp.ne.s32.totalorder %s66, %s67
    %p76 = scmp.eq.s32.totalorder %s14, 0
    %p77 = por %p75, %p76
    %p78 = scmp.ne.s32.totalorder %s66, %s67
    %p79 = scmp.eq.s32.totalorder %s15, 1
    %p80 = por %p78, %p79
    %p82 = scmp.ne.s32.totalorder %s67, %s81
    %p83 = scmp.eq.s32.totalorder %s15, 0
    %p84 = por %p82, %p83
    %s85 = ssub.s32 %s9, %s16
    %p86 = scmp.eq.s32.totalorder %s85, 0
    %s88 = sadd.s32 %s87, 1
    %s89 = scalar_select %p86, %s87, %s88
    %p92 = pneg %p86
    %p93 = scmp.eq.s32.totalorder %s9, 1
    %p94 = por %p92, %p93
    %p95 = scmp.ne.s32.totalorder %s87, %s90
    %p96 = scmp.eq.s32.totalorder %s9, 0
    %p97 = por %p95, %p96
    %p98 = scmp.ne.s32.totalorder %s87, %s90
    %p99 = scmp.eq.s32.totalorder %s14, 1
    %p100 = por %p98, %p99
    %p101 = scmp.ne.s32.totalorder %s90, %s91
    %p102 = scmp.eq.s32.totalorder %s14, 0
    %p103 = por %p101, %p102
    %p104 = scmp.ne.s32.totalorder %s90, %s91
    %p105 = scmp.eq.s32.totalorder %s15, 1
    %p106 = por %p104, %p105
    %p108 = scmp.ne.s32.totalorder %s91, %s107
    %p109 = scmp.eq.s32.totalorder %s15, 0
    %p110 = por %p108, %p109
    %p111 = scmp.le.s32.totalorder 1, %s9
    %p112 = scmp.lt.s32.totalorder %s9, 3
    %p113 = pnand %p111, %p112
    %p114 = pneg %p113
    // Predicated region
    $region9: #{dqn_lstm_forward.4} parent=5 // pred_check
      _
    $region10: #{dqn_lstm_forward.4} parent=5 // pred_check_branch
      %116 = sbr.rel (%p113) target = $region12
    $region11: #{dqn_lstm_forward.4} parent=5 // pred_region
      %s117 = ssub.s32 %s9, 1
      // Predicated region
      $region13: #{dqn_lstm_forward.4} parent=11 // pred_check
        %p118 = pneg %p56
      $region14: #{dqn_lstm_forward.4} parent=11 // pred_check_branch
        %120 = sbr.rel (%p118) target = $region16
      $region15: #{dqn_lstm_forward.4} parent=11 // pred_region
        _
      $region16: #{dqn_lstm_forward.4} parent=11 // pred_fallthru
        _
      // Predicated region
      $region17: #{dqn_lstm_forward.4} parent=11 // pred_check
        %p121 = pneg %p77
      $region18: #{dqn_lstm_forward.4} parent=11 // pred_check_branch
        %123 = sbr.rel (%p121) target = $region20
      $region19: #{dqn_lstm_forward.4} parent=11 // pred_region
        _
      $region20: #{dqn_lstm_forward.4} parent=11 // pred_fallthru
        _
    $region12: #{dqn_lstm_forward.4} parent=5 // pred_fallthru
      _
    %p124 = scmp.lt.s32.totalorder %s9, 2
    // Predicated region
    $region21: #{dqn_lstm_forward.4} parent=5 // pred_check
      %p125 = pneg %p124
    $region22: #{dqn_lstm_forward.4} parent=5 // pred_check_branch
      %127 = sbr.rel (%p125) target = $region24
    $region23: #{dqn_lstm_forward.4} parent=5 // pred_region
      // Predicated region
      $region25: #{dqn_lstm_forward.4} parent=23 // pred_check
        %p128 = pneg %p29
      $region26: #{dqn_lstm_forward.4} parent=23 // pred_check_branch
        %130 = sbr.rel (%p128) target = $region28
      $region27: #{dqn_lstm_forward.4} parent=23 // pred_region
        %s131 = smul.u32 32, %s9
        %p132 = scmp.lt.s32.totalorder %s131, 63
        %s133 = scalar_select %p132, %s131, 63
        %s134 = smul.addr %s133, 2
        %s135 = smul.addr %s134, 4
        %s136 = scalar_lea.vmem %s0, %s135
        %s137 = smul.u32 32, %s9
      $region28: #{dqn_lstm_forward.4} parent=23 // pred_fallthru
        _
    $region24: #{dqn_lstm_forward.4} parent=5 // pred_fallthru
      _
    %p138 = scmp.le.s32.totalorder 1, %s9
    %p139 = scmp.lt.s32.totalorder %s9, 3
    %p140 = pnand %p138, %p139
    %p141 = pneg %p140
    // Predicated region
    $region29: #{dqn_lstm_forward.4} parent=5 // pred_check
      _
    $region30: #{dqn_lstm_forward.4} parent=5 // pred_check_branch
      %143 = sbr.rel (%p140) target = $region32
    $region31: #{dqn_lstm_forward.4} parent=5 // pred_region
      %s144 = ssub.s32 %s9, 1
      %s145 = smul.u32 32, %s14
      %p146 = scmp.lt.s32.totalorder %s145, 63
      %s147 = scalar_select %p146, %s145, 63
      %s148 = smul.addr %s147, 2
      %s149 = smul.addr %s148, 4
      %s150 = scalar_lea.vmem %s0, %s149
      %p151 = pneg %p35
      %p152 = pneg %p32
      %p153 = pneg %p56
      %p154 = pneg %p53
      %p155 = pneg %p77
      %p156 = pneg %p74
      %p157 = pneg %p103
      %p158 = pneg %p100
      %s159 = smul.u32 32, %s14
      %p160 = scmp.lt.s32.totalorder %s159, 63
      %s161 = scalar_select %p160, %s159, 63
      %s162 = smul.addr %s161, 4
      %s163 = scalar_lea.vmem %s3, %s162
      %s164 = smul.u32 32, %s14
      %p165 = scmp.lt.s32.totalorder %s164, 63
      %s166 = scalar_select %p165, %s164, 63
      %s167 = smul.addr %s166, 2
      %s168 = smul.addr %s167, 4
      %s169 = scalar_lea.vmem %s0, %s168
      %s170 = smul.u32 32, %s14
      %s171 = smul.u32 32, %s14
      %p172 = scmp.lt.s32.totalorder %s171, 63
      %s173 = scalar_select %p172, %s171, 63
      %s174 = smul.addr %s173, 4
      %s175 = scalar_lea.vmem %s3, %s174
      %s176 = smul.u32 32, %s14
      %v178 = vld [vmem:[%s169] sm:$0xff]
      %v179 = vld [vmem:[%s169 + $0x8] sm:$0xff]
      %v180 = vld [vmem:[%s169 + $0x10] sm:$0xff]
      %v181 = vld [vmem:[%s169 + $0x18] sm:$0xff]
      %v182 = vld [vmem:[%s169 + $0x20] sm:$0xff]
      %v183 = vld [vmem:[%s169 + $0x28] sm:$0xff]
      %v184 = vld [vmem:[%s169 + $0x30] sm:$0xff]
      %v185 = vld [vmem:[%s169 + $0x38] sm:$0xff]
      %v186 = vld [vmem:[%s169 + $0x40] sm:$0xff]
      %v187 = vld [vmem:[%s169 + $0x48] sm:$0xff]
      %v188 = vld [vmem:[%s169 + $0x50] sm:$0xff]
      %v189 = vld [vmem:[%s169 + $0x58] sm:$0xff]
      %v190 = vld [vmem:[%s169 + $0x60] sm:$0xff]
      %v191 = vld [vmem:[%s169 + $0x68] sm:$0xff]
      %v192 = vld [vmem:[%s169 + $0x70] sm:$0xff]
      %v193 = vld [vmem:[%s169 + $0x78] sm:$0xff]
      %v194 = vld [vmem:[%s169 + $0x80] sm:$0xff]
      %v195 = vld [vmem:[%s169 + $0x88] sm:$0xff]
      %v196 = vld [vmem:[%s169 + $0x90] sm:$0xff]
      %v197 = vld [vmem:[%s169 + $0x98] sm:$0xff]
      %v198 = vld [vmem:[%s169 + $0xa0] sm:$0xff]
      %v199 = vld [vmem:[%s169 + $0xa8] sm:$0xff]
      %v200 = vld [vmem:[%s169 + $0xb0] sm:$0xff]
      %v201 = vld [vmem:[%s169 + $0xb8] sm:$0xff]
      %v202 = vld [vmem:[%s169 + $0xc0] sm:$0xff]
      %v203 = vld [vmem:[%s169 + $0xc8] sm:$0xff]
      %v204 = vld [vmem:[%s169 + $0xd0] sm:$0xff]
      %v205 = vld [vmem:[%s169 + $0xd8] sm:$0xff]
      %v206 = vld [vmem:[%s169 + $0xe0] sm:$0xff]
      %v207 = vld [vmem:[%s169 + $0xe8] sm:$0xff]
      %v208 = vld [vmem:[%s169 + $0xf0] sm:$0xff]
      %v209 = vld [vmem:[%s169 + $0xf8] sm:$0xff]
      %v210 = vld [vmem:[%s1] sm:$0xf]
      %v211 = vld [vmem:[%s1 + $0x4] sm:$0xf]
      %v212 = vld [vmem:[%s1 + $0x8] sm:$0xf]
      %v213 = vld [vmem:[%s1 + $0xc] sm:$0xf]
      %v214 = vld [vmem:[%s1 + $0x10] sm:$0xf]
      %v215 = vld [vmem:[%s1 + $0x14] sm:$0xf]
      %v216 = vld [vmem:[%s1 + $0x18] sm:$0xf]
      %v217 = vld [vmem:[%s1 + $0x1c] sm:$0xf]
      %v218 = vld [vmem:[%s1 + $0x20] sm:$0xf]
      %v219 = vld [vmem:[%s1 + $0x24] sm:$0xf]
      %v220 = vld [vmem:[%s1 + $0x28] sm:$0xf]
      %v221 = vld [vmem:[%s1 + $0x2c] sm:$0xf]
      %v222 = vld [vmem:[%s1 + $0x30] sm:$0xf]
      %v223 = vld [vmem:[%s1 + $0x34] sm:$0xf]
      %v224 = vld [vmem:[%s1 + $0x38] sm:$0xf]
      %v225 = vld [vmem:[%s1 + $0x3c] sm:$0xf]
      %v226 = vld [vmem:[%s1 + $0x40] sm:$0xf]
      %v227 = vld [vmem:[%s1 + $0x44] sm:$0xf]
      %v228 = vld [vmem:[%s1 + $0x48] sm:$0xf]
      %v229 = vld [vmem:[%s1 + $0x4c] sm:$0xf]
      %v230 = vld [vmem:[%s1 + $0x50] sm:$0xf]
      %v231 = vld [vmem:[%s1 + $0x54] sm:$0xf]
      %v232 = vld [vmem:[%s1 + $0x58] sm:$0xf]
      %v233 = vld [vmem:[%s1 + $0x5c] sm:$0xf]
      %v234 = vld [vmem:[%s1 + $0x60] sm:$0xf]
      %v235 = vld [vmem:[%s1 + $0x64] sm:$0xf]
      %v236 = vld [vmem:[%s1 + $0x68] sm:$0xf]
      %v237 = vld [vmem:[%s1 + $0x6c] sm:$0xf]
      %v238 = vld [vmem:[%s1 + $0x70] sm:$0xf]
      %v239 = vld [vmem:[%s1 + $0x74] sm:$0xf]
      %v240 = vld [vmem:[%s1 + $0x78] sm:$0xf]
      %v241 = vld [vmem:[%s1 + $0x7c] sm:$0xf]
      %v242 = vld [vmem:[%s2] sm:$0x1]
      %v244 = vlaneseq
      %v245 = vshrl.u32 %v244, 7
      %v246 = vsub.s32 0, %v245
      %v247 = vrot.slane %v242, %v246
      %v281 = vunpack.c.l.b16 %v178
      %v282 = vunpack.c.h.b16 %v178
      %v283 = vunpack.c.l.b16 %v179
      %v284 = vunpack.c.h.b16 %v179
      %v285 = vunpack.c.l.b16 %v180
      %v286 = vunpack.c.h.b16 %v180
      %v287 = vunpack.c.l.b16 %v181
      %v288 = vunpack.c.h.b16 %v181
      %v289 = vunpack.c.l.b16 %v182
      %v290 = vunpack.c.h.b16 %v182
      %v291 = vunpack.c.l.b16 %v183
      %v292 = vunpack.c.h.b16 %v183
      %v293 = vunpack.c.l.b16 %v184
      %v294 = vunpack.c.h.b16 %v184
      %v295 = vunpack.c.l.b16 %v185
      %v296 = vunpack.c.h.b16 %v185
      %v297 = vunpack.c.l.b16 %v186
      %v298 = vunpack.c.h.b16 %v186
      %v299 = vunpack.c.l.b16 %v187
      %v300 = vunpack.c.h.b16 %v187
      %v301 = vunpack.c.l.b16 %v188
      %v302 = vunpack.c.h.b16 %v188
      %v303 = vunpack.c.l.b16 %v189
      %v304 = vunpack.c.h.b16 %v189
      %v305 = vunpack.c.l.b16 %v190
      %v306 = vunpack.c.h.b16 %v190
      %v307 = vunpack.c.l.b16 %v191
      %v308 = vunpack.c.h.b16 %v191
      %v309 = vunpack.c.l.b16 %v192
      %v310 = vunpack.c.h.b16 %v192
      %v311 = vunpack.c.l.b16 %v193
      %v312 = vunpack.c.h.b16 %v193
      %v313 = vunpack.c.l.b16 %v194
      %v314 = vunpack.c.h.b16 %v194
      %v315 = vunpack.c.l.b16 %v195
      %v316 = vunpack.c.h.b16 %v195
      %v317 = vunpack.c.l.b16 %v196
      %v318 = vunpack.c.h.b16 %v196
      %v319 = vunpack.c.l.b16 %v197
      %v320 = vunpack.c.h.b16 %v197
      %v321 = vunpack.c.l.b16 %v198
      %v322 = vunpack.c.h.b16 %v198
      %v323 = vunpack.c.l.b16 %v199
      %v324 = vunpack.c.h.b16 %v199
      %v325 = vunpack.c.l.b16 %v200
      %v326 = vunpack.c.h.b16 %v200
      %v327 = vunpack.c.l.b16 %v201
      %v328 = vunpack.c.h.b16 %v201
      %v329 = vunpack.c.l.b16 %v202
      %v330 = vunpack.c.h.b16 %v202
      %v331 = vunpack.c.l.b16 %v203
      %v332 = vunpack.c.h.b16 %v203
      %v333 = vunpack.c.l.b16 %v204
      %v334 = vunpack.c.h.b16 %v204
      %v335 = vunpack.c.l.b16 %v205
      %v336 = vunpack.c.h.b16 %v205
      %v337 = vunpack.c.l.b16 %v206
      %v338 = vunpack.c.h.b16 %v206
      %v339 = vunpack.c.l.b16 %v207
      %v340 = vunpack.c.h.b16 %v207
      %v341 = vunpack.c.l.b16 %v208
      %v342 = vunpack.c.h.b16 %v208
      %v343 = vunpack.c.l.b16 %v209
      %v344 = vunpack.c.h.b16 %v209
      %v345 = vpack.c.b16 %v283, %v281
      %v346 = vpack.c.b16 %v284, %v282
      %v347 = vpack.c.b16 %v287, %v285
      %v348 = vpack.c.b16 %v288, %v286
      %v349 = vpack.c.b16 %v291, %v289
      %v350 = vpack.c.b16 %v292, %v290
      %v351 = vpack.c.b16 %v295, %v293
      %v352 = vpack.c.b16 %v296, %v294
      %v353 = vpack.c.b16 %v299, %v297
      %v354 = vpack.c.b16 %v300, %v298
      %v355 = vpack.c.b16 %v303, %v301
      %v356 = vpack.c.b16 %v304, %v302
      %v357 = vpack.c.b16 %v307, %v305
      %v358 = vpack.c.b16 %v308, %v306
      %v359 = vpack.c.b16 %v311, %v309
      %v360 = vpack.c.b16 %v312, %v310
      %v361 = vpack.c.b16 %v315, %v313
      %v362 = vpack.c.b16 %v316, %v314
      %v363 = vpack.c.b16 %v319, %v317
      %v364 = vpack.c.b16 %v320, %v318
      %v365 = vpack.c.b16 %v323, %v321
      %v366 = vpack.c.b16 %v324, %v322
      %v367 = vpack.c.b16 %v327, %v325
      %v368 = vpack.c.b16 %v328, %v326
      %v369 = vpack.c.b16 %v331, %v329
      %v370 = vpack.c.b16 %v332, %v330
      %v371 = vpack.c.b16 %v335, %v333
      %v372 = vpack.c.b16 %v336, %v334
      %v373 = vpack.c.b16 %v339, %v337
      %v374 = vpack.c.b16 %v340, %v338
      %v375 = vpack.c.b16 %v343, %v341
      %v376 = vpack.c.b16 %v344, %v342
      %v441 = vunpack.c.l.b16 %v210
      %v442 = vunpack.c.l.b16 %v211
      %v443 = vunpack.c.l.b16 %v212
      %v444 = vunpack.c.l.b16 %v213
      %v445 = vunpack.c.l.b16 %v214
      %v446 = vunpack.c.l.b16 %v215
      %v447 = vunpack.c.l.b16 %v216
      %v448 = vunpack.c.l.b16 %v217
      %v449 = vunpack.c.l.b16 %v218
      %v450 = vunpack.c.l.b16 %v219
      %v451 = vunpack.c.l.b16 %v220
      %v452 = vunpack.c.l.b16 %v221
      %v453 = vunpack.c.l.b16 %v222
      %v454 = vunpack.c.l.b16 %v223
      %v455 = vunpack.c.l.b16 %v224
      %v456 = vunpack.c.l.b16 %v225
      %v457 = vunpack.c.l.b16 %v226
      %v458 = vunpack.c.l.b16 %v227
      %v459 = vunpack.c.l.b16 %v228
      %v460 = vunpack.c.l.b16 %v229
      %v461 = vunpack.c.l.b16 %v230
      %v462 = vunpack.c.l.b16 %v231
      %v463 = vunpack.c.l.b16 %v232
      %v464 = vunpack.c.l.b16 %v233
      %v465 = vunpack.c.l.b16 %v234
      %v466 = vunpack.c.l.b16 %v235
      %v467 = vunpack.c.l.b16 %v236
      %v468 = vunpack.c.l.b16 %v237
      %v469 = vunpack.c.l.b16 %v238
      %v470 = vunpack.c.l.b16 %v239
      %v471 = vunpack.c.l.b16 %v240
      %v472 = vunpack.c.l.b16 %v241
      %v473 = vpack.c.b16 %v442, %v441
      %v474 = vpack.c.b16 %v444, %v443
      %v475 = vpack.c.b16 %v446, %v445
      %v476 = vpack.c.b16 %v448, %v447
      %v477 = vpack.c.b16 %v450, %v449
      %v478 = vpack.c.b16 %v452, %v451
      %v479 = vpack.c.b16 %v454, %v453
      %v480 = vpack.c.b16 %v456, %v455
      %v481 = vpack.c.b16 %v458, %v457
      %v482 = vpack.c.b16 %v460, %v459
      %v483 = vpack.c.b16 %v462, %v461
      %v484 = vpack.c.b16 %v464, %v463
      %v485 = vpack.c.b16 %v466, %v465
      %v486 = vpack.c.b16 %v468, %v467
      %v487 = vpack.c.b16 %v470, %v469
      %v488 = vpack.c.b16 %v472, %v471
      %505 = vmatprep.subr.bf16.mxu0 0
      %506 = vmatpush1.bf16.msra.mxu0 %v473
      %507 = vmatprep.subr.bf16.mxu0 0
      %508 = vmatpush1.bf16.msra.mxu0 %v474
      %509 = vmatprep.subr.bf16.mxu0 0
      %510 = vmatpush1.bf16.msra.mxu0 %v475
      %511 = vmatprep.subr.bf16.mxu0 0
      %512 = vmatpush1.bf16.msra.mxu0 %v476
      %513 = vmatprep.subr.bf16.mxu0 0
      %514 = vmatpush1.bf16.msra.mxu0 %v477
      %515 = vmatprep.subr.bf16.mxu0 0
      %516 = vmatpush1.bf16.msra.mxu0 %v478
      %517 = vmatprep.subr.bf16.mxu0 0
      %518 = vmatpush1.bf16.msra.mxu0 %v479
      %519 = vmatprep.subr.bf16.mxu0 0
      %520 = vmatpush1.bf16.msra.mxu0 %v480
      %521 = vmatprep.subr.bf16.mxu0 0
      %522 = vmatpush1.bf16.msra.mxu0 %v481
      %523 = vmatprep.subr.bf16.mxu0 0
      %524 = vmatpush1.bf16.msra.mxu0 %v482
      %525 = vmatprep.subr.bf16.mxu0 0
      %526 = vmatpush1.bf16.msra.mxu0 %v483
      %527 = vmatprep.subr.bf16.mxu0 0
      %528 = vmatpush1.bf16.msra.mxu0 %v484
      %529 = vmatprep.subr.bf16.mxu0 0
      %530 = vmatpush1.bf16.msra.mxu0 %v485
      %531 = vmatprep.subr.bf16.mxu0 0
      %532 = vmatpush1.bf16.msra.mxu0 %v486
      %533 = vmatprep.subr.bf16.mxu0 0
      %534 = vmatpush1.bf16.msra.mxu0 %v487
      %535 = vmatprep.subr.bf16.mxu0 0
      %536 = vmatpush1.bf16.msra.mxu0 %v488
      %537 = vmatprep.mubr.bf16.mxu0 %v346
      %538 = vmatmul.mubr.bf16.gmra.mrb[0].mxu0 %v345
      %v539 = vpop.f32.mrb[0].mxu0
      %v540 = vadd.f32 %v247, %v539
      %v541 = vpop.f32.mrb[0].mxu0
      %v542 = vpop.f32.mrb[0].mxu0
      %v543 = vadd.f32 %v247, %v542
      %v544 = vpop.f32.mrb[0].mxu0
      %545 = vmatprep.mubr.bf16.mxu0 %v348
      %546 = vmatmul.mubr.bf16.gmra.mrb[0].mxu0 %v347
      %v547 = vpop.f32.mrb[0].mxu0
      %v548 = vadd.f32 %v247, %v547
      %v549 = vpop.f32.mrb[0].mxu0
      %v550 = vpop.f32.mrb[0].mxu0
      %v551 = vadd.f32 %v247, %v550
      %v552 = vpop.f32.mrb[0].mxu0
      %553 = vmatprep.mubr.bf16.mxu0 %v350
      %554 = vmatmul.mubr.bf16.gmra.mrb[0].mxu0 %v349
      %v555 = vpop.f32.mrb[0].mxu0
      %v556 = vadd.f32 %v247, %v555
      %v557 = vpop.f32.mrb[0].mxu0
      %v558 = vpop.f32.mrb[0].mxu0
      %v559 = vadd.f32 %v247, %v558
      %v560 = vpop.f32.mrb[0].mxu0
      %561 = vmatprep.mubr.bf16.mxu0 %v352
      %562 = vmatmul.mubr.bf16.gmra.mrb[0].mxu0 %v351
      %v563 = vpop.f32.mrb[0].mxu0
      %v564 = vadd.f32 %v247, %v563
      %v565 = vpop.f32.mrb[0].mxu0
      %v566 = vpop.f32.mrb[0].mxu0
      %v567 = vadd.f32 %v247, %v566
      %v568 = vpop.f32.mrb[0].mxu0
      %569 = vmatprep.mubr.bf16.mxu0 %v354
      %570 = vmatmul.mubr.bf16.gmra.mrb[0].mxu0 %v353
      %v571 = vpop.f32.mrb[0].mxu0
      %v572 = vadd.f32 %v247, %v571
      %v573 = vpop.f32.mrb[0].mxu0
      %v574 = vpop.f32.mrb[0].mxu0
      %v575 = vadd.f32 %v247, %v574
      %v576 = vpop.f32.mrb[0].mxu0
      %577 = vmatprep.mubr.bf16.mxu0 %v356
      %578 = vmatmul.mubr.bf16.gmra.mrb[0].mxu0 %v355
      %v579 = vpop.f32.mrb[0].mxu0
      %v580 = vadd.f32 %v247, %v579
      %v581 = vpop.f32.mrb[0].mxu0
      %v582 = vpop.f32.mrb[0].mxu0
      %v583 = vadd.f32 %v247, %v582
      %v584 = vpop.f32.mrb[0].mxu0
      %585 = vmatprep.mubr.bf16.mxu0 %v358
      %586 = vmatmul.mubr.bf16.gmra.mrb[0].mxu0 %v357
      %v587 = vpop.f32.mrb[0].mxu0
      %v588 = vadd.f32 %v247, %v587
      %v589 = vpop.f32.mrb[0].mxu0
      %v590 = vpop.f32.mrb[0].mxu0
      %v591 = vadd.f32 %v247, %v590
      %v592 = vpop.f32.mrb[0].mxu0
      %593 = vmatprep.mubr.bf16.mxu0 %v360
      %594 = vmatmul.mubr.bf16.gmra.mrb[0].mxu0 %v359
      %v595 = vpop.f32.mrb[0].mxu0
      %v596 = vadd.f32 %v247, %v595
      %v597 = vpop.f32.mrb[0].mxu0
      %v598 = vpop.f32.mrb[0].mxu0
      %v599 = vadd.f32 %v247, %v598
      %v600 = vpop.f32.mrb[0].mxu0
      %601 = vmatprep.mubr.bf16.mxu0 %v362
      %602 = vmatmul.mubr.bf16.gmra.mrb[0].mxu0 %v361
      %v603 = vpop.f32.mrb[0].mxu0
      %v604 = vadd.f32 %v247, %v603
      %v605 = vpop.f32.mrb[0].mxu0
      %v606 = vpop.f32.mrb[0].mxu0
      %v607 = vadd.f32 %v247, %v606
      %v608 = vpop.f32.mrb[0].mxu0
      %609 = vmatprep.mubr.bf16.mxu0 %v364
      %610 = vmatmul.mubr.bf16.gmra.mrb[0].mxu0 %v363
      %v611 = vpop.f32.mrb[0].mxu0
      %v612 = vadd.f32 %v247, %v611
      %v613 = vpop.f32.mrb[0].mxu0
      %v614 = vpop.f32.mrb[0].mxu0
      %v615 = vadd.f32 %v247, %v614
      %v616 = vpop.f32.mrb[0].mxu0
      %617 = vmatprep.mubr.bf16.mxu0 %v366
      %618 = vmatmul.mubr.bf16.gmra.mrb[0].mxu0 %v365
      %v619 = vpop.f32.mrb[0].mxu0
      %v620 = vadd.f32 %v247, %v619
      %v621 = vpop.f32.mrb[0].mxu0
      %v622 = vpop.f32.mrb[0].mxu0
      %v623 = vadd.f32 %v247, %v622
      %v624 = vpop.f32.mrb[0].mxu0
      %625 = vmatprep.mubr.bf16.mxu0 %v368
      %626 = vmatmul.mubr.bf16.gmra.mrb[0].mxu0 %v367
      %v627 = vpop.f32.mrb[0].mxu0
      %v628 = vadd.f32 %v247, %v627
      %v629 = vpop.f32.mrb[0].mxu0
      %v630 = vpop.f32.mrb[0].mxu0
      %v631 = vadd.f32 %v247, %v630
      %v632 = vpop.f32.mrb[0].mxu0
      %633 = vmatprep.mubr.bf16.mxu0 %v370
      %634 = vmatmul.mubr.bf16.gmra.mrb[0].mxu0 %v369
      %v635 = vpop.f32.mrb[0].mxu0
      %v636 = vadd.f32 %v247, %v635
      %v637 = vpop.f32.mrb[0].mxu0
      %v638 = vpop.f32.mrb[0].mxu0
      %v639 = vadd.f32 %v247, %v638
      %v640 = vpop.f32.mrb[0].mxu0
      %641 = vmatprep.mubr.bf16.mxu0 %v372
      %642 = vmatmul.mubr.bf16.gmra.mrb[0].mxu0 %v371
      %v643 = vpop.f32.mrb[0].mxu0
      %v644 = vadd.f32 %v247, %v643
      %v645 = vpop.f32.mrb[0].mxu0
      %v646 = vpop.f32.mrb[0].mxu0
      %v647 = vadd.f32 %v247, %v646
      %v648 = vpop.f32.mrb[0].mxu0
      %649 = vmatprep.mubr.bf16.mxu0 %v374
      %650 = vmatmul.mubr.bf16.gmra.mrb[0].mxu0 %v373
      %v651 = vpop.f32.mrb[0].mxu0
      %v652 = vadd.f32 %v247, %v651
      %v653 = vpop.f32.mrb[0].mxu0
      %v654 = vpop.f32.mrb[0].mxu0
      %v655 = vadd.f32 %v247, %v654
      %v656 = vpop.f32.mrb[0].mxu0
      %657 = vmatprep.mubr.bf16.mxu0 %v376
      %658 = vmatmul.mubr.bf16.gmra.mrb[0].mxu0 %v375
      %v659 = vpop.f32.mrb[0].mxu0
      %v660 = vadd.f32 %v247, %v659
      %v661 = vpop.f32.mrb[0].mxu0
      %v662 = vpop.f32.mrb[0].mxu0
      %v663 = vadd.f32 %v247, %v662
      %v664 = vpop.f32.mrb[0].mxu0
      %665 = vdwg.mxu0
      %v666 = vmax.f32 %v540, 0.0
      %v667 = vmax.f32 %v543, 0.0
      %v668 = vmax.f32 %v548, 0.0
      %v669 = vmax.f32 %v551, 0.0
      %v670 = vmax.f32 %v556, 0.0
      %v671 = vmax.f32 %v559, 0.0
      %v672 = vmax.f32 %v564, 0.0
      %v673 = vmax.f32 %v567, 0.0
      %v674 = vmax.f32 %v572, 0.0
      %v675 = vmax.f32 %v575, 0.0
      %v676 = vmax.f32 %v580, 0.0
      %v677 = vmax.f32 %v583, 0.0
      %v678 = vmax.f32 %v588, 0.0
      %v679 = vmax.f32 %v591, 0.0
      %v680 = vmax.f32 %v596, 0.0
      %v681 = vmax.f32 %v599, 0.0
      %v682 = vmax.f32 %v604, 0.0
      %v683 = vmax.f32 %v607, 0.0
      %v684 = vmax.f32 %v612, 0.0
      %v685 = vmax.f32 %v615, 0.0
      %v686 = vmax.f32 %v620, 0.0
      %v687 = vmax.f32 %v623, 0.0
      %v688 = vmax.f32 %v628, 0.0
      %v689 = vmax.f32 %v631, 0.0
      %v690 = vmax.f32 %v636, 0.0
      %v691 = vmax.f32 %v639, 0.0
      %v692 = vmax.f32 %v644, 0.0
      %v693 = vmax.f32 %v647, 0.0
      %v694 = vmax.f32 %v652, 0.0
      %v695 = vmax.f32 %v655, 0.0
      %v696 = vmax.f32 %v660, 0.0
      %v697 = vmax.f32 %v663, 0.0
      %v698 = vpack.c.bf16 %v667, %v666
      %v699 = vpack.c.bf16 %v669, %v668
      %v700 = vpack.c.bf16 %v671, %v670
      %v701 = vpack.c.bf16 %v673, %v672
      %v702 = vpack.c.bf16 %v675, %v674
      %v703 = vpack.c.bf16 %v677, %v676
      %v704 = vpack.c.bf16 %v679, %v678
      %v705 = vpack.c.bf16 %v681, %v680
      %v706 = vpack.c.bf16 %v683, %v682
      %v707 = vpack.c.bf16 %v685, %v684
      %v708 = vpack.c.bf16 %v687, %v686
      %v709 = vpack.c.bf16 %v689, %v688
      %v710 = vpack.c.bf16 %v691, %v690
      %v711 = vpack.c.bf16 %v693, %v692
      %v712 = vpack.c.bf16 %v695, %v694
      %v713 = vpack.c.bf16 %v697, %v696
      %v730 = vunpack.c.l.b16 %v698
      %v731 = vunpack.c.h.b16 %v698
      %v732 = vunpack.c.l.b16 %v699
      %v733 = vunpack.c.h.b16 %v699
      %v734 = vunpack.c.l.b16 %v700
      %v735 = vunpack.c.h.b16 %v700
      %v736 = vunpack.c.l.b16 %v701
      %v737 = vunpack.c.h.b16 %v701
      %v738 = vunpack.c.l.b16 %v702
      %v739 = vunpack.c.h.b16 %v702
      %v740 = vunpack.c.l.b16 %v703
      %v741 = vunpack.c.h.b16 %v703
      %v742 = vunpack.c.l.b16 %v704
      %v743 = vunpack.c.h.b16 %v704
      %v744 = vunpack.c.l.b16 %v705
      %v745 = vunpack.c.h.b16 %v705
      %v746 = vunpack.c.l.b16 %v706
      %v747 = vunpack.c.h.b16 %v706
      %v748 = vunpack.c.l.b16 %v707
      %v749 = vunpack.c.h.b16 %v707
      %v750 = vunpack.c.l.b16 %v708
      %v751 = vunpack.c.h.b16 %v708
      %v752 = vunpack.c.l.b16 %v709
      %v753 = vunpack.c.h.b16 %v709
      %v754 = vunpack.c.l.b16 %v710
      %v755 = vunpack.c.h.b16 %v710
      %v756 = vunpack.c.l.b16 %v711
      %v757 = vunpack.c.h.b16 %v711
      %v758 = vunpack.c.l.b16 %v712
      %v759 = vunpack.c.h.b16 %v712
      %v760 = vunpack.c.l.b16 %v713
      %v761 = vunpack.c.h.b16 %v713
      %v762 = vpack.c.b16 %v730, %v730
      %v763 = vpack.c.b16 %v731, %v731
      %v764 = vpack.c.b16 %v732, %v732
      %v765 = vpack.c.b16 %v733, %v733
      %v766 = vpack.c.b16 %v734, %v734
      %v767 = vpack.c.b16 %v735, %v735
      %v768 = vpack.c.b16 %v736, %v736
      %v769 = vpack.c.b16 %v737, %v737
      %v770 = vpack.c.b16 %v738, %v738
      %v771 = vpack.c.b16 %v739, %v739
      %v772 = vpack.c.b16 %v740, %v740
      %v773 = vpack.c.b16 %v741, %v741
      %v774 = vpack.c.b16 %v742, %v742
      %v775 = vpack.c.b16 %v743, %v743
      %v776 = vpack.c.b16 %v744, %v744
      %v777 = vpack.c.b16 %v745, %v745
      %v778 = vpack.c.b16 %v746, %v746
      %v779 = vpack.c.b16 %v747, %v747
      %v780 = vpack.c.b16 %v748, %v748
      %v781 = vpack.c.b16 %v749, %v749
      %v782 = vpack.c.b16 %v750, %v750
      %v783 = vpack.c.b16 %v751, %v751
      %v784 = vpack.c.b16 %v752, %v752
      %v785 = vpack.c.b16 %v753, %v753
      %v786 = vpack.c.b16 %v754, %v754
      %v787 = vpack.c.b16 %v755, %v755
      %v788 = vpack.c.b16 %v756, %v756
      %v789 = vpack.c.b16 %v757, %v757
      %v790 = vpack.c.b16 %v758, %v758
      %v791 = vpack.c.b16 %v759, %v759
      %v792 = vpack.c.b16 %v760, %v760
      %v793 = vpack.c.b16 %v761, %v761
      %826 = vst [vmem:[%s175] sm:$0xf] %v762
      %827 = vst [vmem:[%s175 + $0x4] sm:$0xf] %v763
      %828 = vst [vmem:[%s175 + $0x8] sm:$0xf] %v764
      %829 = vst [vmem:[%s175 + $0xc] sm:$0xf] %v765
      %830 = vst [vmem:[%s175 + $0x10] sm:$0xf] %v766
      %831 = vst [vmem:[%s175 + $0x14] sm:$0xf] %v767
      %832 = vst [vmem:[%s175 + $0x18] sm:$0xf] %v768
      %833 = vst [vmem:[%s175 + $0x1c] sm:$0xf] %v769
      %834 = vst [vmem:[%s175 + $0x20] sm:$0xf] %v770
      %835 = vst [vmem:[%s175 + $0x24] sm:$0xf] %v771
      %836 = vst [vmem:[%s175 + $0x28] sm:$0xf] %v772
      %837 = vst [vmem:[%s175 + $0x2c] sm:$0xf] %v773
      %838 = vst [vmem:[%s175 + $0x30] sm:$0xf] %v774
      %839 = vst [vmem:[%s175 + $0x34] sm:$0xf] %v775
      %840 = vst [vmem:[%s175 + $0x38] sm:$0xf] %v776
      %841 = vst [vmem:[%s175 + $0x3c] sm:$0xf] %v777
      %842 = vst [vmem:[%s175 + $0x40] sm:$0xf] %v778
      %843 = vst [vmem:[%s175 + $0x44] sm:$0xf] %v779
      %844 = vst [vmem:[%s175 + $0x48] sm:$0xf] %v780
      %845 = vst [vmem:[%s175 + $0x4c] sm:$0xf] %v781
      %846 = vst [vmem:[%s175 + $0x50] sm:$0xf] %v782
      %847 = vst [vmem:[%s175 + $0x54] sm:$0xf] %v783
      %848 = vst [vmem:[%s175 + $0x58] sm:$0xf] %v784
      %849 = vst [vmem:[%s175 + $0x5c] sm:$0xf] %v785
      %850 = vst [vmem:[%s175 + $0x60] sm:$0xf] %v786
      %851 = vst [vmem:[%s175 + $0x64] sm:$0xf] %v787
      %852 = vst [vmem:[%s175 + $0x68] sm:$0xf] %v788
      %853 = vst [vmem:[%s175 + $0x6c] sm:$0xf] %v789
      %854 = vst [vmem:[%s175 + $0x70] sm:$0xf] %v790
      %855 = vst [vmem:[%s175 + $0x74] sm:$0xf] %v791
      %856 = vst [vmem:[%s175 + $0x78] sm:$0xf] %v792
      %857 = vst [vmem:[%s175 + $0x7c] sm:$0xf] %v793
      %s858 = smul.u32 32, %s14
      %p859 = scmp.lt.s32.totalorder %s858, 63
      %s860 = scalar_select %p859, %s858, 63
      %s861 = smul.addr %s860, 4
      %s862 = scalar_lea.vmem %s3, %s861
      // Predicated region
      $region33: #{dqn_lstm_forward.4} parent=31 // pred_check
        %p863 = pneg %p100
      $region34: #{dqn_lstm_forward.4} parent=31 // pred_check_branch
        %865 = sbr.rel (%p863) target = $region36
      $region35: #{dqn_lstm_forward.4} parent=31 // pred_region
        %s866 = smul.u32 32, %s14
      $region36: #{dqn_lstm_forward.4} parent=31 // pred_fallthru
        _
    $region32: #{dqn_lstm_forward.4} parent=5 // pred_fallthru
      _
    %p867 = scmp.le.s32.totalorder 2, %s9
    // Predicated region
    $region37: #{dqn_lstm_forward.4} parent=5 // pred_check
      %p868 = pneg %p867
    $region38: #{dqn_lstm_forward.4} parent=5 // pred_check_branch
      %870 = sbr.rel (%p868) target = $region40
    $region39: #{dqn_lstm_forward.4} parent=5 // pred_region
      %s871 = ssub.s32 %s9, 2
      // Predicated region
      $region41: #{dqn_lstm_forward.4} parent=39 // pred_check
        %p872 = pneg %p106
      $region42: #{dqn_lstm_forward.4} parent=39 // pred_check_branch
        %874 = sbr.rel (%p872) target = $region44
      $region43: #{dqn_lstm_forward.4} parent=39 // pred_region
        %s875 = smul.u32 32, %s15
        %p876 = scmp.lt.s32.totalorder %s875, 63
        %s877 = scalar_select %p876, %s875, 63
        %s878 = smul.addr %s877, 4
        %s879 = scalar_lea.vmem %s3, %s878
      $region44: #{dqn_lstm_forward.4} parent=39 // pred_fallthru
        _
    $region40: #{dqn_lstm_forward.4} parent=5 // pred_fallthru
      _
  $region6: #{dqn_lstm_forward.4} parent=0 // loop_footer
    %s13 = sadd.s32 1, %s9
  $region7: #{dqn_lstm_forward.4} parent=0 // loop_footer_branch
    %8 = sbr.rel target = $region3
  $region8: #{dqn_lstm_forward.4} parent=0 // loop_exit
    _

// kernel: dqn_lstm_forward.5
$region0: #{dqn_lstm_forward.5}
  #allocation0 [shape = 'u32[]', space=smem, size = 0x4, offset = 0x4, fixed_abs, tag = 'smem constant byte address 0x4 - core index']
  #allocation1 [shape = 'u32[144,128]{1,0:T(1,128)}', space=vmem, size = 0x12000, scoped, tag = 'internal scratch']
  %s0 = inlined_call_operand.vmem [shape: bf16[96,512], index: 0, kind: input, shape index: {}]
  %s1 = inlined_call_operand.vmem [shape: bf16[512,128], index: 1, kind: input, shape index: {}]
  %s2 = inlined_call_operand.vmem [shape: f32[1,128], index: 2, kind: input, shape index: {}]
  %s3 = inlined_call_operand.vmem [shape: bf16[96,128], index: 3, kind: output, shape index: {}]
  %s4 = sld [smem:[#allocation0]]
  $region45: #{dqn_lstm_forward.5} parent=0
    _
  %s6 = ssub.s32 1, %s4
  %s7 = scalar_select 0, %s6, %s4
  loop: start=0, step=1, limit=4
  $region2: #{dqn_lstm_forward.5} parent=0 // loop_pre_header
    _
  $region3: #{dqn_lstm_forward.5} parent=0 // loop_header
    %s9 = sphi 0, %s13
    %p10 = scmp.ge.s32.totalorder %s9, 4
    %s19 = sphi 0, %s21
    %s22 = sphi 0, %s19
    %s23 = sphi 0, %s22
    %s39 = sphi 0, %s23
    %s43 = sphi 0, %s43
    %s45 = sphi 0, %s43
    %s46 = sphi 0, %s45
    %s60 = sphi 0, %s46
    %s64 = sphi 0, %s64
    %s66 = sphi 0, %s64
    %s67 = sphi 0, %s66
    %s81 = sphi 0, %s67
    %s87 = sphi 0, %s89
    %s90 = sphi 0, %s87
    %s91 = sphi 0, %s90
    %s107 = sphi 0, %s91
  $region4: #{dqn_lstm_forward.5} parent=0 // loop_header_branch
    %12 = sbr.rel (%p10) target = $region8
  $region5: #{dqn_lstm_forward.5} parent=0 // loop_body
    %s14 = ssub.s32 %s9, 1
    %s15 = ssub.s32 %s9, 2
    %s16 = sadd.s32 %s9, 1
    %s17 = ssub.s32 %s9, %s16
    %p18 = scmp.eq.s32.totalorder %s17, 0
    %s20 = sadd.s32 %s19, 1
    %s21 = scalar_select %p18, %s19, %s20
    %p24 = pneg %p18
    %p25 = scmp.eq.s32.totalorder %s9, 1
    %p26 = por %p24, %p25
    %p27 = scmp.ne.s32.totalorder %s19, %s22
    %p28 = scmp.eq.s32.totalorder %s9, 0
    %p29 = por %p27, %p28
    %p30 = scmp.ne.s32.totalorder %s19, %s22
    %p31 = scmp.eq.s32.totalorder %s14, 1
    %p32 = por %p30, %p31
    %p33 = scmp.ne.s32.totalorder %s22, %s23
    %p34 = scmp.eq.s32.totalorder %s14, 0
    %p35 = por %p33, %p34
    %p36 = scmp.ne.s32.totalorder %s22, %s23
    %p37 = scmp.eq.s32.totalorder %s15, 1
    %p38 = por %p36, %p37
    %p40 = scmp.ne.s32.totalorder %s23, %s39
    %p41 = scmp.eq.s32.totalorder %s15, 0
    %p42 = por %p40, %p41
    %s44 = sadd.s32 %s43, 1
    %p47 = scmp.eq.s32.totalorder %s9, 1
    %p48 = scmp.ne.s32.totalorder %s43, %s45
    %p49 = scmp.eq.s32.totalorder %s9, 0
    %p50 = por %p48, %p49
    %p51 = scmp.ne.s32.totalorder %s43, %s45
    %p52 = scmp.eq.s32.totalorder %s14, 1
    %p53 = por %p51, %p52
    %p54 = scmp.ne.s32.totalorder %s45, %s46
    %p55 = scmp.eq.s32.totalorder %s14, 0
    %p56 = por %p54, %p55
    %p57 = scmp.ne.s32.totalorder %s45, %s46
    %p58 = scmp.eq.s32.totalorder %s15, 1
    %p59 = por %p57, %p58
    %p61 = scmp.ne.s32.totalorder %s46, %s60
    %p62 = scmp.eq.s32.totalorder %s15, 0
    %p63 = por %p61, %p62
    %s65 = sadd.s32 %s64, 1
    %p68 = scmp.eq.s32.totalorder %s9, 1
    %p69 = scmp.ne.s32.totalorder %s64, %s66
    %p70 = scmp.eq.s32.totalorder %s9, 0
    %p71 = por %p69, %p70
    %p72 = scmp.ne.s32.totalorder %s64, %s66
    %p73 = scmp.eq.s32.totalorder %s14, 1
    %p74 = por %p72, %p73
    %p75 = scmp.ne.s32.totalorder %s66, %s67
    %p76 = scmp.eq.s32.totalorder %s14, 0
    %p77 = por %p75, %p76
    %p78 = scmp.ne.s32.totalorder %s66, %s67
    %p79 = scmp.eq.s32.totalorder %s15, 1
    %p80 = por %p78, %p79
    %p82 = scmp.ne.s32.totalorder %s67, %s81
    %p83 = scmp.eq.s32.totalorder %s15, 0
    %p84 = por %p82, %p83
    %s85 = ssub.s32 %s9, %s16
    %p86 = scmp.eq.s32.totalorder %s85, 0
    %s88 = sadd.s32 %s87, 1
    %s89 = scalar_select %p86, %s87, %s88
    %p92 = pneg %p86
    %p93 = scmp.eq.s32.totalorder %s9, 1
    %p94 = por %p92, %p93
    %p95 = scmp.ne.s32.totalorder %s87, %s90
    %p96 = scmp.eq.s32.totalorder %s9, 0
    %p97 = por %p95, %p96
    %p98 = scmp.ne.s32.totalorder %s87, %s90
    %p99 = scmp.eq.s32.totalorder %s14, 1
    %p100 = por %p98, %p99
    %p101 = scmp.ne.s32.totalorder %s90, %s91
    %p102 = scmp.eq.s32.totalorder %s14, 0
    %p103 = por %p101, %p102
    %p104 = scmp.ne.s32.totalorder %s90, %s91
    %p105 = scmp.eq.s32.totalorder %s15, 1
    %p106 = por %p104, %p105
    %p108 = scmp.ne.s32.totalorder %s91, %s107
    %p109 = scmp.eq.s32.totalorder %s15, 0
    %p110 = por %p108, %p109
    %p111 = scmp.le.s32.totalorder 1, %s9
    %p112 = scmp.lt.s32.totalorder %s9, 3
    %p113 = pnand %p111, %p112
    %p114 = pneg %p113
    // Predicated region
    $region9: #{dqn_lstm_forward.5} parent=5 // pred_check
      _
    $region10: #{dqn_lstm_forward.5} parent=5 // pred_check_branch
      %116 = sbr.rel (%p113) target = $region12
    $region11: #{dqn_lstm_forward.5} parent=5 // pred_region
      %s117 = ssub.s32 %s9, 1
      // Predicated region
      $region13: #{dqn_lstm_forward.5} parent=11 // pred_check
        %p118 = pneg %p56
      $region14: #{dqn_lstm_forward.5} parent=11 // pred_check_branch
        %120 = sbr.rel (%p118) target = $region16
      $region15: #{dqn_lstm_forward.5} parent=11 // pred_region
        _
      $region16: #{dqn_lstm_forward.5} parent=11 // pred_fallthru
        _
      // Predicated region
      $region17: #{dqn_lstm_forward.5} parent=11 // pred_check
        %p121 = pneg %p77
      $region18: #{dqn_lstm_forward.5} parent=11 // pred_check_branch
        %123 = sbr.rel (%p121) target = $region20
      $region19: #{dqn_lstm_forward.5} parent=11 // pred_region
        _
      $region20: #{dqn_lstm_forward.5} parent=11 // pred_fallthru
        _
    $region12: #{dqn_lstm_forward.5} parent=5 // pred_fallthru
      _
    %p124 = scmp.lt.s32.totalorder %s9, 2
    // Predicated region
    $region21: #{dqn_lstm_forward.5} parent=5 // pred_check
      %p125 = pneg %p124
    $region22: #{dqn_lstm_forward.5} parent=5 // pred_check_branch
      %127 = sbr.rel (%p125) target = $region24
    $region23: #{dqn_lstm_forward.5} parent=5 // pred_region
      // Predicated region
      $region25: #{dqn_lstm_forward.5} parent=23 // pred_check
        %p128 = pneg %p29
      $region26: #{dqn_lstm_forward.5} parent=23 // pred_check_branch
        %130 = sbr.rel (%p128) target = $region28
      $region27: #{dqn_lstm_forward.5} parent=23 // pred_region
        %s131 = smul.u32 6, %s9
        %p132 = scmp.lt.s32.totalorder %s131, 11
        %s133 = scalar_select %p132, %s131, 11
        %s134 = smul.addr %s133, 4
        %s135 = smul.addr %s134, 4
        %s136 = scalar_lea.vmem %s0, %s135
        %s137 = smul.u32 6, %s9
      $region28: #{dqn_lstm_forward.5} parent=23 // pred_fallthru
        _
    $region24: #{dqn_lstm_forward.5} parent=5 // pred_fallthru
      _
    %p138 = scmp.le.s32.totalorder 1, %s9
    %p139 = scmp.lt.s32.totalorder %s9, 3
    %p140 = pnand %p138, %p139
    %p141 = pneg %p140
    // Predicated region
    $region29: #{dqn_lstm_forward.5} parent=5 // pred_check
      _
    $region30: #{dqn_lstm_forward.5} parent=5 // pred_check_branch
      %143 = sbr.rel (%p140) target = $region32
    $region31: #{dqn_lstm_forward.5} parent=5 // pred_region
      %s144 = ssub.s32 %s9, 1
      %s145 = smul.u32 6, %s14
      %p146 = scmp.lt.s32.totalorder %s145, 11
      %s147 = scalar_select %p146, %s145, 11
      %s148 = smul.addr %s147, 4
      %s149 = smul.addr %s148, 4
      %s150 = scalar_lea.vmem %s0, %s149
      %p151 = pneg %p35
      %p152 = pneg %p32
      %p153 = pneg %p56
      %p154 = pneg %p53
      %p155 = pneg %p77
      %p156 = pneg %p74
      %p157 = pneg %p103
      %p158 = pneg %p100
      %s159 = smul.u32 6, %s14
      %p160 = scmp.lt.s32.totalorder %s159, 11
      %s161 = scalar_select %p160, %s159, 11
      %s162 = smul.addr %s161, 4
      %s163 = scalar_lea.vmem %s3, %s162
      %s164 = smul.u32 6, %s14
      %p165 = scmp.lt.s32.totalorder %s164, 11
      %s166 = scalar_select %p165, %s164, 11
      %s167 = smul.addr %s166, 4
      %s168 = smul.addr %s167, 4
      %s169 = scalar_lea.vmem %s0, %s168
      %s170 = smul.u32 6, %s14
      %s171 = smul.u32 6, %s14
      %p172 = scmp.lt.s32.totalorder %s171, 11
      %s173 = scalar_select %p172, %s171, 11
      %s174 = smul.addr %s173, 4
      %s175 = scalar_lea.vmem %s3, %s174
      %s176 = smul.u32 6, %s14
      %v178 = vld [vmem:[%s169] sm:$0xff]
      %v179 = vld [vmem:[%s169 + $0x8] sm:$0xff]
      %v180 = vld [vmem:[%s169 + $0x10] sm:$0xff]
      %v181 = vld [vmem:[%s169 + $0x18] sm:$0xff]
      %v182 = vld [vmem:[%s169 + $0x20] sm:$0xff]
      %v183 = vld [vmem:[%s169 + $0x28] sm:$0xff]
      %v184 = vld [vmem:[%s169 + $0x30] sm:$0xff]
      %v185 = vld [vmem:[%s169 + $0x38] sm:$0xff]
      %v186 = vld [vmem:[%s169 + $0x40] sm:$0xff]
      %v187 = vld [vmem:[%s169 + $0x48] sm:$0xff]
      %v188 = vld [vmem:[%s169 + $0x50] sm:$0xff]
      %v189 = vld [vmem:[%s169 + $0x58] sm:$0xff]
      %v190 = vld [vmem:[%s1] sm:$0xf]
      %v191 = vld [vmem:[%s1 + $0x4] sm:$0xf]
      %v192 = vld [vmem:[%s1 + $0x8] sm:$0xf]
      %v193 = vld [vmem:[%s1 + $0xc] sm:$0xf]
      %v194 = vld [vmem:[%s1 + $0x10] sm:$0xf]
      %v195 = vld [vmem:[%s1 + $0x14] sm:$0xf]
      %v196 = vld [vmem:[%s1 + $0x18] sm:$0xf]
      %v197 = vld [vmem:[%s1 + $0x1c] sm:$0xf]
      %v198 = vld [vmem:[%s1 + $0x20] sm:$0xf]
      %v199 = vld [vmem:[%s1 + $0x24] sm:$0xf]
      %v200 = vld [vmem:[%s1 + $0x28] sm:$0xf]
      %v201 = vld [vmem:[%s1 + $0x2c] sm:$0xf]
      %v202 = vld [vmem:[%s1 + $0x30] sm:$0xf]
      %v203 = vld [vmem:[%s1 + $0x34] sm:$0xf]
      %v204 = vld [vmem:[%s1 + $0x38] sm:$0xf]
      %v205 = vld [vmem:[%s1 + $0x3c] sm:$0xf]
      %v206 = vld [vmem:[%s1 + $0x40] sm:$0xf]
      %v207 = vld [vmem:[%s1 + $0x44] sm:$0xf]
      %v208 = vld [vmem:[%s1 + $0x48] sm:$0xf]
      %v209 = vld [vmem:[%s1 + $0x4c] sm:$0xf]
      %v210 = vld [vmem:[%s1 + $0x50] sm:$0xf]
      %v211 = vld [vmem:[%s1 + $0x54] sm:$0xf]
      %v212 = vld [vmem:[%s1 + $0x58] sm:$0xf]
      %v213 = vld [vmem:[%s1 + $0x5c] sm:$0xf]
      %v214 = vld [vmem:[%s1 + $0x60] sm:$0xf]
      %v215 = vld [vmem:[%s1 + $0x64] sm:$0xf]
      %v216 = vld [vmem:[%s1 + $0x68] sm:$0xf]
      %v217 = vld [vmem:[%s1 + $0x6c] sm:$0xf]
      %v218 = vld [vmem:[%s1 + $0x70] sm:$0xf]
      %v219 = vld [vmem:[%s1 + $0x74] sm:$0xf]
      %v220 = vld [vmem:[%s1 + $0x78] sm:$0xf]
      %v221 = vld [vmem:[%s1 + $0x7c] sm:$0xf]
      %v222 = vld [vmem:[%s1 + $0x80] sm:$0xf]
      %v223 = vld [vmem:[%s1 + $0x84] sm:$0xf]
      %v224 = vld [vmem:[%s1 + $0x88] sm:$0xf]
      %v225 = vld [vmem:[%s1 + $0x8c] sm:$0xf]
      %v226 = vld [vmem:[%s1 + $0x90] sm:$0xf]
      %v227 = vld [vmem:[%s1 + $0x94] sm:$0xf]
      %v228 = vld [vmem:[%s1 + $0x98] sm:$0xf]
      %v229 = vld [vmem:[%s1 + $0x9c] sm:$0xf]
      %v230 = vld [vmem:[%s1 + $0xa0] sm:$0xf]
      %v231 = vld [vmem:[%s1 + $0xa4] sm:$0xf]
      %v232 = vld [vmem:[%s1 + $0xa8] sm:$0xf]
      %v233 = vld [vmem:[%s1 + $0xac] sm:$0xf]
      %v234 = vld [vmem:[%s1 + $0xb0] sm:$0xf]
      %v235 = vld [vmem:[%s1 + $0xb4] sm:$0xf]
      %v236 = vld [vmem:[%s1 + $0xb8] sm:$0xf]
      %v237 = vld [vmem:[%s1 + $0xbc] sm:$0xf]
      %v238 = vld [vmem:[%s1 + $0xc0] sm:$0xf]
      %v239 = vld [vmem:[%s1 + $0xc4] sm:$0xf]
      %v240 = vld [vmem:[%s1 + $0xc8] sm:$0xf]
      %v241 = vld [vmem:[%s1 + $0xcc] sm:$0xf]
      %v242 = vld [vmem:[%s1 + $0xd0] sm:$0xf]
      %v243 = vld [vmem:[%s1 + $0xd4] sm:$0xf]
      %v244 = vld [vmem:[%s1 + $0xd8] sm:$0xf]
      %v245 = vld [vmem:[%s1 + $0xdc] sm:$0xf]
      %v246 = vld [vmem:[%s1 + $0xe0] sm:$0xf]
      %v247 = vld [vmem:[%s1 + $0xe4] sm:$0xf]
      %v248 = vld [vmem:[%s1 + $0xe8] sm:$0xf]
      %v249 = vld [vmem:[%s1 + $0xec] sm:$0xf]
      %v250 = vld [vmem:[%s1 + $0xf0] sm:$0xf]
      %v251 = vld [vmem:[%s1 + $0xf4] sm:$0xf]
      %v252 = vld [vmem:[%s1 + $0xf8] sm:$0xf]
      %v253 = vld [vmem:[%s1 + $0xfc] sm:$0xf]
      %v254 = vld [vmem:[%s2] sm:$0x1]
      %v256 = vlaneseq
      %v257 = vshrl.u32 %v256, 7
      %v258 = vsub.s32 0, %v257
      %v259 = vrot.slane %v254, %v258
      %v273 = vunpack.c.l.b16 %v178
      %v274 = vunpack.c.h.b16 %v178
      %v275 = vunpack.c.l.b16 %v179
      %v276 = vunpack.c.h.b16 %v179
      %v277 = vunpack.c.l.b16 %v180
      %v278 = vunpack.c.h.b16 %v180
      %v279 = vunpack.c.l.b16 %v181
      %v280 = vunpack.c.h.b16 %v181
      %v281 = vunpack.c.l.b16 %v182
      %v282 = vunpack.c.h.b16 %v182
      %v283 = vunpack.c.l.b16 %v183
      %v284 = vunpack.c.h.b16 %v183
      %v285 = vunpack.c.l.b16 %v184
      %v286 = vunpack.c.h.b16 %v184
      %v287 = vunpack.c.l.b16 %v185
      %v288 = vunpack.c.h.b16 %v185
      %v289 = vunpack.c.l.b16 %v186
      %v290 = vunpack.c.h.b16 %v186
      %v291 = vunpack.c.l.b16 %v187
      %v292 = vunpack.c.h.b16 %v187
      %v293 = vunpack.c.l.b16 %v188
      %v294 = vunpack.c.h.b16 %v188
      %v295 = vunpack.c.l.b16 %v189
      %v296 = vunpack.c.h.b16 %v189
      %v297 = vpack.c.b16 %v277, %v273
      %v298 = vpack.c.b16 %v278, %v274
      %v299 = vpack.c.b16 %v279, %v275
      %v300 = vpack.c.b16 %v280, %v276
      %v301 = vpack.c.b16 %v285, %v281
      %v302 = vpack.c.b16 %v286, %v282
      %v303 = vpack.c.b16 %v287, %v283
      %v304 = vpack.c.b16 %v288, %v284
      %v305 = vpack.c.b16 %v293, %v289
      %v306 = vpack.c.b16 %v294, %v290
      %v307 = vpack.c.b16 %v295, %v291
      %v308 = vpack.c.b16 %v296, %v292
      %v385 = vunpack.c.l.b16 %v190
      %v386 = vunpack.c.l.b16 %v191
      %v387 = vunpack.c.l.b16 %v192
      %v388 = vunpack.c.l.b16 %v193
      %v389 = vunpack.c.l.b16 %v194
      %v390 = vunpack.c.l.b16 %v195
      %v391 = vunpack.c.l.b16 %v196
      %v392 = vunpack.c.l.b16 %v197
      %v393 = vunpack.c.l.b16 %v198
      %v394 = vunpack.c.l.b16 %v199
      %v395 = vunpack.c.l.b16 %v200
      %v396 = vunpack.c.l.b16 %v201
      %v397 = vunpack.c.l.b16 %v202
      %v398 = vunpack.c.l.b16 %v203
      %v399 = vunpack.c.l.b16 %v204
      %v400 = vunpack.c.l.b16 %v205
      %v401 = vunpack.c.l.b16 %v206
      %v402 = vunpack.c.l.b16 %v207
      %v403 = vunpack.c.l.b16 %v208
      %v404 = vunpack.c.l.b16 %v209
      %v405 = vunpack.c.l.b16 %v210
      %v406 = vunpack.c.l.b16 %v211
      %v407 = vunpack.c.l.b16 %v212
      %v408 = vunpack.c.l.b16 %v213
      %v409 = vunpack.c.l.b16 %v214
      %v410 = vunpack.c.l.b16 %v215
      %v411 = vunpack.c.l.b16 %v216
      %v412 = vunpack.c.l.b16 %v217
      %v413 = vunpack.c.l.b16 %v218
      %v414 = vunpack.c.l.b16 %v219
      %v415 = vunpack.c.l.b16 %v220
      %v416 = vunpack.c.l.b16 %v221
      %v417 = vunpack.c.l.b16 %v222
      %v418 = vunpack.c.l.b16 %v223
      %v419 = vunpack.c.l.b16 %v224
      %v420 = vunpack.c.l.b16 %v225
      %v421 = vunpack.c.l.b16 %v226
      %v422 = vunpack.c.l.b16 %v227
      %v423 = vunpack.c.l.b16 %v228
      %v424 = vunpack.c.l.b16 %v229
      %v425 = vunpack.c.l.b16 %v230
      %v426 = vunpack.c.l.b16 %v231
      %v427 = vunpack.c.l.b16 %v232
      %v428 = vunpack.c.l.b16 %v233
      %v429 = vunpack.c.l.b16 %v234
      %v430 = vunpack.c.l.b16 %v235
      %v431 = vunpack.c.l.b16 %v236
      %v432 = vunpack.c.l.b16 %v237
      %v433 = vunpack.c.l.b16 %v238
      %v434 = vunpack.c.l.b16 %v239
      %v435 = vunpack.c.l.b16 %v240
      %v436 = vunpack.c.l.b16 %v241
      %v437 = vunpack.c.l.b16 %v242
      %v438 = vunpack.c.l.b16 %v243
      %v439 = vunpack.c.l.b16 %v244
      %v440 = vunpack.c.l.b16 %v245
      %v441 = vunpack.c.l.b16 %v246
      %v442 = vunpack.c.l.b16 %v247
      %v443 = vunpack.c.l.b16 %v248
      %v444 = vunpack.c.l.b16 %v249
      %v445 = vunpack.c.l.b16 %v250
      %v446 = vunpack.c.l.b16 %v251
      %v447 = vunpack.c.l.b16 %v252
      %v448 = vunpack.c.l.b16 %v253
      %v449 = vpack.c.b16 %v386, %v385
      %v450 = vpack.c.b16 %v388, %v387
      %v451 = vpack.c.b16 %v390, %v389
      %v452 = vpack.c.b16 %v392, %v391
      %v453 = vpack.c.b16 %v394, %v393
      %v454 = vpack.c.b16 %v396, %v395
      %v455 = vpack.c.b16 %v398, %v397
      %v456 = vpack.c.b16 %v400, %v399
      %v457 = vpack.c.b16 %v402, %v401
      %v458 = vpack.c.b16 %v404, %v403
      %v459 = vpack.c.b16 %v406, %v405
      %v460 = vpack.c.b16 %v408, %v407
      %v461 = vpack.c.b16 %v410, %v409
      %v462 = vpack.c.b16 %v412, %v411
      %v463 = vpack.c.b16 %v414, %v413
      %v464 = vpack.c.b16 %v416, %v415
      %v465 = vpack.c.b16 %v418, %v417
      %v466 = vpack.c.b16 %v420, %v419
      %v467 = vpack.c.b16 %v422, %v421
      %v468 = vpack.c.b16 %v424, %v423
      %v469 = vpack.c.b16 %v426, %v425
      %v470 = vpack.c.b16 %v428, %v427
      %v471 = vpack.c.b16 %v430, %v429
      %v472 = vpack.c.b16 %v432, %v431
      %v473 = vpack.c.b16 %v434, %v433
      %v474 = vpack.c.b16 %v436, %v435
      %v475 = vpack.c.b16 %v438, %v437
      %v476 = vpack.c.b16 %v440, %v439
      %v477 = vpack.c.b16 %v442, %v441
      %v478 = vpack.c.b16 %v444, %v443
      %v479 = vpack.c.b16 %v446, %v445
      %v480 = vpack.c.b16 %v448, %v447
      %513 = vmatprep.subr.bf16.mxu0 0
      %514 = vmatpush1.bf16.msra.mxu0 %v449
      %515 = vmatprep.subr.bf16.mxu0 0
      %516 = vmatpush1.bf16.msra.mxu0 %v450
      %517 = vmatprep.subr.bf16.mxu0 0
      %518 = vmatpush1.bf16.msra.mxu0 %v451
      %519 = vmatprep.subr.bf16.mxu0 0
      %520 = vmatpush1.bf16.msra.mxu0 %v452
      %521 = vmatprep.subr.bf16.mxu0 0
      %522 = vmatpush1.bf16.msra.mxu0 %v453
      %523 = vmatprep.subr.bf16.mxu0 0
      %524 = vmatpush1.bf16.msra.mxu0 %v454
      %525 = vmatprep.subr.bf16.mxu0 0
      %526 = vmatpush1.bf16.msra.mxu0 %v455
      %527 = vmatprep.subr.bf16.mxu0 0
      %528 = vmatpush1.bf16.msra.mxu0 %v456
      %529 = vmatprep.subr.bf16.mxu0 0
      %530 = vmatpush1.bf16.msra.mxu0 %v457
      %531 = vmatprep.subr.bf16.mxu0 0
      %532 = vmatpush1.bf16.msra.mxu0 %v458
      %533 = vmatprep.subr.bf16.mxu0 0
      %534 = vmatpush1.bf16.msra.mxu0 %v459
      %535 = vmatprep.subr.bf16.mxu0 0
      %536 = vmatpush1.bf16.msra.mxu0 %v460
      %537 = vmatprep.subr.bf16.mxu0 0
      %538 = vmatpush1.bf16.msra.mxu0 %v461
      %539 = vmatprep.subr.bf16.mxu0 0
      %540 = vmatpush1.bf16.msra.mxu0 %v462
      %541 = vmatprep.subr.bf16.mxu0 0
      %542 = vmatpush1.bf16.msra.mxu0 %v463
      %543 = vmatprep.subr.bf16.mxu0 0
      %544 = vmatpush1.bf16.msra.mxu0 %v464
      %545 = vmatprep.mubr.bf16.mxu0 %v298
      %546 = vmatmul.mubr.bf16.gmra.mrb[0].mxu0 %v297
      %v547 = vpop.f32.mrb[0].mxu0
      %v548 = vadd.f32 %v259, %v547
      %v549 = vpop.f32.mrb[0].mxu0
      %v550 = vpop.f32.mrb[0].mxu0
      %v551 = vadd.f32 %v259, %v550
      %v552 = vpop.f32.mrb[0].mxu0
      %553 = vmatprep.mubr.bf16.mxu0 %v302
      %554 = vmatmul.mubr.bf16.gmra.mrb[0].mxu0 %v301
      %v555 = vpop.f32.mrb[0].mxu0
      %v556 = vadd.f32 %v259, %v555
      %v557 = vpop.f32.mrb[0].mxu0
      %v558 = vpop.f32.mrb[0].mxu0
      %v559 = vadd.f32 %v259, %v558
      %v560 = vpop.f32.mrb[0].mxu0
      %561 = vmatprep.mubr.bf16.mxu0 %v306
      %562 = vmatmul.mubr.bf16.gmra.mrb[0].mxu0 %v305
      %v563 = vpop.f32.mrb[0].mxu0
      %v564 = vadd.f32 %v259, %v563
      %v565 = vpop.f32.mrb[0].mxu0
      %v566 = vpop.f32.mrb[0].mxu0
      %v567 = vadd.f32 %v259, %v566
      %v568 = vpop.f32.mrb[0].mxu0
      %569 = vdwg.mxu0
      %570 = vmatprep.subr.bf16.mxu0 0
      %571 = vmatpush1.bf16.msra.mxu0 %v465
      %572 = vmatprep.subr.bf16.mxu0 0
      %573 = vmatpush1.bf16.msra.mxu0 %v466
      %574 = vmatprep.subr.bf16.mxu0 0
      %575 = vmatpush1.bf16.msra.mxu0 %v467
      %576 = vmatprep.subr.bf16.mxu0 0
      %577 = vmatpush1.bf16.msra.mxu0 %v468
      %578 = vmatprep.subr.bf16.mxu0 0
      %579 = vmatpush1.bf16.msra.mxu0 %v469
      %580 = vmatprep.subr.bf16.mxu0 0
      %581 = vmatpush1.bf16.msra.mxu0 %v470
      %582 = vmatprep.subr.bf16.mxu0 0
      %583 = vmatpush1.bf16.msra.mxu0 %v471
      %584 = vmatprep.subr.bf16.mxu0 0
      %585 = vmatpush1.bf16.msra.mxu0 %v472
      %586 = vmatprep.subr.bf16.mxu0 0
      %587 = vmatpush1.bf16.msra.mxu0 %v473
      %588 = vmatprep.subr.bf16.mxu0 0
      %589 = vmatpush1.bf16.msra.mxu0 %v474
      %590 = vmatprep.subr.bf16.mxu0 0
      %591 = vmatpush1.bf16.msra.mxu0 %v475
      %592 = vmatprep.subr.bf16.mxu0 0
      %593 = vmatpush1.bf16.msra.mxu0 %v476
      %594 = vmatprep.subr.bf16.mxu0 0
      %595 = vmatpush1.bf16.msra.mxu0 %v477
      %596 = vmatprep.subr.bf16.mxu0 0
      %597 = vmatpush1.bf16.msra.mxu0 %v478
      %598 = vmatprep.subr.bf16.mxu0 0
      %599 = vmatpush1.bf16.msra.mxu0 %v479
      %600 = vmatprep.subr.bf16.mxu0 0
      %601 = vmatpush1.bf16.msra.mxu0 %v480
      %602 = vmatprep.mubr.bf16.mxu0 %v300
      %603 = vmatmul.mubr.bf16.gmra.mrb[0].mxu0 %v299
      %v604 = vpop.f32.mrb[0].mxu0
      %v605 = vadd.f32 %v548, %v604
      %v606 = vpop.f32.mrb[0].mxu0
      %v607 = vpop.f32.mrb[0].mxu0
      %v608 = vadd.f32 %v551, %v607
      %v609 = vpop.f32.mrb[0].mxu0
      %610 = vmatprep.mubr.bf16.mxu0 %v304
      %611 = vmatmul.mubr.bf16.gmra.mrb[0].mxu0 %v303
      %v612 = vpop.f32.mrb[0].mxu0
      %v613 = vadd.f32 %v556, %v612
      %v614 = vpop.f32.mrb[0].mxu0
      %v615 = vpop.f32.mrb[0].mxu0
      %v616 = vadd.f32 %v559, %v615
      %v617 = vpop.f32.mrb[0].mxu0
      %618 = vmatprep.mubr.bf16.mxu0 %v308
      %619 = vmatmul.mubr.bf16.gmra.mrb[0].mxu0 %v307
      %v620 = vpop.f32.mrb[0].mxu0
      %v621 = vadd.f32 %v564, %v620
      %v622 = vpop.f32.mrb[0].mxu0
      %v623 = vpop.f32.mrb[0].mxu0
      %v624 = vadd.f32 %v567, %v623
      %v625 = vpop.f32.mrb[0].mxu0
      %626 = vdwg.mxu0
      %v627 = vmax.f32 %v605, 0.0
      %v628 = vmax.f32 %v608, 0.0
      %v629 = vmax.f32 %v613, 0.0
      %v630 = vmax.f32 %v616, 0.0
      %v631 = vmax.f32 %v621, 0.0
      %v632 = vmax.f32 %v624, 0.0
      %v633 = vpack.c.bf16 %v628, %v627
      %v634 = vpack.c.bf16 %v630, %v629
      %v635 = vpack.c.bf16 %v632, %v631
      %v639 = vunpack.c.l.b16 %v633
      %v640 = vunpack.c.h.b16 %v633
      %v641 = vunpack.c.l.b16 %v634
      %v642 = vunpack.c.h.b16 %v634
      %v643 = vunpack.c.l.b16 %v635
      %v644 = vunpack.c.h.b16 %v635
      %v645 = vpack.c.b16 %v639, %v639
      %v646 = vpack.c.b16 %v640, %v640
      %v647 = vpack.c.b16 %v641, %v641
      %v648 = vpack.c.b16 %v642, %v642
      %v649 = vpack.c.b16 %v643, %v643
      %v650 = vpack.c.b16 %v644, %v644
      %657 = vst [vmem:[%s175] sm:$0xf] %v645
      %658 = vst [vmem:[%s175 + $0x4] sm:$0xf] %v646
      %659 = vst [vmem:[%s175 + $0x8] sm:$0xf] %v647
      %660 = vst [vmem:[%s175 + $0xc] sm:$0xf] %v648
      %661 = vst [vmem:[%s175 + $0x10] sm:$0xf] %v649
      %662 = vst [vmem:[%s175 + $0x14] sm:$0xf] %v650
      %s663 = smul.u32 6, %s14
      %p664 = scmp.lt.s32.totalorder %s663, 11
      %s665 = scalar_select %p664, %s663, 11
      %s666 = smul.addr %s665, 4
      %s667 = scalar_lea.vmem %s3, %s666
      // Predicated region
      $region33: #{dqn_lstm_forward.5} parent=31 // pred_check
        %p668 = pneg %p100
      $region34: #{dqn_lstm_forward.5} parent=31 // pred_check_branch
        %670 = sbr.rel (%p668) target = $region36
      $region35: #{dqn_lstm_forward.5} parent=31 // pred_region
        %s671 = smul.u32 6, %s14
      $region36: #{dqn_lstm_forward.5} parent=31 // pred_fallthru
        _
    $region32: #{dqn_lstm_forward.5} parent=5 // pred_fallthru
      _
    %p672 = scmp.le.s32.totalorder 2, %s9
    // Predicated region
    $region37: #{dqn_lstm_forward.5} parent=5 // pred_check
      %p673 = pneg %p672
    $region38: #{dqn_lstm_forward.5} parent=5 // pred_check_branch
      %675 = sbr.rel (%p673) target = $region40
    $region39: #{dqn_lstm_forward.5} parent=5 // pred_region
      %s676 = ssub.s32 %s9, 2
      // Predicated region
      $region41: #{dqn_lstm_forward.5} parent=39 // pred_check
        %p677 = pneg %p106
      $region42: #{dqn_lstm_forward.5} parent=39 // pred_check_branch
        %679 = sbr.rel (%p677) target = $region44
      $region43: #{dqn_lstm_forward.5} parent=39 // pred_region
        %s680 = smul.u32 6, %s15
        %p681 = scmp.lt.s32.totalorder %s680, 11
        %s682 = scalar_select %p681, %s680, 11
        %s683 = smul.addr %s682, 4
        %s684 = scalar_lea.vmem %s3, %s683
      $region44: #{dqn_lstm_forward.5} parent=39 // pred_fallthru
        _
    $region40: #{dqn_lstm_forward.5} parent=5 // pred_fallthru
      _
  $region6: #{dqn_lstm_forward.5} parent=0 // loop_footer
    %s13 = sadd.s32 1, %s9
  $region7: #{dqn_lstm_forward.5} parent=0 // loop_footer_branch
    %8 = sbr.rel target = $region3
  $region8: #{dqn_lstm_forward.5} parent=0 // loop_exit
    _

// kernel: dqn_lstm_forward.6
$region0: #{dqn_lstm_forward.6}
  #allocation0 [shape = 'u32[]', space=smem, size = 0x4, offset = 0x4, fixed_abs, tag = 'smem constant byte address 0x4 - core index']
  #allocation1 [shape = 'u32[144,128]{1,0:T(1,128)}', space=vmem, size = 0x12000, scoped, tag = 'internal scratch']
  %s0 = inlined_call_operand.vmem [shape: bf16[16,576], index: 0, kind: input, shape index: {}]
  %s1 = inlined_call_operand.vmem [shape: bf16[576,128], index: 1, kind: input, shape index: {}]
  %s2 = inlined_call_operand.vmem [shape: f32[1,128], index: 2, kind: input, shape index: {}]
  %s3 = inlined_call_operand.vmem [shape: bf16[16,128], index: 3, kind: output, shape index: {}]
  %s4 = sld [smem:[#allocation0]]
  $region22: #{dqn_lstm_forward.6} parent=0
    _
  %s6 = ssub.s32 1, %s4
  %s7 = scalar_select 0, %s6, %s4
  // Predicated region
  $region2: #{dqn_lstm_forward.6} parent=0 // pred_check
    _
  $region3: #{dqn_lstm_forward.6} parent=0 // pred_check_branch
    %9 = sbr.rel (0) target = $region5
  $region4: #{dqn_lstm_forward.6} parent=0 // pred_region
    _
  $region5: #{dqn_lstm_forward.6} parent=0 // pred_fallthru
    _
  // Predicated region
  $region6: #{dqn_lstm_forward.6} parent=0 // pred_check
    _
  $region7: #{dqn_lstm_forward.6} parent=0 // pred_check_branch
    %11 = sbr.rel (0) target = $region9
  $region8: #{dqn_lstm_forward.6} parent=0 // pred_region
    _
  $region9: #{dqn_lstm_forward.6} parent=0 // pred_fallthru
    _
  // Predicated region
  $region10: #{dqn_lstm_forward.6} parent=0 // pred_check
    _
  $region11: #{dqn_lstm_forward.6} parent=0 // pred_check_branch
    %13 = sbr.rel (0) target = $region13
  $region12: #{dqn_lstm_forward.6} parent=0 // pred_region
    _
  $region13: #{dqn_lstm_forward.6} parent=0 // pred_fallthru
    _
  %v15 = vld [vmem:[%s0] sm:$0xff]
  %v16 = vld [vmem:[%s0 + $0x8] sm:$0xff]
  %v17 = vld [vmem:[%s0 + $0x10] sm:$0xf]
  %v18 = vld [vmem:[%s0 + $0x14] sm:$0xff]
  %v19 = vld [vmem:[%s0 + $0x1c] sm:$0xff]
  %v20 = vld [vmem:[%s0 + $0x24] sm:$0xf]
  %v21 = vld [vmem:[%s1] sm:$0xf]
  %v22 = vld [vmem:[%s1 + $0x4] sm:$0xf]
  %v23 = vld [vmem:[%s1 + $0x8] sm:$0xf]
  %v24 = vld [vmem:[%s1 + $0xc] sm:$0xf]
  %v25 = vld [vmem:[%s1 + $0x10] sm:$0xf]
  %v26 = vld [vmem:[%s1 + $0x14] sm:$0xf]
  %v27 = vld [vmem:[%s1 + $0x18] sm:$0xf]
  %v28 = vld [vmem:[%s1 + $0x1c] sm:$0xf]
  %v29 = vld [vmem:[%s1 + $0x20] sm:$0xf]
  %v30 = vld [vmem:[%s1 + $0x24] sm:$0xf]
  %v31 = vld [vmem:[%s1 + $0x28] sm:$0xf]
  %v32 = vld [vmem:[%s1 + $0x2c] sm:$0xf]
  %v33 = vld [vmem:[%s1 + $0x30] sm:$0xf]
  %v34 = vld [vmem:[%s1 + $0x34] sm:$0xf]
  %v35 = vld [vmem:[%s1 + $0x38] sm:$0xf]
  %v36 = vld [vmem:[%s1 + $0x3c] sm:$0xf]
  %v37 = vld [vmem:[%s1 + $0x40] sm:$0xf]
  %v38 = vld [vmem:[%s1 + $0x44] sm:$0xf]
  %v39 = vld [vmem:[%s1 + $0x48] sm:$0xf]
  %v40 = vld [vmem:[%s1 + $0x4c] sm:$0xf]
  %v41 = vld [vmem:[%s1 + $0x50] sm:$0xf]
  %v42 = vld [vmem:[%s1 + $0x54] sm:$0xf]
  %v43 = vld [vmem:[%s1 + $0x58] sm:$0xf]
  %v44 = vld [vmem:[%s1 + $0x5c] sm:$0xf]
  %v45 = vld [vmem:[%s1 + $0x60] sm:$0xf]
  %v46 = vld [vmem:[%s1 + $0x64] sm:$0xf]
  %v47 = vld [vmem:[%s1 + $0x68] sm:$0xf]
  %v48 = vld [vmem:[%s1 + $0x6c] sm:$0xf]
  %v49 = vld [vmem:[%s1 + $0x70] sm:$0xf]
  %v50 = vld [vmem:[%s1 + $0x74] sm:$0xf]
  %v51 = vld [vmem:[%s1 + $0x78] sm:$0xf]
  %v52 = vld [vmem:[%s1 + $0x7c] sm:$0xf]
  %v53 = vld [vmem:[%s1 + $0x80] sm:$0xf]
  %v54 = vld [vmem:[%s1 + $0x84] sm:$0xf]
  %v55 = vld [vmem:[%s1 + $0x88] sm:$0xf]
  %v56 = vld [vmem:[%s1 + $0x8c] sm:$0xf]
  %v57 = vld [vmem:[%s1 + $0x90] sm:$0xf]
  %v58 = vld [vmem:[%s1 + $0x94] sm:$0xf]
  %v59 = vld [vmem:[%s1 + $0x98] sm:$0xf]
  %v60 = vld [vmem:[%s1 + $0x9c] sm:$0xf]
  %v61 = vld [vmem:[%s1 + $0xa0] sm:$0xf]
  %v62 = vld [vmem:[%s1 + $0xa4] sm:$0xf]
  %v63 = vld [vmem:[%s1 + $0xa8] sm:$0xf]
  %v64 = vld [vmem:[%s1 + $0xac] sm:$0xf]
  %v65 = vld [vmem:[%s1 + $0xb0] sm:$0xf]
  %v66 = vld [vmem:[%s1 + $0xb4] sm:$0xf]
  %v67 = vld [vmem:[%s1 + $0xb8] sm:$0xf]
  %v68 = vld [vmem:[%s1 + $0xbc] sm:$0xf]
  %v69 = vld [vmem:[%s1 + $0xc0] sm:$0xf]
  %v70 = vld [vmem:[%s1 + $0xc4] sm:$0xf]
  %v71 = vld [vmem:[%s1 + $0xc8] sm:$0xf]
  %v72 = vld [vmem:[%s1 + $0xcc] sm:$0xf]
  %v73 = vld [vmem:[%s1 + $0xd0] sm:$0xf]
  %v74 = vld [vmem:[%s1 + $0xd4] sm:$0xf]
  %v75 = vld [vmem:[%s1 + $0xd8] sm:$0xf]
  %v76 = vld [vmem:[%s1 + $0xdc] sm:$0xf]
  %v77 = vld [vmem:[%s1 + $0xe0] sm:$0xf]
  %v78 = vld [vmem:[%s1 + $0xe4] sm:$0xf]
  %v79 = vld [vmem:[%s1 + $0xe8] sm:$0xf]
  %v80 = vld [vmem:[%s1 + $0xec] sm:$0xf]
  %v81 = vld [vmem:[%s1 + $0xf0] sm:$0xf]
  %v82 = vld [vmem:[%s1 + $0xf4] sm:$0xf]
  %v83 = vld [vmem:[%s1 + $0xf8] sm:$0xf]
  %v84 = vld [vmem:[%s1 + $0xfc] sm:$0xf]
  %v85 = vld [vmem:[%s1 + $0x100] sm:$0xf]
  %v86 = vld [vmem:[%s1 + $0x104] sm:$0xf]
  %v87 = vld [vmem:[%s1 + $0x108] sm:$0xf]
  %v88 = vld [vmem:[%s1 + $0x10c] sm:$0xf]
  %v89 = vld [vmem:[%s1 + $0x110] sm:$0xf]
  %v90 = vld [vmem:[%s1 + $0x114] sm:$0xf]
  %v91 = vld [vmem:[%s1 + $0x118] sm:$0xf]
  %v92 = vld [vmem:[%s1 + $0x11c] sm:$0xf]
  %v93 = vld [vmem:[%s2] sm:$0x1]
  %v95 = vlaneseq
  %v96 = vshrl.u32 %v95, 7
  %v97 = vsub.s32 0, %v96
  %v98 = vrot.slane %v93, %v97
  %v106 = vunpack.c.l.b16 %v15
  %v107 = vunpack.c.h.b16 %v15
  %v108 = vunpack.c.l.b16 %v16
  %v109 = vunpack.c.h.b16 %v16
  %v110 = vunpack.c.l.b16 %v17
  %v111 = vunpack.c.l.b16 %v18
  %v112 = vunpack.c.h.b16 %v18
  %v113 = vunpack.c.l.b16 %v19
  %v114 = vunpack.c.h.b16 %v19
  %v115 = vunpack.c.l.b16 %v20
  %v116 = vpack.c.b16 %v111, %v106
  %v117 = vpack.c.b16 %v112, %v107
  %v118 = vpack.c.b16 %v113, %v108
  %v119 = vpack.c.b16 %v114, %v109
  %v120 = vpack.c.b16 %v115, %v110
  %v197 = vunpack.c.l.b16 %v21
  %v198 = vunpack.c.l.b16 %v22
  %v199 = vunpack.c.l.b16 %v23
  %v200 = vunpack.c.l.b16 %v24
  %v201 = vunpack.c.l.b16 %v25
  %v202 = vunpack.c.l.b16 %v26
  %v203 = vunpack.c.l.b16 %v27
  %v204 = vunpack.c.l.b16 %v28
  %v205 = vunpack.c.l.b16 %v29
  %v206 = vunpack.c.l.b16 %v30
  %v207 = vunpack.c.l.b16 %v31
  %v208 = vunpack.c.l.b16 %v32
  %v209 = vunpack.c.l.b16 %v33
  %v210 = vunpack.c.l.b16 %v34
  %v211 = vunpack.c.l.b16 %v35
  %v212 = vunpack.c.l.b16 %v36
  %v213 = vunpack.c.l.b16 %v37
  %v214 = vunpack.c.l.b16 %v38
  %v215 = vunpack.c.l.b16 %v39
  %v216 = vunpack.c.l.b16 %v40
  %v217 = vunpack.c.l.b16 %v41
  %v218 = vunpack.c.l.b16 %v42
  %v219 = vunpack.c.l.b16 %v43
  %v220 = vunpack.c.l.b16 %v44
  %v221 = vunpack.c.l.b16 %v45
  %v222 = vunpack.c.l.b16 %v46
  %v223 = vunpack.c.l.b16 %v47
  %v224 = vunpack.c.l.b16 %v48
  %v225 = vunpack.c.l.b16 %v49
  %v226 = vunpack.c.l.b16 %v50
  %v227 = vunpack.c.l.b16 %v51
  %v228 = vunpack.c.l.b16 %v52
  %v229 = vunpack.c.l.b16 %v53
  %v230 = vunpack.c.l.b16 %v54
  %v231 = vunpack.c.l.b16 %v55
  %v232 = vunpack.c.l.b16 %v56
  %v233 = vunpack.c.l.b16 %v57
  %v234 = vunpack.c.l.b16 %v58
  %v235 = vunpack.c.l.b16 %v59
  %v236 = vunpack.c.l.b16 %v60
  %v237 = vunpack.c.l.b16 %v61
  %v238 = vunpack.c.l.b16 %v62
  %v239 = vunpack.c.l.b16 %v63
  %v240 = vunpack.c.l.b16 %v64
  %v241 = vunpack.c.l.b16 %v65
  %v242 = vunpack.c.l.b16 %v66
  %v243 = vunpack.c.l.b16 %v67
  %v244 = vunpack.c.l.b16 %v68
  %v245 = vunpack.c.l.b16 %v69
  %v246 = vunpack.c.l.b16 %v70
  %v247 = vunpack.c.l.b16 %v71
  %v248 = vunpack.c.l.b16 %v72
  %v249 = vunpack.c.l.b16 %v73
  %v250 = vunpack.c.l.b16 %v74
  %v251 = vunpack.c.l.b16 %v75
  %v252 = vunpack.c.l.b16 %v76
  %v253 = vunpack.c.l.b16 %v77
  %v254 = vunpack.c.l.b16 %v78
  %v255 = vunpack.c.l.b16 %v79
  %v256 = vunpack.c.l.b16 %v80
  %v257 = vunpack.c.l.b16 %v81
  %v258 = vunpack.c.l.b16 %v82
  %v259 = vunpack.c.l.b16 %v83
  %v260 = vunpack.c.l.b16 %v84
  %v261 = vunpack.c.l.b16 %v85
  %v262 = vunpack.c.l.b16 %v86
  %v263 = vunpack.c.l.b16 %v87
  %v264 = vunpack.c.l.b16 %v88
  %v265 = vunpack.c.l.b16 %v89
  %v266 = vunpack.c.l.b16 %v90
  %v267 = vunpack.c.l.b16 %v91
  %v268 = vunpack.c.l.b16 %v92
  %v269 = vpack.c.b16 %v198, %v197
  %v270 = vpack.c.b16 %v200, %v199
  %v271 = vpack.c.b16 %v202, %v201
  %v272 = vpack.c.b16 %v204, %v203
  %v273 = vpack.c.b16 %v206, %v205
  %v274 = vpack.c.b16 %v208, %v207
  %v275 = vpack.c.b16 %v210, %v209
  %v276 = vpack.c.b16 %v212, %v211
  %v277 = vpack.c.b16 %v214, %v213
  %v278 = vpack.c.b16 %v216, %v215
  %v279 = vpack.c.b16 %v218, %v217
  %v280 = vpack.c.b16 %v220, %v219
  %v281 = vpack.c.b16 %v222, %v221
  %v282 = vpack.c.b16 %v224, %v223
  %v283 = vpack.c.b16 %v226, %v225
  %v284 = vpack.c.b16 %v228, %v227
  %v285 = vpack.c.b16 %v230, %v229
  %v286 = vpack.c.b16 %v232, %v231
  %v287 = vpack.c.b16 %v234, %v233
  %v288 = vpack.c.b16 %v236, %v235
  %v289 = vpack.c.b16 %v238, %v237
  %v290 = vpack.c.b16 %v240, %v239
  %v291 = vpack.c.b16 %v242, %v241
  %v292 = vpack.c.b16 %v244, %v243
  %v293 = vpack.c.b16 %v246, %v245
  %v294 = vpack.c.b16 %v248, %v247
  %v295 = vpack.c.b16 %v250, %v249
  %v296 = vpack.c.b16 %v252, %v251
  %v297 = vpack.c.b16 %v254, %v253
  %v298 = vpack.c.b16 %v256, %v255
  %v299 = vpack.c.b16 %v258, %v257
  %v300 = vpack.c.b16 %v260, %v259
  %v301 = vpack.c.b16 %v262, %v261
  %v302 = vpack.c.b16 %v264, %v263
  %v303 = vpack.c.b16 %v266, %v265
  %v304 = vpack.c.b16 %v268, %v267
  %vm341 = vcmask 523264
  %v343 = vsel %vm341, %v120, 0
  %345 = vmatprep.subr.bf16.mxu0 0
  %346 = vmatpush1.bf16.msra.mxu0 %v269
  %347 = vmatprep.subr.bf16.mxu0 0
  %348 = vmatpush1.bf16.msra.mxu0 %v270
  %349 = vmatprep.subr.bf16.mxu0 0
  %350 = vmatpush1.bf16.msra.mxu0 %v271
  %351 = vmatprep.subr.bf16.mxu0 0
  %352 = vmatpush1.bf16.msra.mxu0 %v272
  %353 = vmatprep.subr.bf16.mxu0 0
  %354 = vmatpush1.bf16.msra.mxu0 %v273
  %355 = vmatprep.subr.bf16.mxu0 0
  %356 = vmatpush1.bf16.msra.mxu0 %v274
  %357 = vmatprep.subr.bf16.mxu0 0
  %358 = vmatpush1.bf16.msra.mxu0 %v275
  %359 = vmatprep.subr.bf16.mxu0 0
  %360 = vmatpush1.bf16.msra.mxu0 %v276
  %361 = vmatprep.subr.bf16.mxu0 0
  %362 = vmatpush1.bf16.msra.mxu0 %v277
  %363 = vmatprep.subr.bf16.mxu0 0
  %364 = vmatpush1.bf16.msra.mxu0 %v278
  %365 = vmatprep.subr.bf16.mxu0 0
  %366 = vmatpush1.bf16.msra.mxu0 %v279
  %367 = vmatprep.subr.bf16.mxu0 0
  %368 = vmatpush1.bf16.msra.mxu0 %v280
  %369 = vmatprep.subr.bf16.mxu0 0
  %370 = vmatpush1.bf16.msra.mxu0 %v281
  %371 = vmatprep.subr.bf16.mxu0 0
  %372 = vmatpush1.bf16.msra.mxu0 %v282
  %373 = vmatprep.subr.bf16.mxu0 0
  %374 = vmatpush1.bf16.msra.mxu0 %v283
  %375 = vmatprep.subr.bf16.mxu0 0
  %376 = vmatpush1.bf16.msra.mxu0 %v284
  %377 = vmatprep.mubr.bf16.mxu0 %v117
  %378 = vmatmul.mubr.bf16.gmra.mrb[0].mxu0 %v116
  %v379 = vpop.f32.mrb[0].mxu0
  %v380 = vadd.f32 %v98, %v379
  %v381 = vpop.f32.mrb[0].mxu0
  %v382 = vpop.f32.mrb[0].mxu0
  %v383 = vadd.f32 %v98, %v382
  %v384 = vpop.f32.mrb[0].mxu0
  %385 = vdwg.mxu0
  %386 = vmatprep.subr.bf16.mxu0 0
  %387 = vmatpush1.bf16.msra.mxu0 %v285
  %388 = vmatprep.subr.bf16.mxu0 0
  %389 = vmatpush1.bf16.msra.mxu0 %v286
  %390 = vmatprep.subr.bf16.mxu0 0
  %391 = vmatpush1.bf16.msra.mxu0 %v287
  %392 = vmatprep.subr.bf16.mxu0 0
  %393 = vmatpush1.bf16.msra.mxu0 %v288
  %394 = vmatprep.subr.bf16.mxu0 0
  %395 = vmatpush1.bf16.msra.mxu0 %v289
  %396 = vmatprep.subr.bf16.mxu0 0
  %397 = vmatpush1.bf16.msra.mxu0 %v290
  %398 = vmatprep.subr.bf16.mxu0 0
  %399 = vmatpush1.bf16.msra.mxu0 %v291
  %400 = vmatprep.subr.bf16.mxu0 0
  %401 = vmatpush1.bf16.msra.mxu0 %v292
  %402 = vmatprep.subr.bf16.mxu0 0
  %403 = vmatpush1.bf16.msra.mxu0 %v293
  %404 = vmatprep.subr.bf16.mxu0 0
  %405 = vmatpush1.bf16.msra.mxu0 %v294
  %406 = vmatprep.subr.bf16.mxu0 0
  %407 = vmatpush1.bf16.msra.mxu0 %v295
  %408 = vmatprep.subr.bf16.mxu0 0
  %409 = vmatpush1.bf16.msra.mxu0 %v296
  %410 = vmatprep.subr.bf16.mxu0 0
  %411 = vmatpush1.bf16.msra.mxu0 %v297
  %412 = vmatprep.subr.bf16.mxu0 0
  %413 = vmatpush1.bf16.msra.mxu0 %v298
  %414 = vmatprep.subr.bf16.mxu0 0
  %415 = vmatpush1.bf16.msra.mxu0 %v299
  %416 = vmatprep.subr.bf16.mxu0 0
  %417 = vmatpush1.bf16.msra.mxu0 %v300
  %418 = vmatprep.mubr.bf16.mxu0 %v119
  %419 = vmatmul.mubr.bf16.gmra.mrb[0].mxu0 %v118
  %v420 = vpop.f32.mrb[0].mxu0
  %v421 = vadd.f32 %v380, %v420
  %v422 = vpop.f32.mrb[0].mxu0
  %v423 = vpop.f32.mrb[0].mxu0
  %v424 = vadd.f32 %v383, %v423
  %v425 = vpop.f32.mrb[0].mxu0
  %426 = vdwg.mxu0
  %427 = vmatprep.subr.bf16.mxu0 0
  %428 = vmatpush1.bf16.msra.mxu0 %v301
  %429 = vmatprep.subr.bf16.mxu0 0
  %430 = vmatpush1.bf16.msra.mxu0 %v302
  %431 = vmatprep.subr.bf16.mxu0 0
  %432 = vmatpush1.bf16.msra.mxu0 %v303
  %433 = vmatprep.subr.bf16.mxu0 0
  %434 = vmatpush1.bf16.msra.mxu0 %v304
  %435 = vmatprep.subr.bf16.mxu0 0
  %436 = vmatpush1.bf16.msra.mxu0 0
  %437 = vmatprep.subr.bf16.mxu0 0
  %438 = vmatpush1.bf16.msra.mxu0 0
  %439 = vmatprep.subr.bf16.mxu0 0
  %440 = vmatpush1.bf16.msra.mxu0 0
  %441 = vmatprep.subr.bf16.mxu0 0
  %442 = vmatpush1.bf16.msra.mxu0 0
  %443 = vmatprep.subr.bf16.mxu0 0
  %444 = vmatpush1.bf16.msra.mxu0 0
  %445 = vmatprep.subr.bf16.mxu0 0
  %446 = vmatpush1.bf16.msra.mxu0 0
  %447 = vmatprep.subr.bf16.mxu0 0
  %448 = vmatpush1.bf16.msra.mxu0 0
  %449 = vmatprep.subr.bf16.mxu0 0
  %450 = vmatpush1.bf16.msra.mxu0 0
  %451 = vmatprep.subr.bf16.mxu0 0
  %452 = vmatpush1.bf16.msra.mxu0 0
  %453 = vmatprep.subr.bf16.mxu0 0
  %454 = vmatpush1.bf16.msra.mxu0 0
  %455 = vmatprep.subr.bf16.mxu0 0
  %456 = vmatpush1.bf16.msra.mxu0 0
  %457 = vmatprep.subr.bf16.mxu0 0
  %458 = vmatpush1.bf16.msra.mxu0 0
  %459 = vmatprep.mubr.bf16.mxu0 0
  %460 = vmatmul.mubr.bf16.gmra.mrb[0].mxu0 %v343
  %v461 = vpop.f32.mrb[0].mxu0
  %v462 = vadd.f32 %v421, %v461
  %v463 = vpop.f32.mrb[0].mxu0
  %v464 = vpop.f32.mrb[0].mxu0
  %v465 = vadd.f32 %v424, %v464
  %v466 = vpop.f32.mrb[0].mxu0
  %467 = vdwg.mxu0
  %v468 = vmax.f32 %v462, 0.0
  %v469 = vmax.f32 %v465, 0.0
  %v470 = vpack.c.bf16 %v469, %v468
  %v472 = vunpack.c.l.b16 %v470
  %v473 = vunpack.c.h.b16 %v470
  %v474 = vpack.c.b16 %v472, %v472
  %v475 = vpack.c.b16 %v473, %v473
  %478 = vst [vmem:[%s3] sm:$0xf] %v474
  %479 = vst [vmem:[%s3 + $0x4] sm:$0xf] %v475
  // Predicated region
  $region14: #{dqn_lstm_forward.6} parent=0 // pred_check
    _
  $region15: #{dqn_lstm_forward.6} parent=0 // pred_check_branch
    %481 = sbr.rel (0) target = $region17
  $region16: #{dqn_lstm_forward.6} parent=0 // pred_region
    _
  $region17: #{dqn_lstm_forward.6} parent=0 // pred_fallthru
    _
  // Predicated region
  $region18: #{dqn_lstm_forward.6} parent=0 // pred_check
    _
  $region19: #{dqn_lstm_forward.6} parent=0 // pred_check_branch
    %483 = sbr.rel (0) target = $region21
  $region20: #{dqn_lstm_forward.6} parent=0 // pred_region
    _
  $region21: #{dqn_lstm_forward.6} parent=0 // pred_fallthru
    _

// kernel: dqn_lstm_forward.7
$region0: #{dqn_lstm_forward.7}
  #allocation0 [shape = 'u32[]', space=smem, size = 0x4, offset = 0x4, fixed_abs, tag = 'smem constant byte address 0x4 - core index']
  #allocation1 [shape = 'u32[144,128]{1,0:T(1,128)}', space=vmem, size = 0x12000, scoped, tag = 'internal scratch']
  #allocation2 [shape = 'f32[4,8,512]{2,1,0:T(8,128)}', space=vmem, size = 0x10000, scoped, tag = 'scratch operand']
  #allocation3 [shape = 'f32[4,8,128]{2,1,0:T(8,128)}', space=vmem, size = 0x4000, scoped, tag = 'scratch operand']
  #allocation4 [shape = 'f32[8,128]{1,0:T(8,128)}', space=vmem, size = 0x1000, scoped, tag = 'scratch operand']
  #allocation5 [shape = 'f32[8,128]{1,0:T(8,128)}', space=vmem, size = 0x1000, scoped, tag = 'scratch operand']
  %s0 = inlined_call_operand.vmem [shape: bf16[4,8,64], index: 0, kind: input, shape index: {}]
  %s1 = inlined_call_operand.vmem [shape: bf16[64,512], index: 1, kind: input, shape index: {}]
  %s2 = inlined_call_operand.vmem [shape: bf16[128,512], index: 2, kind: input, shape index: {}]
  %s3 = inlined_call_operand.vmem [shape: f32[1,512], index: 3, kind: input, shape index: {}]
  %s4 = inlined_call_operand.vmem [shape: bf16[128,128], index: 4, kind: input, shape index: {}]
  %s5 = inlined_call_operand.vmem [shape: f32[1,128], index: 5, kind: input, shape index: {}]
  %s6 = inlined_call_operand.vmem [shape: f32[8,128], index: 6, kind: input, shape index: {}]
  %s7 = inlined_call_operand.vmem [shape: f32[8,128], index: 7, kind: input, shape index: {}]
  %s8 = inlined_call_operand.vmem [shape: f32[4,8,128], index: 8, kind: output, shape index: {0}]
  %s9 = inlined_call_operand.vmem [shape: f32[8,128], index: 9, kind: output, shape index: {1}]
  %s10 = inlined_call_operand.vmem [shape: f32[8,128], index: 10, kind: output, shape index: {2}]
  %11 = xla_tuple %s8, %s9, %s10
  %s12 = sld [smem:[#allocation0]]
  $region62: #{dqn_lstm_forward.7} parent=0
    _
  %s14 = ssub.s32 1, %s12
  %s15 = scalar_select 0, %s14, %s12
  // Predicated region
  $region2: #{dqn_lstm_forward.7} parent=0 // pred_check
    _
  $region3: #{dqn_lstm_forward.7} parent=0 // pred_check_branch
    %17 = sbr.rel (0) target = $region5
  $region4: #{dqn_lstm_forward.7} parent=0 // pred_region
    _
  $region5: #{dqn_lstm_forward.7} parent=0 // pred_fallthru
    _
  // Predicated region
  $region6: #{dqn_lstm_forward.7} parent=0 // pred_check
    _
  $region7: #{dqn_lstm_forward.7} parent=0 // pred_check_branch
    %19 = sbr.rel (0) target = $region9
  $region8: #{dqn_lstm_forward.7} parent=0 // pred_region
    _
  $region9: #{dqn_lstm_forward.7} parent=0 // pred_fallthru
    _
  // Predicated region
  $region10: #{dqn_lstm_forward.7} parent=0 // pred_check
    _
  $region11: #{dqn_lstm_forward.7} parent=0 // pred_check_branch
    %21 = sbr.rel (0) target = $region13
  $region12: #{dqn_lstm_forward.7} parent=0 // pred_region
    _
  $region13: #{dqn_lstm_forward.7} parent=0 // pred_fallthru
    _
  // Predicated region
  $region14: #{dqn_lstm_forward.7} parent=0 // pred_check
    _
  $region15: #{dqn_lstm_forward.7} parent=0 // pred_check_branch
    %23 = sbr.rel (0) target = $region17
  $region16: #{dqn_lstm_forward.7} parent=0 // pred_region
    _
  $region17: #{dqn_lstm_forward.7} parent=0 // pred_fallthru
    _
  // Predicated region
  $region18: #{dqn_lstm_forward.7} parent=0 // pred_check
    _
  $region19: #{dqn_lstm_forward.7} parent=0 // pred_check_branch
    %25 = sbr.rel (0) target = $region21
  $region20: #{dqn_lstm_forward.7} parent=0 // pred_region
    _
  $region21: #{dqn_lstm_forward.7} parent=0 // pred_fallthru
    _
  // Predicated region
  $region22: #{dqn_lstm_forward.7} parent=0 // pred_check
    _
  $region23: #{dqn_lstm_forward.7} parent=0 // pred_check_branch
    %27 = sbr.rel (0) target = $region25
  $region24: #{dqn_lstm_forward.7} parent=0 // pred_region
    _
  $region25: #{dqn_lstm_forward.7} parent=0 // pred_fallthru
    _
  // Predicated region
  $region26: #{dqn_lstm_forward.7} parent=0 // pred_check
    _
  $region27: #{dqn_lstm_forward.7} parent=0 // pred_check_branch
    %29 = sbr.rel (0) target = $region29
  $region28: #{dqn_lstm_forward.7} parent=0 // pred_region
    _
  $region29: #{dqn_lstm_forward.7} parent=0 // pred_fallthru
    _
  // Predicated region
  $region30: #{dqn_lstm_forward.7} parent=0 // pred_check
    _
  $region31: #{dqn_lstm_forward.7} parent=0 // pred_check_branch
    %31 = sbr.rel (0) target = $region33
  $region32: #{dqn_lstm_forward.7} parent=0 // pred_region
    _
  $region33: #{dqn_lstm_forward.7} parent=0 // pred_fallthru
    _
  %p33 = scmp.eq.s32.totalorder 0, 0
  // Predicated region
  $region34: #{dqn_lstm_forward.7} parent=0 // pred_check
    %p34 = pneg %p33
  $region35: #{dqn_lstm_forward.7} parent=0 // pred_check_branch
    %36 = sbr.rel (%p34) target = $region37
  $region36: #{dqn_lstm_forward.7} parent=0 // pred_region
    %v37 = vld [vmem:[%s6] sm:$0xff]
    %38 = vst [vmem:[#allocation4] sm:$0xff] %v37
    %v39 = vld [vmem:[%s7] sm:$0xff]
    %40 = vst [vmem:[#allocation5] sm:$0xff] %v39
  $region37: #{dqn_lstm_forward.7} parent=0 // pred_fallthru
    _
  %v41 = vld [vmem:[%s0] sm:$0xf]
  %v42 = vld [vmem:[%s0 + $0x4] sm:$0xf]
  %v43 = vld [vmem:[%s0 + $0x8] sm:$0xf]
  %v44 = vld [vmem:[%s0 + $0xc] sm:$0xf]
  %v45 = vld [vmem:[%s1] sm:$0xff]
  %v46 = vld [vmem:[%s1 + $0x8] sm:$0xff]
  %v47 = vld [vmem:[%s1 + $0x10] sm:$0xff]
  %v48 = vld [vmem:[%s1 + $0x18] sm:$0xff]
  %v49 = vld [vmem:[%s1 + $0x20] sm:$0xff]
  %v50 = vld [vmem:[%s1 + $0x28] sm:$0xff]
  %v51 = vld [vmem:[%s1 + $0x30] sm:$0xff]
  %v52 = vld [vmem:[%s1 + $0x38] sm:$0xff]
  %v53 = vld [vmem:[%s1 + $0x40] sm:$0xff]
  %v54 = vld [vmem:[%s1 + $0x48] sm:$0xff]
  %v55 = vld [vmem:[%s1 + $0x50] sm:$0xff]
  %v56 = vld [vmem:[%s1 + $0x58] sm:$0xff]
  %v57 = vld [vmem:[%s1 + $0x60] sm:$0xff]
  %v58 = vld [vmem:[%s1 + $0x68] sm:$0xff]
  %v59 = vld [vmem:[%s1 + $0x70] sm:$0xff]
  %v60 = vld [vmem:[%s1 + $0x78] sm:$0xff]
  %v61 = vld [vmem:[%s3] sm:$0xf]
  %v63 = vlaneseq
  %v64 = vshrl.u32 %v63, 7
  %v65 = vsub.s32 0, %v64
  %v66 = vrot.slane %v61, %v65
  %v67 = vlaneseq
  %v68 = vshrl.u32 %v67, 7
  %v69 = vsub.s32 1, %v68
  %v70 = vrot.slane %v61, %v69
  %v71 = vlaneseq
  %v72 = vshrl.u32 %v71, 7
  %v73 = vsub.s32 2, %v72
  %v74 = vrot.slane %v61, %v73
  %v75 = vlaneseq
  %v76 = vshrl.u32 %v75, 7
  %v77 = vsub.s32 3, %v76
  %v78 = vrot.slane %v61, %v77
  %v87 = vunpack.c.l.b16 %v41
  %v88 = vunpack.c.l.b16 %v42
  %v89 = vunpack.c.l.b16 %v43
  %v90 = vunpack.c.l.b16 %v44
  %v91 = vpack.c.b16 %v88, %v87
  %v92 = vpack.c.b16 %v90, %v89
  %v109 = vunpack.c.l.b16 %v45
  %v110 = vunpack.c.h.b16 %v45
  %v111 = vunpack.c.l.b16 %v46
  %v112 = vunpack.c.h.b16 %v46
  %v113 = vunpack.c.l.b16 %v47
  %v114 = vunpack.c.h.b16 %v47
  %v115 = vunpack.c.l.b16 %v48
  %v116 = vunpack.c.h.b16 %v48
  %v117 = vunpack.c.l.b16 %v49
  %v118 = vunpack.c.h.b16 %v49
  %v119 = vunpack.c.l.b16 %v50
  %v120 = vunpack.c.h.b16 %v50
  %v121 = vunpack.c.l.b16 %v51
  %v122 = vunpack.c.h.b16 %v51
  %v123 = vunpack.c.l.b16 %v52
  %v124 = vunpack.c.h.b16 %v52
  %v125 = vunpack.c.l.b16 %v53
  %v126 = vunpack.c.h.b16 %v53
  %v127 = vunpack.c.l.b16 %v54
  %v128 = vunpack.c.h.b16 %v54
  %v129 = vunpack.c.l.b16 %v55
  %v130 = vunpack.c.h.b16 %v55
  %v131 = vunpack.c.l.b16 %v56
  %v132 = vunpack.c.h.b16 %v56
  %v133 = vunpack.c.l.b16 %v57
  %v134 = vunpack.c.h.b16 %v57
  %v135 = vunpack.c.l.b16 %v58
  %v136 = vunpack.c.h.b16 %v58
  %v137 = vunpack.c.l.b16 %v59
  %v138 = vunpack.c.h.b16 %v59
  %v139 = vunpack.c.l.b16 %v60
  %v140 = vunpack.c.h.b16 %v60
  %v141 = vpack.c.b16 %v113, %v109
  %v142 = vpack.c.b16 %v114, %v110
  %v143 = vpack.c.b16 %v115, %v111
  %v144 = vpack.c.b16 %v116, %v112
  %v145 = vpack.c.b16 %v121, %v117
  %v146 = vpack.c.b16 %v122, %v118
  %v147 = vpack.c.b16 %v123, %v119
  %v148 = vpack.c.b16 %v124, %v120
  %v149 = vpack.c.b16 %v129, %v125
  %v150 = vpack.c.b16 %v130, %v126
  %v151 = vpack.c.b16 %v131, %v127
  %v152 = vpack.c.b16 %v132, %v128
  %v153 = vpack.c.b16 %v137, %v133
  %v154 = vpack.c.b16 %v138, %v134
  %v155 = vpack.c.b16 %v139, %v135
  %v156 = vpack.c.b16 %v140, %v136
  %vm173 = vcmask 523264
  %v175 = vsel %vm173, %v91, 0
  %v178 = vsel %vm173, %v92, 0
  %180 = vmatprep.subr.bf16.mxu0 %v142
  %181 = vmatpush1.bf16.msra.mxu0 %v141
  %182 = vmatprep.subr.bf16.mxu0 %v146
  %183 = vmatpush1.bf16.msra.mxu0 %v145
  %184 = vmatprep.subr.bf16.mxu0 %v150
  %185 = vmatpush1.bf16.msra.mxu0 %v149
  %186 = vmatprep.subr.bf16.mxu0 %v154
  %187 = vmatpush1.bf16.msra.mxu0 %v153
  %188 = vmatprep.subr.bf16.mxu0 0
  %189 = vmatpush1.bf16.msra.mxu0 0
  %190 = vmatprep.subr.bf16.mxu0 0
  %191 = vmatpush1.bf16.msra.mxu0 0
  %192 = vmatprep.subr.bf16.mxu0 0
  %193 = vmatpush1.bf16.msra.mxu0 0
  %194 = vmatprep.subr.bf16.mxu0 0
  %195 = vmatpush1.bf16.msra.mxu0 0
  %196 = vmatprep.subr.bf16.mxu0 0
  %197 = vmatpush1.bf16.msra.mxu0 0
  %198 = vmatprep.subr.bf16.mxu0 0
  %199 = vmatpush1.bf16.msra.mxu0 0
  %200 = vmatprep.subr.bf16.mxu0 0
  %201 = vmatpush1.bf16.msra.mxu0 0
  %202 = vmatprep.subr.bf16.mxu0 0
  %203 = vmatpush1.bf16.msra.mxu0 0
  %204 = vmatprep.subr.bf16.mxu0 0
  %205 = vmatpush1.bf16.msra.mxu0 0
  %206 = vmatprep.subr.bf16.mxu0 0
  %207 = vmatpush1.bf16.msra.mxu0 0
  %208 = vmatprep.subr.bf16.mxu0 0
  %209 = vmatpush1.bf16.msra.mxu0 0
  %210 = vmatprep.subr.bf16.mxu0 0
  %211 = vmatpush1.bf16.msra.mxu0 0
  %212 = vmatprep.mubr.bf16.mxu0 0
  %213 = vmatmul.mubr.bf16.gmra.mrb[0].mxu0 %v175
  %v214 = vpop.f32.mrb[0].mxu0
  %v215 = vadd.f32 %v66, %v214
  %v216 = vpop.f32.mrb[0].mxu0
  %v217 = vadd.f32 %v70, %v216
  %v218 = vpop.f32.mrb[0].mxu0
  %v219 = vadd.f32 %v66, %v218
  %v220 = vpop.f32.mrb[0].mxu0
  %v221 = vadd.f32 %v70, %v220
  %222 = vmatprep.mubr.bf16.mxu0 0
  %223 = vmatmul.mubr.bf16.gmra.mrb[0].mxu0 %v178
  %v224 = vpop.f32.mrb[0].mxu0
  %v225 = vadd.f32 %v66, %v224
  %v226 = vpop.f32.mrb[0].mxu0
  %v227 = vadd.f32 %v70, %v226
  %v228 = vpop.f32.mrb[0].mxu0
  %v229 = vadd.f32 %v66, %v228
  %v230 = vpop.f32.mrb[0].mxu0
  %v231 = vadd.f32 %v70, %v230
  %232 = vdwg.mxu0
  %233 = vmatprep.subr.bf16.mxu0 %v144
  %234 = vmatpush1.bf16.msra.mxu0 %v143
  %235 = vmatprep.subr.bf16.mxu0 %v148
  %236 = vmatpush1.bf16.msra.mxu0 %v147
  %237 = vmatprep.subr.bf16.mxu0 %v152
  %238 = vmatpush1.bf16.msra.mxu0 %v151
  %239 = vmatprep.subr.bf16.mxu0 %v156
  %240 = vmatpush1.bf16.msra.mxu0 %v155
  %241 = vmatprep.subr.bf16.mxu0 0
  %242 = vmatpush1.bf16.msra.mxu0 0
  %243 = vmatprep.subr.bf16.mxu0 0
  %244 = vmatpush1.bf16.msra.mxu0 0
  %245 = vmatprep.subr.bf16.mxu0 0
  %246 = vmatpush1.bf16.msra.mxu0 0
  %247 = vmatprep.subr.bf16.mxu0 0
  %248 = vmatpush1.bf16.msra.mxu0 0
  %249 = vmatprep.subr.bf16.mxu0 0
  %250 = vmatpush1.bf16.msra.mxu0 0
  %251 = vmatprep.subr.bf16.mxu0 0
  %252 = vmatpush1.bf16.msra.mxu0 0
  %253 = vmatprep.subr.bf16.mxu0 0
  %254 = vmatpush1.bf16.msra.mxu0 0
  %255 = vmatprep.subr.bf16.mxu0 0
  %256 = vmatpush1.bf16.msra.mxu0 0
  %257 = vmatprep.subr.bf16.mxu0 0
  %258 = vmatpush1.bf16.msra.mxu0 0
  %259 = vmatprep.subr.bf16.mxu0 0
  %260 = vmatpush1.bf16.msra.mxu0 0
  %261 = vmatprep.subr.bf16.mxu0 0
  %262 = vmatpush1.bf16.msra.mxu0 0
  %263 = vmatprep.subr.bf16.mxu0 0
  %264 = vmatpush1.bf16.msra.mxu0 0
  %265 = vmatprep.mubr.bf16.mxu0 0
  %266 = vmatmul.mubr.bf16.gmra.mrb[0].mxu0 %v175
  %v267 = vpop.f32.mrb[0].mxu0
  %v268 = vadd.f32 %v74, %v267
  %v269 = vpop.f32.mrb[0].mxu0
  %v270 = vadd.f32 %v78, %v269
  %v271 = vpop.f32.mrb[0].mxu0
  %v272 = vadd.f32 %v74, %v271
  %v273 = vpop.f32.mrb[0].mxu0
  %v274 = vadd.f32 %v78, %v273
  %275 = vmatprep.mubr.bf16.mxu0 0
  %276 = vmatmul.mubr.bf16.gmra.mrb[0].mxu0 %v178
  %v277 = vpop.f32.mrb[0].mxu0
  %v278 = vadd.f32 %v74, %v277
  %v279 = vpop.f32.mrb[0].mxu0
  %v280 = vadd.f32 %v78, %v279
  %v281 = vpop.f32.mrb[0].mxu0
  %v282 = vadd.f32 %v74, %v281
  %v283 = vpop.f32.mrb[0].mxu0
  %v284 = vadd.f32 %v78, %v283
  %285 = vdwg.mxu0
  %286 = vst [vmem:[#allocation2] sm:$0xff] %v215
  %287 = vst [vmem:[#allocation2 + $0x8] sm:$0xff] %v217
  %288 = vst [vmem:[#allocation2 + $0x10] sm:$0xff] %v268
  %289 = vst [vmem:[#allocation2 + $0x18] sm:$0xff] %v270
  %290 = vst [vmem:[#allocation2 + $0x20] sm:$0xff] %v219
  %291 = vst [vmem:[#allocation2 + $0x28] sm:$0xff] %v221
  %292 = vst [vmem:[#allocation2 + $0x30] sm:$0xff] %v272
  %293 = vst [vmem:[#allocation2 + $0x38] sm:$0xff] %v274
  %294 = vst [vmem:[#allocation2 + $0x40] sm:$0xff] %v225
  %295 = vst [vmem:[#allocation2 + $0x48] sm:$0xff] %v227
  %296 = vst [vmem:[#allocation2 + $0x50] sm:$0xff] %v278
  %297 = vst [vmem:[#allocation2 + $0x58] sm:$0xff] %v280
  %298 = vst [vmem:[#allocation2 + $0x60] sm:$0xff] %v229
  %299 = vst [vmem:[#allocation2 + $0x68] sm:$0xff] %v231
  %300 = vst [vmem:[#allocation2 + $0x70] sm:$0xff] %v282
  %301 = vst [vmem:[#allocation2 + $0x78] sm:$0xff] %v284
  %v302 = vld [vmem:[#allocation4] sm:$0xff]
  %v303 = vpack.c.bf16 %v302, %v302
  %v304 = vld [vmem:[#allocation5] sm:$0xff]
  %v305 = vld [vmem:[#allocation2] sm:$0xff]
  %v306 = vld [vmem:[#allocation2 + $0x8] sm:$0xff]
  %v307 = vld [vmem:[#allocation2 + $0x10] sm:$0xff]
  %v308 = vld [vmem:[#allocation2 + $0x18] sm:$0xff]
  %v309 = vld [vmem:[%s2] sm:$0xff]
  %v310 = vld [vmem:[%s2 + $0x8] sm:$0xff]
  %v311 = vld [vmem:[%s2 + $0x10] sm:$0xff]
  %v312 = vld [vmem:[%s2 + $0x18] sm:$0xff]
  %v313 = vld [vmem:[%s2 + $0x20] sm:$0xff]
  %v314 = vld [vmem:[%s2 + $0x28] sm:$0xff]
  %v315 = vld [vmem:[%s2 + $0x30] sm:$0xff]
  %v316 = vld [vmem:[%s2 + $0x38] sm:$0xff]
  %v317 = vld [vmem:[%s2 + $0x40] sm:$0xff]
  %v318 = vld [vmem:[%s2 + $0x48] sm:$0xff]
  %v319 = vld [vmem:[%s2 + $0x50] sm:$0xff]
  %v320 = vld [vmem:[%s2 + $0x58] sm:$0xff]
  %v321 = vld [vmem:[%s2 + $0x60] sm:$0xff]
  %v322 = vld [vmem:[%s2 + $0x68] sm:$0xff]
  %v323 = vld [vmem:[%s2 + $0x70] sm:$0xff]
  %v324 = vld [vmem:[%s2 + $0x78] sm:$0xff]
  %v325 = vld [vmem:[%s2 + $0x80] sm:$0xff]
  %v326 = vld [vmem:[%s2 + $0x88] sm:$0xff]
  %v327 = vld [vmem:[%s2 + $0x90] sm:$0xff]
  %v328 = vld [vmem:[%s2 + $0x98] sm:$0xff]
  %v329 = vld [vmem:[%s2 + $0xa0] sm:$0xff]
  %v330 = vld [vmem:[%s2 + $0xa8] sm:$0xff]
  %v331 = vld [vmem:[%s2 + $0xb0] sm:$0xff]
  %v332 = vld [vmem:[%s2 + $0xb8] sm:$0xff]
  %v333 = vld [vmem:[%s2 + $0xc0] sm:$0xff]
  %v334 = vld [vmem:[%s2 + $0xc8] sm:$0xff]
  %v335 = vld [vmem:[%s2 + $0xd0] sm:$0xff]
  %v336 = vld [vmem:[%s2 + $0xd8] sm:$0xff]
  %v337 = vld [vmem:[%s2 + $0xe0] sm:$0xff]
  %v338 = vld [vmem:[%s2 + $0xe8] sm:$0xff]
  %v339 = vld [vmem:[%s2 + $0xf0] sm:$0xff]
  %v340 = vld [vmem:[%s2 + $0xf8] sm:$0xff]
  %v373 = vunpack.c.l.b16 %v309
  %v374 = vunpack.c.h.b16 %v309
  %v375 = vunpack.c.l.b16 %v310
  %v376 = vunpack.c.h.b16 %v310
  %v377 = vunpack.c.l.b16 %v311
  %v378 = vunpack.c.h.b16 %v311
  %v379 = vunpack.c.l.b16 %v312
  %v380 = vunpack.c.h.b16 %v312
  %v381 = vunpack.c.l.b16 %v313
  %v382 = vunpack.c.h.b16 %v313
  %v383 = vunpack.c.l.b16 %v314
  %v384 = vunpack.c.h.b16 %v314
  %v385 = vunpack.c.l.b16 %v315
  %v386 = vunpack.c.h.b16 %v315
  %v387 = vunpack.c.l.b16 %v316
  %v388 = vunpack.c.h.b16 %v316
  %v389 = vunpack.c.l.b16 %v317
  %v390 = vunpack.c.h.b16 %v317
  %v391 = vunpack.c.l.b16 %v318
  %v392 = vunpack.c.h.b16 %v318
  %v393 = vunpack.c.l.b16 %v319
  %v394 = vunpack.c.h.b16 %v319
  %v395 = vunpack.c.l.b16 %v320
  %v396 = vunpack.c.h.b16 %v320
  %v397 = vunpack.c.l.b16 %v321
  %v398 = vunpack.c.h.b16 %v321
  %v399 = vunpack.c.l.b16 %v322
  %v400 = vunpack.c.h.b16 %v322
  %v401 = vunpack.c.l.b16 %v323
  %v402 = vunpack.c.h.b16 %v323
  %v403 = vunpack.c.l.b16 %v324
  %v404 = vunpack.c.h.b16 %v324
  %v405 = vunpack.c.l.b16 %v325
  %v406 = vunpack.c.h.b16 %v325
  %v407 = vunpack.c.l.b16 %v326
  %v408 = vunpack.c.h.b16 %v326
  %v409 = vunpack.c.l.b16 %v327
  %v410 = vunpack.c.h.b16 %v327
  %v411 = vunpack.c.l.b16 %v328
  %v412 = vunpack.c.h.b16 %v328
  %v413 = vunpack.c.l.b16 %v329
  %v414 = vunpack.c.h.b16 %v329
  %v415 = vunpack.c.l.b16 %v330
  %v416 = vunpack.c.h.b16 %v330
  %v417 = vunpack.c.l.b16 %v331
  %v418 = vunpack.c.h.b16 %v331
  %v419 = vunpack.c.l.b16 %v332
  %v420 = vunpack.c.h.b16 %v332
  %v421 = vunpack.c.l.b16 %v333
  %v422 = vunpack.c.h.b16 %v333
  %v423 = vunpack.c.l.b16 %v334
  %v424 = vunpack.c.h.b16 %v334
  %v425 = vunpack.c.l.b16 %v335
  %v426 = vunpack.c.h.b16 %v335
  %v427 = vunpack.c.l.b16 %v336
  %v428 = vunpack.c.h.b16 %v336
  %v429 = vunpack.c.l.b16 %v337
  %v430 = vunpack.c.h.b16 %v337
  %v431 = vunpack.c.l.b16 %v338
  %v432 = vunpack.c.h.b16 %v338
  %v433 = vunpack.c.l.b16 %v339
  %v434 = vunpack.c.h.b16 %v339
  %v435 = vunpack.c.l.b16 %v340
  %v436 = vunpack.c.h.b16 %v340
  %v437 = vpack.c.b16 %v377, %v373
  %v438 = vpack.c.b16 %v378, %v374
  %v439 = vpack.c.b16 %v379, %v375
  %v440 = vpack.c.b16 %v380, %v376
  %v441 = vpack.c.b16 %v385, %v381
  %v442 = vpack.c.b16 %v386, %v382
  %v443 = vpack.c.b16 %v387, %v383
  %v444 = vpack.c.b16 %v388, %v384
  %v445 = vpack.c.b16 %v393, %v389
  %v446 = vpack.c.b16 %v394, %v390
  %v447 = vpack.c.b16 %v395, %v391
  %v448 = vpack.c.b16 %v396, %v392
  %v449 = vpack.c.b16 %v401, %v397
  %v450 = vpack.c.b16 %v402, %v398
  %v451 = vpack.c.b16 %v403, %v399
  %v452 = vpack.c.b16 %v404, %v400
  %v453 = vpack.c.b16 %v409, %v405
  %v454 = vpack.c.b16 %v410, %v406
  %v455 = vpack.c.b16 %v411, %v407
  %v456 = vpack.c.b16 %v412, %v408
  %v457 = vpack.c.b16 %v417, %v413
  %v458 = vpack.c.b16 %v418, %v414
  %v459 = vpack.c.b16 %v419, %v415
  %v460 = vpack.c.b16 %v420, %v416
  %v461 = vpack.c.b16 %v425, %v421
  %v462 = vpack.c.b16 %v426, %v422
  %v463 = vpack.c.b16 %v427, %v423
  %v464 = vpack.c.b16 %v428, %v424
  %v465 = vpack.c.b16 %v433, %v429
  %v466 = vpack.c.b16 %v434, %v430
  %v467 = vpack.c.b16 %v435, %v431
  %v468 = vpack.c.b16 %v436, %v432
  %501 = vmatprep.subr.bf16.mxu0 %v438
  %502 = vmatpush1.bf16.msra.mxu0 %v437
  %503 = vmatprep.subr.bf16.mxu0 %v442
  %504 = vmatpush1.bf16.msra.mxu0 %v441
  %505 = vmatprep.subr.bf16.mxu0 %v446
  %506 = vmatpush1.bf16.msra.mxu0 %v445
  %507 = vmatprep.subr.bf16.mxu0 %v450
  %508 = vmatpush1.bf16.msra.mxu0 %v449
  %509 = vmatprep.subr.bf16.mxu0 %v454
  %510 = vmatpush1.bf16.msra.mxu0 %v453
  %511 = vmatprep.subr.bf16.mxu0 %v458
  %512 = vmatpush1.bf16.msra.mxu0 %v457
  %513 = vmatprep.subr.bf16.mxu0 %v462
  %514 = vmatpush1.bf16.msra.mxu0 %v461
  %515 = vmatprep.subr.bf16.mxu0 %v466
  %516 = vmatpush1.bf16.msra.mxu0 %v465
  %517 = vmatprep.subr.bf16.mxu0 0
  %518 = vmatpush1.bf16.msra.mxu0 0
  %519 = vmatprep.subr.bf16.mxu0 0
  %520 = vmatpush1.bf16.msra.mxu0 0
  %521 = vmatprep.subr.bf16.mxu0 0
  %522 = vmatpush1.bf16.msra.mxu0 0
  %523 = vmatprep.subr.bf16.mxu0 0
  %524 = vmatpush1.bf16.msra.mxu0 0
  %525 = vmatprep.subr.bf16.mxu0 0
  %526 = vmatpush1.bf16.msra.mxu0 0
  %527 = vmatprep.subr.bf16.mxu0 0
  %528 = vmatpush1.bf16.msra.mxu0 0
  %529 = vmatprep.subr.bf16.mxu0 0
  %530 = vmatpush1.bf16.msra.mxu0 0
  %531 = vmatprep.subr.bf16.mxu0 0
  %532 = vmatpush1.bf16.msra.mxu0 0
  %533 = vmatprep.mubr.bf16.mxu0 0
  %534 = vmatmul.mubr.bf16.gmra.mrb[0].mxu0 %v303
  %v535 = vpop.f32.mrb[0].mxu0
  %v536 = vadd.f32 0.0, %v535
  %v537 = vpop.f32.mrb[0].mxu0
  %v538 = vadd.f32 0.0, %v537
  %v539 = vpop.f32.mrb[0].mxu0
  %v540 = vpop.f32.mrb[0].mxu0
  %541 = vdwg.mxu0
  %542 = vmatprep.subr.bf16.mxu0 %v440
  %543 = vmatpush1.bf16.msra.mxu0 %v439
  %544 = vmatprep.subr.bf16.mxu0 %v444
  %545 = vmatpush1.bf16.msra.mxu0 %v443
  %546 = vmatprep.subr.bf16.mxu0 %v448
  %547 = vmatpush1.bf16.msra.mxu0 %v447
  %548 = vmatprep.subr.bf16.mxu0 %v452
  %549 = vmatpush1.bf16.msra.mxu0 %v451
  %550 = vmatprep.subr.bf16.mxu0 %v456
  %551 = vmatpush1.bf16.msra.mxu0 %v455
  %552 = vmatprep.subr.bf16.mxu0 %v460
  %553 = vmatpush1.bf16.msra.mxu0 %v459
  %554 = vmatprep.subr.bf16.mxu0 %v464
  %555 = vmatpush1.bf16.msra.mxu0 %v463
  %556 = vmatprep.subr.bf16.mxu0 %v468
  %557 = vmatpush1.bf16.msra.mxu0 %v467
  %558 = vmatprep.subr.bf16.mxu0 0
  %559 = vmatpush1.bf16.msra.mxu0 0
  %560 = vmatprep.subr.bf16.mxu0 0
  %561 = vmatpush1.bf16.msra.mxu0 0
  %562 = vmatprep.subr.bf16.mxu0 0
  %563 = vmatpush1.bf16.msra.mxu0 0
  %564 = vmatprep.subr.bf16.mxu0 0
  %565 = vmatpush1.bf16.msra.mxu0 0
  %566 = vmatprep.subr.bf16.mxu0 0
  %567 = vmatpush1.bf16.msra.mxu0 0
  %568 = vmatprep.subr.bf16.mxu0 0
  %569 = vmatpush1.bf16.msra.mxu0 0
  %570 = vmatprep.subr.bf16.mxu0 0
  %571 = vmatpush1.bf16.msra.mxu0 0
  %572 = vmatprep.subr.bf16.mxu0 0
  %573 = vmatpush1.bf16.msra.mxu0 0
  %574 = vmatprep.mubr.bf16.mxu0 0
  %575 = vmatmul.mubr.bf16.gmra.mrb[0].mxu0 %v303
  %v576 = vpop.f32.mrb[0].mxu0
  %v577 = vadd.f32 0.0, %v576
  %v578 = vpop.f32.mrb[0].mxu0
  %v579 = vadd.f32 0.0, %v578
  %v580 = vpop.f32.mrb[0].mxu0
  %v581 = vpop.f32.mrb[0].mxu0
  %582 = vdwg.mxu0
  %v583 = vadd.f32 %v305, %v536
  %v584 = vadd.f32 %v306, %v538
  %v585 = vadd.f32 %v307, %v577
  %v586 = vadd.f32 %v308, %v579
  %v587 = vxor.u32 %v583, 2147483648
  %v588 = vmul.f32 %v587, 1.442695
  %v589 = vpow.pop %v588
  %v590 = vadd.f32 %v589, 1.0
  %v591 = vrcp.pop %v590
  %v592 = vmul.f32 1.0, %v591
  %v593 = vxor.u32 %v584, 2147483648
  %v594 = vmul.f32 %v593, 1.442695
  %v595 = vpow.pop %v594
  %v596 = vadd.f32 %v595, 1.0
  %v597 = vrcp.pop %v596
  %v598 = vmul.f32 1.0, %v597
  %v599 = vtanh.pop %v585
  %v600 = vxor.u32 %v586, 2147483648
  %v601 = vmul.f32 %v600, 1.442695
  %v602 = vpow.pop %v601
  %v603 = vadd.f32 %v602, 1.0
  %v604 = vrcp.pop %v603
  %v605 = vmul.f32 1.0, %v604
  %v606 = vmul.f32 %v598, %v304
  %v607 = vmul.f32 %v592, %v599
  %v608 = vadd.f32 %v606, %v607
  %v609 = vtanh.pop %v608
  %v610 = vmul.f32 %v605, %v609
  %611 = vst [vmem:[#allocation3] sm:$0xff] %v610
  %v612 = vpack.c.bf16 %v610, %v610
  %s613 = scalar_lea.vmem [#allocation2], 32
  %v614 = vld [vmem:[%s613] sm:$0xff]
  %v615 = vld [vmem:[%s613 + $0x8] sm:$0xff]
  %v616 = vld [vmem:[%s613 + $0x10] sm:$0xff]
  %v617 = vld [vmem:[%s613 + $0x18] sm:$0xff]
  %v618 = vld [vmem:[%s2] sm:$0xff]
  %v619 = vld [vmem:[%s2 + $0x8] sm:$0xff]
  %v620 = vld [vmem:[%s2 + $0x10] sm:$0xff]
  %v621 = vld [vmem:[%s2 + $0x18] sm:$0xff]
  %v622 = vld [vmem:[%s2 + $0x20] sm:$0xff]
  %v623 = vld [vmem:[%s2 + $0x28] sm:$0xff]
  %v624 = vld [vmem:[%s2 + $0x30] sm:$0xff]
  %v625 = vld [vmem:[%s2 + $0x38] sm:$0xff]
  %v626 = vld [vmem:[%s2 + $0x40] sm:$0xff]
  %v627 = vld [vmem:[%s2 + $0x48] sm:$0xff]
  %v628 = vld [vmem:[%s2 + $0x50] sm:$0xff]
  %v629 = vld [vmem:[%s2 + $0x58] sm:$0xff]
  %v630 = vld [vmem:[%s2 + $0x60] sm:$0xff]
  %v631 = vld [vmem:[%s2 + $0x68] sm:$0xff]
  %v632 = vld [vmem:[%s2 + $0x70] sm:$0xff]
  %v633 = vld [vmem:[%s2 + $0x78] sm:$0xff]
  %v634 = vld [vmem:[%s2 + $0x80] sm:$0xff]
  %v635 = vld [vmem:[%s2 + $0x88] sm:$0xff]
  %v636 = vld [vmem:[%s2 + $0x90] sm:$0xff]
  %v637 = vld [vmem:[%s2 + $0x98] sm:$0xff]
  %v638 = vld [vmem:[%s2 + $0xa0] sm:$0xff]
  %v639 = vld [vmem:[%s2 + $0xa8] sm:$0xff]
  %v640 = vld [vmem:[%s2 + $0xb0] sm:$0xff]
  %v641 = vld [vmem:[%s2 + $0xb8] sm:$0xff]
  %v642 = vld [vmem:[%s2 + $0xc0] sm:$0xff]
  %v643 = vld [vmem:[%s2 + $0xc8] sm:$0xff]
  %v644 = vld [vmem:[%s2 + $0xd0] sm:$0xff]
  %v645 = vld [vmem:[%s2 + $0xd8] sm:$0xff]
  %v646 = vld [vmem:[%s2 + $0xe0] sm:$0xff]
  %v647 = vld [vmem:[%s2 + $0xe8] sm:$0xff]
  %v648 = vld [vmem:[%s2 + $0xf0] sm:$0xff]
  %v649 = vld [vmem:[%s2 + $0xf8] sm:$0xff]
  %v682 = vunpack.c.l.b16 %v618
  %v683 = vunpack.c.h.b16 %v618
  %v684 = vunpack.c.l.b16 %v619
  %v685 = vunpack.c.h.b16 %v619
  %v686 = vunpack.c.l.b16 %v620
  %v687 = vunpack.c.h.b16 %v620
  %v688 = vunpack.c.l.b16 %v621
  %v689 = vunpack.c.h.b16 %v621
  %v690 = vunpack.c.l.b16 %v622
  %v691 = vunpack.c.h.b16 %v622
  %v692 = vunpack.c.l.b16 %v623
  %v693 = vunpack.c.h.b16 %v623
  %v694 = vunpack.c.l.b16 %v624
  %v695 = vunpack.c.h.b16 %v624
  %v696 = vunpack.c.l.b16 %v625
  %v697 = vunpack.c.h.b16 %v625
  %v698 = vunpack.c.l.b16 %v626
  %v699 = vunpack.c.h.b16 %v626
  %v700 = vunpack.c.l.b16 %v627
  %v701 = vunpack.c.h.b16 %v627
  %v702 = vunpack.c.l.b16 %v628
  %v703 = vunpack.c.h.b16 %v628
  %v704 = vunpack.c.l.b16 %v629
  %v705 = vunpack.c.h.b16 %v629
  %v706 = vunpack.c.l.b16 %v630
  %v707 = vunpack.c.h.b16 %v630
  %v708 = vunpack.c.l.b16 %v631
  %v709 = vunpack.c.h.b16 %v631
  %v710 = vunpack.c.l.b16 %v632
  %v711 = vunpack.c.h.b16 %v632
  %v712 = vunpack.c.l.b16 %v633
  %v713 = vunpack.c.h.b16 %v633
  %v714 = vunpack.c.l.b16 %v634
  %v715 = vunpack.c.h.b16 %v634
  %v716 = vunpack.c.l.b16 %v635
  %v717 = vunpack.c.h.b16 %v635
  %v718 = vunpack.c.l.b16 %v636
  %v719 = vunpack.c.h.b16 %v636
  %v720 = vunpack.c.l.b16 %v637
  %v721 = vunpack.c.h.b16 %v637
  %v722 = vunpack.c.l.b16 %v638
  %v723 = vunpack.c.h.b16 %v638
  %v724 = vunpack.c.l.b16 %v639
  %v725 = vunpack.c.h.b16 %v639
  %v726 = vunpack.c.l.b16 %v640
  %v727 = vunpack.c.h.b16 %v640
  %v728 = vunpack.c.l.b16 %v641
  %v729 = vunpack.c.h.b16 %v641
  %v730 = vunpack.c.l.b16 %v642
  %v731 = vunpack.c.h.b16 %v642
  %v732 = vunpack.c.l.b16 %v643
  %v733 = vunpack.c.h.b16 %v643
  %v734 = vunpack.c.l.b16 %v644
  %v735 = vunpack.c.h.b16 %v644
  %v736 = vunpack.c.l.b16 %v645
  %v737 = vunpack.c.h.b16 %v645
  %v738 = vunpack.c.l.b16 %v646
  %v739 = vunpack.c.h.b16 %v646
  %v740 = vunpack.c.l.b16 %v647
  %v741 = vunpack.c.h.b16 %v647
  %v742 = vunpack.c.l.b16 %v648
  %v743 = vunpack.c.h.b16 %v648
  %v744 = vunpack.c.l.b16 %v649
  %v745 = vunpack.c.h.b16 %v649
  %v746 = vpack.c.b16 %v686, %v682
  %v747 = vpack.c.b16 %v687, %v683
  %v748 = vpack.c.b16 %v688, %v684
  %v749 = vpack.c.b16 %v689, %v685
  %v750 = vpack.c.b16 %v694, %v690
  %v751 = vpack.c.b16 %v695, %v691
  %v752 = vpack.c.b16 %v696, %v692
  %v753 = vpack.c.b16 %v697, %v693
  %v754 = vpack.c.b16 %v702, %v698
  %v755 = vpack.c.b16 %v703, %v699
  %v756 = vpack.c.b16 %v704, %v700
  %v757 = vpack.c.b16 %v705, %v701
  %v758 = vpack.c.b16 %v710, %v706
  %v759 = vpack.c.b16 %v711, %v707
  %v760 = vpack.c.b16 %v712, %v708
  %v761 = vpack.c.b16 %v713, %v709
  %v762 = vpack.c.b16 %v718, %v714
  %v763 = vpack.c.b16 %v719, %v715
  %v764 = vpack.c.b16 %v720, %v716
  %v765 = vpack.c.b16 %v721, %v717
  %v766 = vpack.c.b16 %v726, %v722
  %v767 = vpack.c.b16 %v727, %v723
  %v768 = vpack.c.b16 %v728, %v724
  %v769 = vpack.c.b16 %v729, %v725
  %v770 = vpack.c.b16 %v734, %v730
  %v771 = vpack.c.b16 %v735, %v731
  %v772 = vpack.c.b16 %v736, %v732
  %v773 = vpack.c.b16 %v737, %v733
  %v774 = vpack.c.b16 %v742, %v738
  %v775 = vpack.c.b16 %v743, %v739
  %v776 = vpack.c.b16 %v744, %v740
  %v777 = vpack.c.b16 %v745, %v741
  %810 = vmatprep.subr.bf16.mxu0 %v747
  %811 = vmatpush1.bf16.msra.mxu0 %v746
  %812 = vmatprep.subr.bf16.mxu0 %v751
  %813 = vmatpush1.bf16.msra.mxu0 %v750
  %814 = vmatprep.subr.bf16.mxu0 %v755
  %815 = vmatpush1.bf16.msra.mxu0 %v754
  %816 = vmatprep.subr.bf16.mxu0 %v759
  %817 = vmatpush1.bf16.msra.mxu0 %v758
  %818 = vmatprep.subr.bf16.mxu0 %v763
  %819 = vmatpush1.bf16.msra.mxu0 %v762
  %820 = vmatprep.subr.bf16.mxu0 %v767
  %821 = vmatpush1.bf16.msra.mxu0 %v766
  %822 = vmatprep.subr.bf16.mxu0 %v771
  %823 = vmatpush1.bf16.msra.mxu0 %v770
  %824 = vmatprep.subr.bf16.mxu0 %v775
  %825 = vmatpush1.bf16.msra.mxu0 %v774
  %826 = vmatprep.subr.bf16.mxu0 0
  %827 = vmatpush1.bf16.msra.mxu0 0
  %828 = vmatprep.subr.bf16.mxu0 0
  %829 = vmatpush1.bf16.msra.mxu0 0
  %830 = vmatprep.subr.bf16.mxu0 0
  %831 = vmatpush1.bf16.msra.mxu0 0
  %832 = vmatprep.subr.bf16.mxu0 0
  %833 = vmatpush1.bf16.msra.mxu0 0
  %834 = vmatprep.subr.bf16.mxu0 0
  %835 = vmatpush1.bf16.msra.mxu0 0
  %836 = vmatprep.subr.bf16.mxu0 0
  %837 = vmatpush1.bf16.msra.mxu0 0
  %838 = vmatprep.subr.bf16.mxu0 0
  %839 = vmatpush1.bf16.msra.mxu0 0
  %840 = vmatprep.subr.bf16.mxu0 0
  %841 = vmatpush1.bf16.msra.mxu0 0
  %842 = vmatprep.mubr.bf16.mxu0 0
  %843 = vmatmul.mubr.bf16.gmra.mrb[0].mxu0 %v612
  %v844 = vpop.f32.mrb[0].mxu0
  %v845 = vadd.f32 0.0, %v844
  %v846 = vpop.f32.mrb[0].mxu0
  %v847 = vadd.f32 0.0, %v846
  %v848 = vpop.f32.mrb[0].mxu0
  %v849 = vpop.f32.mrb[0].mxu0
  %850 = vdwg.mxu0
  %851 = vmatprep.subr.bf16.mxu0 %v749
  %852 = vmatpush1.bf16.msra.mxu0 %v748
  %853 = vmatprep.subr.bf16.mxu0 %v753
  %854 = vmatpush1.bf16.msra.mxu0 %v752
  %855 = vmatprep.subr.bf16.mxu0 %v757
  %856 = vmatpush1.bf16.msra.mxu0 %v756
  %857 = vmatprep.subr.bf16.mxu0 %v761
  %858 = vmatpush1.bf16.msra.mxu0 %v760
  %859 = vmatprep.subr.bf16.mxu0 %v765
  %860 = vmatpush1.bf16.msra.mxu0 %v764
  %861 = vmatprep.subr.bf16.mxu0 %v769
  %862 = vmatpush1.bf16.msra.mxu0 %v768
  %863 = vmatprep.subr.bf16.mxu0 %v773
  %864 = vmatpush1.bf16.msra.mxu0 %v772
  %865 = vmatprep.subr.bf16.mxu0 %v777
  %866 = vmatpush1.bf16.msra.mxu0 %v776
  %867 = vmatprep.subr.bf16.mxu0 0
  %868 = vmatpush1.bf16.msra.mxu0 0
  %869 = vmatprep.subr.bf16.mxu0 0
  %870 = vmatpush1.bf16.msra.mxu0 0
  %871 = vmatprep.subr.bf16.mxu0 0
  %872 = vmatpush1.bf16.msra.mxu0 0
  %873 = vmatprep.subr.bf16.mxu0 0
  %874 = vmatpush1.bf16.msra.mxu0 0
  %875 = vmatprep.subr.bf16.mxu0 0
  %876 = vmatpush1.bf16.msra.mxu0 0
  %877 = vmatprep.subr.bf16.mxu0 0
  %878 = vmatpush1.bf16.msra.mxu0 0
  %879 = vmatprep.subr.bf16.mxu0 0
  %880 = vmatpush1.bf16.msra.mxu0 0
  %881 = vmatprep.subr.bf16.mxu0 0
  %882 = vmatpush1.bf16.msra.mxu0 0
  %883 = vmatprep.mubr.bf16.mxu0 0
  %884 = vmatmul.mubr.bf16.gmra.mrb[0].mxu0 %v612
  %v885 = vpop.f32.mrb[0].mxu0
  %v886 = vadd.f32 0.0, %v885
  %v887 = vpop.f32.mrb[0].mxu0
  %v888 = vadd.f32 0.0, %v887
  %v889 = vpop.f32.mrb[0].mxu0
  %v890 = vpop.f32.mrb[0].mxu0
  %891 = vdwg.mxu0
  %v892 = vadd.f32 %v614, %v845
  %v893 = vadd.f32 %v615, %v847
  %v894 = vadd.f32 %v616, %v886
  %v895 = vadd.f32 %v617, %v888
  %v896 = vxor.u32 %v892, 2147483648
  %v897 = vmul.f32 %v896, 1.442695
  %v898 = vpow.pop %v897
  %v899 = vadd.f32 %v898, 1.0
  %v900 = vrcp.pop %v899
  %v901 = vmul.f32 1.0, %v900
  %v902 = vxor.u32 %v893, 2147483648
  %v903 = vmul.f32 %v902, 1.442695
  %v904 = vpow.pop %v903
  %v905 = vadd.f32 %v904, 1.0
  %v906 = vrcp.pop %v905
  %v907 = vmul.f32 1.0, %v906
  %v908 = vtanh.pop %v894
  %v909 = vxor.u32 %v895, 2147483648
  %v910 = vmul.f32 %v909, 1.442695
  %v911 = vpow.pop %v910
  %v912 = vadd.f32 %v911, 1.0
  %v913 = vrcp.pop %v912
  %v914 = vmul.f32 1.0, %v913
  %v915 = vmul.f32 %v907, %v608
  %v916 = vmul.f32 %v901, %v908
  %v917 = vadd.f32 %v915, %v916
  %v918 = vtanh.pop %v917
  %v919 = vmul.f32 %v914, %v918
  %s920 = scalar_lea.vmem [#allocation3], 8
  %921 = vst [vmem:[%s920] sm:$0xff] %v919
  %v922 = vpack.c.bf16 %v919, %v919
  %s923 = scalar_lea.vmem [#allocation2], 64
  %v924 = vld [vmem:[%s923] sm:$0xff]
  %v925 = vld [vmem:[%s923 + $0x8] sm:$0xff]
  %v926 = vld [vmem:[%s923 + $0x10] sm:$0xff]
  %v927 = vld [vmem:[%s923 + $0x18] sm:$0xff]
  %v928 = vld [vmem:[%s2] sm:$0xff]
  %v929 = vld [vmem:[%s2 + $0x8] sm:$0xff]
  %v930 = vld [vmem:[%s2 + $0x10] sm:$0xff]
  %v931 = vld [vmem:[%s2 + $0x18] sm:$0xff]
  %v932 = vld [vmem:[%s2 + $0x20] sm:$0xff]
  %v933 = vld [vmem:[%s2 + $0x28] sm:$0xff]
  %v934 = vld [vmem:[%s2 + $0x30] sm:$0xff]
  %v935 = vld [vmem:[%s2 + $0x38] sm:$0xff]
  %v936 = vld [vmem:[%s2 + $0x40] sm:$0xff]
  %v937 = vld [vmem:[%s2 + $0x48] sm:$0xff]
  %v938 = vld [vmem:[%s2 + $0x50] sm:$0xff]
  %v939 = vld [vmem:[%s2 + $0x58] sm:$0xff]
  %v940 = vld [vmem:[%s2 + $0x60] sm:$0xff]
  %v941 = vld [vmem:[%s2 + $0x68] sm:$0xff]
  %v942 = vld [vmem:[%s2 + $0x70] sm:$0xff]
  %v943 = vld [vmem:[%s2 + $0x78] sm:$0xff]
  %v944 = vld [vmem:[%s2 + $0x80] sm:$0xff]
  %v945 = vld [vmem:[%s2 + $0x88] sm:$0xff]
  %v946 = vld [vmem:[%s2 + $0x90] sm:$0xff]
  %v947 = vld [vmem:[%s2 + $0x98] sm:$0xff]
  %v948 = vld [vmem:[%s2 + $0xa0] sm:$0xff]
  %v949 = vld [vmem:[%s2 + $0xa8] sm:$0xff]
  %v950 = vld [vmem:[%s2 + $0xb0] sm:$0xff]
  %v951 = vld [vmem:[%s2 + $0xb8] sm:$0xff]
  %v952 = vld [vmem:[%s2 + $0xc0] sm:$0xff]
  %v953 = vld [vmem:[%s2 + $0xc8] sm:$0xff]
  %v954 = vld [vmem:[%s2 + $0xd0] sm:$0xff]
  %v955 = vld [vmem:[%s2 + $0xd8] sm:$0xff]
  %v956 = vld [vmem:[%s2 + $0xe0] sm:$0xff]
  %v957 = vld [vmem:[%s2 + $0xe8] sm:$0xff]
  %v958 = vld [vmem:[%s2 + $0xf0] sm:$0xff]
  %v959 = vld [vmem:[%s2 + $0xf8] sm:$0xff]
  %v992 = vunpack.c.l.b16 %v928
  %v993 = vunpack.c.h.b16 %v928
  %v994 = vunpack.c.l.b16 %v929
  %v995 = vunpack.c.h.b16 %v929
  %v996 = vunpack.c.l.b16 %v930
  %v997 = vunpack.c.h.b16 %v930
  %v998 = vunpack.c.l.b16 %v931
  %v999 = vunpack.c.h.b16 %v931
  %v1000 = vunpack.c.l.b16 %v932
  %v1001 = vunpack.c.h.b16 %v932
  %v1002 = vunpack.c.l.b16 %v933
  %v1003 = vunpack.c.h.b16 %v933
  %v1004 = vunpack.c.l.b16 %v934
  %v1005 = vunpack.c.h.b16 %v934
  %v1006 = vunpack.c.l.b16 %v935
  %v1007 = vunpack.c.h.b16 %v935
  %v1008 = vunpack.c.l.b16 %v936
  %v1009 = vunpack.c.h.b16 %v936
  %v1010 = vunpack.c.l.b16 %v937
  %v1011 = vunpack.c.h.b16 %v937
  %v1012 = vunpack.c.l.b16 %v938
  %v1013 = vunpack.c.h.b16 %v938
  %v1014 = vunpack.c.l.b16 %v939
  %v1015 = vunpack.c.h.b16 %v939
  %v1016 = vunpack.c.l.b16 %v940
  %v1017 = vunpack.c.h.b16 %v940
  %v1018 = vunpack.c.l.b16 %v941
  %v1019 = vunpack.c.h.b16 %v941
  %v1020 = vunpack.c.l.b16 %v942
  %v1021 = vunpack.c.h.b16 %v942
  %v1022 = vunpack.c.l.b16 %v943
  %v1023 = vunpack.c.h.b16 %v943
  %v1024 = vunpack.c.l.b16 %v944
  %v1025 = vunpack.c.h.b16 %v944
  %v1026 = vunpack.c.l.b16 %v945
  %v1027 = vunpack.c.h.b16 %v945
  %v1028 = vunpack.c.l.b16 %v946
  %v1029 = vunpack.c.h.b16 %v946
  %v1030 = vunpack.c.l.b16 %v947
  %v1031 = vunpack.c.h.b16 %v947
  %v1032 = vunpack.c.l.b16 %v948
  %v1033 = vunpack.c.h.b16 %v948
  %v1034 = vunpack.c.l.b16 %v949
  %v1035 = vunpack.c.h.b16 %v949
  %v1036 = vunpack.c.l.b16 %v950
  %v1037 = vunpack.c.h.b16 %v950
  %v1038 = vunpack.c.l.b16 %v951
  %v1039 = vunpack.c.h.b16 %v951
  %v1040 = vunpack.c.l.b16 %v952
  %v1041 = vunpack.c.h.b16 %v952
  %v1042 = vunpack.c.l.b16 %v953
  %v1043 = vunpack.c.h.b16 %v953
  %v1044 = vunpack.c.l.b16 %v954
  %v1045 = vunpack.c.h.b16 %v954
  %v1046 = vunpack.c.l.b16 %v955
  %v1047 = vunpack.c.h.b16 %v955
  %v1048 = vunpack.c.l.b16 %v956
  %v1049 = vunpack.c.h.b16 %v956
  %v1050 = vunpack.c.l.b16 %v957
  %v1051 = vunpack.c.h.b16 %v957
  %v1052 = vunpack.c.l.b16 %v958
  %v1053 = vunpack.c.h.b16 %v958
  %v1054 = vunpack.c.l.b16 %v959
  %v1055 = vunpack.c.h.b16 %v959
  %v1056 = vpack.c.b16 %v996, %v992
  %v1057 = vpack.c.b16 %v997, %v993
  %v1058 = vpack.c.b16 %v998, %v994
  %v1059 = vpack.c.b16 %v999, %v995
  %v1060 = vpack.c.b16 %v1004, %v1000
  %v1061 = vpack.c.b16 %v1005, %v1001
  %v1062 = vpack.c.b16 %v1006, %v1002
  %v1063 = vpack.c.b16 %v1007, %v1003
  %v1064 = vpack.c.b16 %v1012, %v1008
  %v1065 = vpack.c.b16 %v1013, %v1009
  %v1066 = vpack.c.b16 %v1014, %v1010
  %v1067 = vpack.c.b16 %v1015, %v1011
  %v1068 = vpack.c.b16 %v1020, %v1016
  %v1069 = vpack.c.b16 %v1021, %v1017
  %v1070 = vpack.c.b16 %v1022, %v1018
  %v1071 = vpack.c.b16 %v1023, %v1019
  %v1072 = vpack.c.b16 %v1028, %v1024
  %v1073 = vpack.c.b16 %v1029, %v1025
  %v1074 = vpack.c.b16 %v1030, %v1026
  %v1075 = vpack.c.b16 %v1031, %v1027
  %v1076 = vpack.c.b16 %v1036, %v1032
  %v1077 = vpack.c.b16 %v1037, %v1033
  %v1078 = vpack.c.b16 %v1038, %v1034
  %v1079 = vpack.c.b16 %v1039, %v1035
  %v1080 = vpack.c.b16 %v1044, %v1040
  %v1081 = vpack.c.b16 %v1045, %v1041
  %v1082 = vpack.c.b16 %v1046, %v1042
  %v1083 = vpack.c.b16 %v1047, %v1043
  %v1084 = vpack.c.b16 %v1052, %v1048
  %v1085 = vpack.c.b16 %v1053, %v1049
  %v1086 = vpack.c.b16 %v1054, %v1050
  %v1087 = vpack.c.b16 %v1055, %v1051
  %1120 = vmatprep.subr.bf16.mxu0 %v1057
  %1121 = vmatpush1.bf16.msra.mxu0 %v1056
  %1122 = vmatprep.subr.bf16.mxu0 %v1061
  %1123 = vmatpush1.bf16.msra.mxu0 %v1060
  %1124 = vmatprep.subr.bf16.mxu0 %v1065
  %1125 = vmatpush1.bf16.msra.mxu0 %v1064
  %1126 = vmatprep.subr.bf16.mxu0 %v1069
  %1127 = vmatpush1.bf16.msra.mxu0 %v1068
  %1128 = vmatprep.subr.bf16.mxu0 %v1073
  %1129 = vmatpush1.bf16.msra.mxu0 %v1072
  %1130 = vmatprep.subr.bf16.mxu0 %v1077
  %1131 = vmatpush1.bf16.msra.mxu0 %v1076
  %1132 = vmatprep.subr.bf16.mxu0 %v1081
  %1133 = vmatpush1.bf16.msra.mxu0 %v1080
  %1134 = vmatprep.subr.bf16.mxu0 %v1085
  %1135 = vmatpush1.bf16.msra.mxu0 %v1084
  %1136 = vmatprep.subr.bf16.mxu0 0
  %1137 = vmatpush1.bf16.msra.mxu0 0
  %1138 = vmatprep.subr.bf16.mxu0 0
  %1139 = vmatpush1.bf16.msra.mxu0 0
  %1140 = vmatprep.subr.bf16.mxu0 0
  %1141 = vmatpush1.bf16.msra.mxu0 0
  %1142 = vmatprep.subr.bf16.mxu0 0
  %1143 = vmatpush1.bf16.msra.mxu0 0
  %1144 = vmatprep.subr.bf16.mxu0 0
  %1145 = vmatpush1.bf16.msra.mxu0 0
  %1146 = vmatprep.subr.bf16.mxu0 0
  %1147 = vmatpush1.bf16.msra.mxu0 0
  %1148 = vmatprep.subr.bf16.mxu0 0
  %1149 = vmatpush1.bf16.msra.mxu0 0
  %1150 = vmatprep.subr.bf16.mxu0 0
  %1151 = vmatpush1.bf16.msra.mxu0 0
  %1152 = vmatprep.mubr.bf16.mxu0 0
  %1153 = vmatmul.mubr.bf16.gmra.mrb[0].mxu0 %v922
  %v1154 = vpop.f32.mrb[0].mxu0
  %v1155 = vadd.f32 0.0, %v1154
  %v1156 = vpop.f32.mrb[0].mxu0
  %v1157 = vadd.f32 0.0, %v1156
  %v1158 = vpop.f32.mrb[0].mxu0
  %v1159 = vpop.f32.mrb[0].mxu0
  %1160 = vdwg.mxu0
  %1161 = vmatprep.subr.bf16.mxu0 %v1059
  %1162 = vmatpush1.bf16.msra.mxu0 %v1058
  %1163 = vmatprep.subr.bf16.mxu0 %v1063
  %1164 = vmatpush1.bf16.msra.mxu0 %v1062
  %1165 = vmatprep.subr.bf16.mxu0 %v1067
  %1166 = vmatpush1.bf16.msra.mxu0 %v1066
  %1167 = vmatprep.subr.bf16.mxu0 %v1071
  %1168 = vmatpush1.bf16.msra.mxu0 %v1070
  %1169 = vmatprep.subr.bf16.mxu0 %v1075
  %1170 = vmatpush1.bf16.msra.mxu0 %v1074
  %1171 = vmatprep.subr.bf16.mxu0 %v1079
  %1172 = vmatpush1.bf16.msra.mxu0 %v1078
  %1173 = vmatprep.subr.bf16.mxu0 %v1083
  %1174 = vmatpush1.bf16.msra.mxu0 %v1082
  %1175 = vmatprep.subr.bf16.mxu0 %v1087
  %1176 = vmatpush1.bf16.msra.mxu0 %v1086
  %1177 = vmatprep.subr.bf16.mxu0 0
  %1178 = vmatpush1.bf16.msra.mxu0 0
  %1179 = vmatprep.subr.bf16.mxu0 0
  %1180 = vmatpush1.bf16.msra.mxu0 0
  %1181 = vmatprep.subr.bf16.mxu0 0
  %1182 = vmatpush1.bf16.msra.mxu0 0
  %1183 = vmatprep.subr.bf16.mxu0 0
  %1184 = vmatpush1.bf16.msra.mxu0 0
  %1185 = vmatprep.subr.bf16.mxu0 0
  %1186 = vmatpush1.bf16.msra.mxu0 0
  %1187 = vmatprep.subr.bf16.mxu0 0
  %1188 = vmatpush1.bf16.msra.mxu0 0
  %1189 = vmatprep.subr.bf16.mxu0 0
  %1190 = vmatpush1.bf16.msra.mxu0 0
  %1191 = vmatprep.subr.bf16.mxu0 0
  %1192 = vmatpush1.bf16.msra.mxu0 0
  %1193 = vmatprep.mubr.bf16.mxu0 0
  %1194 = vmatmul.mubr.bf16.gmra.mrb[0].mxu0 %v922
  %v1195 = vpop.f32.mrb[0].mxu0
  %v1196 = vadd.f32 0.0, %v1195
  %v1197 = vpop.f32.mrb[0].mxu0
  %v1198 = vadd.f32 0.0, %v1197
  %v1199 = vpop.f32.mrb[0].mxu0
  %v1200 = vpop.f32.mrb[0].mxu0
  %1201 = vdwg.mxu0
  %v1202 = vadd.f32 %v924, %v1155
  %v1203 = vadd.f32 %v925, %v1157
  %v1204 = vadd.f32 %v926, %v1196
  %v1205 = vadd.f32 %v927, %v1198
  %v1206 = vxor.u32 %v1202, 2147483648
  %v1207 = vmul.f32 %v1206, 1.442695
  %v1208 = vpow.pop %v1207
  %v1209 = vadd.f32 %v1208, 1.0
  %v1210 = vrcp.pop %v1209
  %v1211 = vmul.f32 1.0, %v1210
  %v1212 = vxor.u32 %v1203, 2147483648
  %v1213 = vmul.f32 %v1212, 1.442695
  %v1214 = vpow.pop %v1213
  %v1215 = vadd.f32 %v1214, 1.0
  %v1216 = vrcp.pop %v1215
  %v1217 = vmul.f32 1.0, %v1216
  %v1218 = vtanh.pop %v1204
  %v1219 = vxor.u32 %v1205, 2147483648
  %v1220 = vmul.f32 %v1219, 1.442695
  %v1221 = vpow.pop %v1220
  %v1222 = vadd.f32 %v1221, 1.0
  %v1223 = vrcp.pop %v1222
  %v1224 = vmul.f32 1.0, %v1223
  %v1225 = vmul.f32 %v1217, %v917
  %v1226 = vmul.f32 %v1211, %v1218
  %v1227 = vadd.f32 %v1225, %v1226
  %v1228 = vtanh.pop %v1227
  %v1229 = vmul.f32 %v1224, %v1228
  %s1230 = scalar_lea.vmem [#allocation3], 16
  %1231 = vst [vmem:[%s1230] sm:$0xff] %v1229
  %v1232 = vpack.c.bf16 %v1229, %v1229
  %s1233 = scalar_lea.vmem [#allocation2], 96
  %v1234 = vld [vmem:[%s1233] sm:$0xff]
  %v1235 = vld [vmem:[%s1233 + $0x8] sm:$0xff]
  %v1236 = vld [vmem:[%s1233 + $0x10] sm:$0xff]
  %v1237 = vld [vmem:[%s1233 + $0x18] sm:$0xff]
  %v1238 = vld [vmem:[%s2] sm:$0xff]
  %v1239 = vld [vmem:[%s2 + $0x8] sm:$0xff]
  %v1240 = vld [vmem:[%s2 + $0x10] sm:$0xff]
  %v1241 = vld [vmem:[%s2 + $0x18] sm:$0xff]
  %v1242 = vld [vmem:[%s2 + $0x20] sm:$0xff]
  %v1243 = vld [vmem:[%s2 + $0x28] sm:$0xff]
  %v1244 = vld [vmem:[%s2 + $0x30] sm:$0xff]
  %v1245 = vld [vmem:[%s2 + $0x38] sm:$0xff]
  %v1246 = vld [vmem:[%s2 + $0x40] sm:$0xff]
  %v1247 = vld [vmem:[%s2 + $0x48] sm:$0xff]
  %v1248 = vld [vmem:[%s2 + $0x50] sm:$0xff]
  %v1249 = vld [vmem:[%s2 + $0x58] sm:$0xff]
  %v1250 = vld [vmem:[%s2 + $0x60] sm:$0xff]
  %v1251 = vld [vmem:[%s2 + $0x68] sm:$0xff]
  %v1252 = vld [vmem:[%s2 + $0x70] sm:$0xff]
  %v1253 = vld [vmem:[%s2 + $0x78] sm:$0xff]
  %v1254 = vld [vmem:[%s2 + $0x80] sm:$0xff]
  %v1255 = vld [vmem:[%s2 + $0x88] sm:$0xff]
  %v1256 = vld [vmem:[%s2 + $0x90] sm:$0xff]
  %v1257 = vld [vmem:[%s2 + $0x98] sm:$0xff]
  %v1258 = vld [vmem:[%s2 + $0xa0] sm:$0xff]
  %v1259 = vld [vmem:[%s2 + $0xa8] sm:$0xff]
  %v1260 = vld [vmem:[%s2 + $0xb0] sm:$0xff]
  %v1261 = vld [vmem:[%s2 + $0xb8] sm:$0xff]
  %v1262 = vld [vmem:[%s2 + $0xc0] sm:$0xff]
  %v1263 = vld [vmem:[%s2 + $0xc8] sm:$0xff]
  %v1264 = vld [vmem:[%s2 + $0xd0] sm:$0xff]
  %v1265 = vld [vmem:[%s2 + $0xd8] sm:$0xff]
  %v1266 = vld [vmem:[%s2 + $0xe0] sm:$0xff]
  %v1267 = vld [vmem:[%s2 + $0xe8] sm:$0xff]
  %v1268 = vld [vmem:[%s2 + $0xf0] sm:$0xff]
  %v1269 = vld [vmem:[%s2 + $0xf8] sm:$0xff]
  %v1302 = vunpack.c.l.b16 %v1238
  %v1303 = vunpack.c.h.b16 %v1238
  %v1304 = vunpack.c.l.b16 %v1239
  %v1305 = vunpack.c.h.b16 %v1239
  %v1306 = vunpack.c.l.b16 %v1240
  %v1307 = vunpack.c.h.b16 %v1240
  %v1308 = vunpack.c.l.b16 %v1241
  %v1309 = vunpack.c.h.b16 %v1241
  %v1310 = vunpack.c.l.b16 %v1242
  %v1311 = vunpack.c.h.b16 %v1242
  %v1312 = vunpack.c.l.b16 %v1243
  %v1313 = vunpack.c.h.b16 %v1243
  %v1314 = vunpack.c.l.b16 %v1244
  %v1315 = vunpack.c.h.b16 %v1244
  %v1316 = vunpack.c.l.b16 %v1245
  %v1317 = vunpack.c.h.b16 %v1245
  %v1318 = vunpack.c.l.b16 %v1246
  %v1319 = vunpack.c.h.b16 %v1246
  %v1320 = vunpack.c.l.b16 %v1247
  %v1321 = vunpack.c.h.b16 %v1247
  %v1322 = vunpack.c.l.b16 %v1248
  %v1323 = vunpack.c.h.b16 %v1248
  %v1324 = vunpack.c.l.b16 %v1249
  %v1325 = vunpack.c.h.b16 %v1249
  %v1326 = vunpack.c.l.b16 %v1250
  %v1327 = vunpack.c.h.b16 %v1250
  %v1328 = vunpack.c.l.b16 %v1251
  %v1329 = vunpack.c.h.b16 %v1251
  %v1330 = vunpack.c.l.b16 %v1252
  %v1331 = vunpack.c.h.b16 %v1252
  %v1332 = vunpack.c.l.b16 %v1253
  %v1333 = vunpack.c.h.b16 %v1253
  %v1334 = vunpack.c.l.b16 %v1254
  %v1335 = vunpack.c.h.b16 %v1254
  %v1336 = vunpack.c.l.b16 %v1255
  %v1337 = vunpack.c.h.b16 %v1255
  %v1338 = vunpack.c.l.b16 %v1256
  %v1339 = vunpack.c.h.b16 %v1256
  %v1340 = vunpack.c.l.b16 %v1257
  %v1341 = vunpack.c.h.b16 %v1257
  %v1342 = vunpack.c.l.b16 %v1258
  %v1343 = vunpack.c.h.b16 %v1258
  %v1344 = vunpack.c.l.b16 %v1259
  %v1345 = vunpack.c.h.b16 %v1259
  %v1346 = vunpack.c.l.b16 %v1260
  %v1347 = vunpack.c.h.b16 %v1260
  %v1348 = vunpack.c.l.b16 %v1261
  %v1349 = vunpack.c.h.b16 %v1261
  %v1350 = vunpack.c.l.b16 %v1262
  %v1351 = vunpack.c.h.b16 %v1262
  %v1352 = vunpack.c.l.b16 %v1263
  %v1353 = vunpack.c.h.b16 %v1263
  %v1354 = vunpack.c.l.b16 %v1264
  %v1355 = vunpack.c.h.b16 %v1264
  %v1356 = vunpack.c.l.b16 %v1265
  %v1357 = vunpack.c.h.b16 %v1265
  %v1358 = vunpack.c.l.b16 %v1266
  %v1359 = vunpack.c.h.b16 %v1266
  %v1360 = vunpack.c.l.b16 %v1267
  %v1361 = vunpack.c.h.b16 %v1267
  %v1362 = vunpack.c.l.b16 %v1268
  %v1363 = vunpack.c.h.b16 %v1268
  %v1364 = vunpack.c.l.b16 %v1269
  %v1365 = vunpack.c.h.b16 %v1269
  %v1366 = vpack.c.b16 %v1306, %v1302
  %v1367 = vpack.c.b16 %v1307, %v1303
  %v1368 = vpack.c.b16 %v1308, %v1304
  %v1369 = vpack.c.b16 %v1309, %v1305
  %v1370 = vpack.c.b16 %v1314, %v1310
  %v1371 = vpack.c.b16 %v1315, %v1311
  %v1372 = vpack.c.b16 %v1316, %v1312
  %v1373 = vpack.c.b16 %v1317, %v1313
  %v1374 = vpack.c.b16 %v1322, %v1318
  %v1375 = vpack.c.b16 %v1323, %v1319
  %v1376 = vpack.c.b16 %v1324, %v1320
  %v1377 = vpack.c.b16 %v1325, %v1321
  %v1378 = vpack.c.b16 %v1330, %v1326
  %v1379 = vpack.c.b16 %v1331, %v1327
  %v1380 = vpack.c.b16 %v1332, %v1328
  %v1381 = vpack.c.b16 %v1333, %v1329
  %v1382 = vpack.c.b16 %v1338, %v1334
  %v1383 = vpack.c.b16 %v1339, %v1335
  %v1384 = vpack.c.b16 %v1340, %v1336
  %v1385 = vpack.c.b16 %v1341, %v1337
  %v1386 = vpack.c.b16 %v1346, %v1342
  %v1387 = vpack.c.b16 %v1347, %v1343
  %v1388 = vpack.c.b16 %v1348, %v1344
  %v1389 = vpack.c.b16 %v1349, %v1345
  %v1390 = vpack.c.b16 %v1354, %v1350
  %v1391 = vpack.c.b16 %v1355, %v1351
  %v1392 = vpack.c.b16 %v1356, %v1352
  %v1393 = vpack.c.b16 %v1357, %v1353
  %v1394 = vpack.c.b16 %v1362, %v1358
  %v1395 = vpack.c.b16 %v1363, %v1359
  %v1396 = vpack.c.b16 %v1364, %v1360
  %v1397 = vpack.c.b16 %v1365, %v1361
  %1430 = vmatprep.subr.bf16.mxu0 %v1367
  %1431 = vmatpush1.bf16.msra.mxu0 %v1366
  %1432 = vmatprep.subr.bf16.mxu0 %v1371
  %1433 = vmatpush1.bf16.msra.mxu0 %v1370
  %1434 = vmatprep.subr.bf16.mxu0 %v1375
  %1435 = vmatpush1.bf16.msra.mxu0 %v1374
  %1436 = vmatprep.subr.bf16.mxu0 %v1379
  %1437 = vmatpush1.bf16.msra.mxu0 %v1378
  %1438 = vmatprep.subr.bf16.mxu0 %v1383
  %1439 = vmatpush1.bf16.msra.mxu0 %v1382
  %1440 = vmatprep.subr.bf16.mxu0 %v1387
  %1441 = vmatpush1.bf16.msra.mxu0 %v1386
  %1442 = vmatprep.subr.bf16.mxu0 %v1391
  %1443 = vmatpush1.bf16.msra.mxu0 %v1390
  %1444 = vmatprep.subr.bf16.mxu0 %v1395
  %1445 = vmatpush1.bf16.msra.mxu0 %v1394
  %1446 = vmatprep.subr.bf16.mxu0 0
  %1447 = vmatpush1.bf16.msra.mxu0 0
  %1448 = vmatprep.subr.bf16.mxu0 0
  %1449 = vmatpush1.bf16.msra.mxu0 0
  %1450 = vmatprep.subr.bf16.mxu0 0
  %1451 = vmatpush1.bf16.msra.mxu0 0
  %1452 = vmatprep.subr.bf16.mxu0 0
  %1453 = vmatpush1.bf16.msra.mxu0 0
  %1454 = vmatprep.subr.bf16.mxu0 0
  %1455 = vmatpush1.bf16.msra.mxu0 0
  %1456 = vmatprep.subr.bf16.mxu0 0
  %1457 = vmatpush1.bf16.msra.mxu0 0
  %1458 = vmatprep.subr.bf16.mxu0 0
  %1459 = vmatpush1.bf16.msra.mxu0 0
  %1460 = vmatprep.subr.bf16.mxu0 0
  %1461 = vmatpush1.bf16.msra.mxu0 0
  %1462 = vmatprep.mubr.bf16.mxu0 0
  %1463 = vmatmul.mubr.bf16.gmra.mrb[0].mxu0 %v1232
  %v1464 = vpop.f32.mrb[0].mxu0
  %v1465 = vadd.f32 0.0, %v1464
  %v1466 = vpop.f32.mrb[0].mxu0
  %v1467 = vadd.f32 0.0, %v1466
  %v1468 = vpop.f32.mrb[0].mxu0
  %v1469 = vpop.f32.mrb[0].mxu0
  %1470 = vdwg.mxu0
  %1471 = vmatprep.subr.bf16.mxu0 %v1369
  %1472 = vmatpush1.bf16.msra.mxu0 %v1368
  %1473 = vmatprep.subr.bf16.mxu0 %v1373
  %1474 = vmatpush1.bf16.msra.mxu0 %v1372
  %1475 = vmatprep.subr.bf16.mxu0 %v1377
  %1476 = vmatpush1.bf16.msra.mxu0 %v1376
  %1477 = vmatprep.subr.bf16.mxu0 %v1381
  %1478 = vmatpush1.bf16.msra.mxu0 %v1380
  %1479 = vmatprep.subr.bf16.mxu0 %v1385
  %1480 = vmatpush1.bf16.msra.mxu0 %v1384
  %1481 = vmatprep.subr.bf16.mxu0 %v1389
  %1482 = vmatpush1.bf16.msra.mxu0 %v1388
  %1483 = vmatprep.subr.bf16.mxu0 %v1393
  %1484 = vmatpush1.bf16.msra.mxu0 %v1392
  %1485 = vmatprep.subr.bf16.mxu0 %v1397
  %1486 = vmatpush1.bf16.msra.mxu0 %v1396
  %1487 = vmatprep.subr.bf16.mxu0 0
  %1488 = vmatpush1.bf16.msra.mxu0 0
  %1489 = vmatprep.subr.bf16.mxu0 0
  %1490 = vmatpush1.bf16.msra.mxu0 0
  %1491 = vmatprep.subr.bf16.mxu0 0
  %1492 = vmatpush1.bf16.msra.mxu0 0
  %1493 = vmatprep.subr.bf16.mxu0 0
  %1494 = vmatpush1.bf16.msra.mxu0 0
  %1495 = vmatprep.subr.bf16.mxu0 0
  %1496 = vmatpush1.bf16.msra.mxu0 0
  %1497 = vmatprep.subr.bf16.mxu0 0
  %1498 = vmatpush1.bf16.msra.mxu0 0
  %1499 = vmatprep.subr.bf16.mxu0 0
  %1500 = vmatpush1.bf16.msra.mxu0 0
  %1501 = vmatprep.subr.bf16.mxu0 0
  %1502 = vmatpush1.bf16.msra.mxu0 0
  %1503 = vmatprep.mubr.bf16.mxu0 0
  %1504 = vmatmul.mubr.bf16.gmra.mrb[0].mxu0 %v1232
  %v1505 = vpop.f32.mrb[0].mxu0
  %v1506 = vadd.f32 0.0, %v1505
  %v1507 = vpop.f32.mrb[0].mxu0
  %v1508 = vadd.f32 0.0, %v1507
  %v1509 = vpop.f32.mrb[0].mxu0
  %v1510 = vpop.f32.mrb[0].mxu0
  %1511 = vdwg.mxu0
  %v1512 = vadd.f32 %v1234, %v1465
  %v1513 = vadd.f32 %v1235, %v1467
  %v1514 = vadd.f32 %v1236, %v1506
  %v1515 = vadd.f32 %v1237, %v1508
  %v1516 = vxor.u32 %v1512, 2147483648
  %v1517 = vmul.f32 %v1516, 1.442695
  %v1518 = vpow.pop %v1517
  %v1519 = vadd.f32 %v1518, 1.0
  %v1520 = vrcp.pop %v1519
  %v1521 = vmul.f32 1.0, %v1520
  %v1522 = vxor.u32 %v1513, 2147483648
  %v1523 = vmul.f32 %v1522, 1.442695
  %v1524 = vpow.pop %v1523
  %v1525 = vadd.f32 %v1524, 1.0
  %v1526 = vrcp.pop %v1525
  %v1527 = vmul.f32 1.0, %v1526
  %v1528 = vtanh.pop %v1514
  %v1529 = vxor.u32 %v1515, 2147483648
  %v1530 = vmul.f32 %v1529, 1.442695
  %v1531 = vpow.pop %v1530
  %v1532 = vadd.f32 %v1531, 1.0
  %v1533 = vrcp.pop %v1532
  %v1534 = vmul.f32 1.0, %v1533
  %v1535 = vmul.f32 %v1527, %v1227
  %v1536 = vmul.f32 %v1521, %v1528
  %v1537 = vadd.f32 %v1535, %v1536
  %v1538 = vtanh.pop %v1537
  %v1539 = vmul.f32 %v1534, %v1538
  %s1540 = scalar_lea.vmem [#allocation3], 24
  %1541 = vst [vmem:[%s1540] sm:$0xff] %v1539
  %v1542 = vpack.c.bf16 %v1539, %v1539
  %v1543 = vunpack.c.l.bf16 %v1542
  %1544 = vst [vmem:[#allocation4] sm:$0xff] %v1543
  %1545 = vst [vmem:[#allocation5] sm:$0xff] %v1537
  %v1546 = vld [vmem:[#allocation4] sm:$0xff]
  %1547 = vst [vmem:[%s9] sm:$0xff] %v1546
  %v1548 = vld [vmem:[#allocation5] sm:$0xff]
  %1549 = vst [vmem:[%s10] sm:$0xff] %v1548
  %v1550 = vld [vmem:[#allocation3] sm:$0xff]
  %v1551 = vld [vmem:[#allocation3 + $0x8] sm:$0xff]
  %v1552 = vld [vmem:[#allocation3 + $0x10] sm:$0xff]
  %v1553 = vld [vmem:[#allocation3 + $0x18] sm:$0xff]
  %v1554 = vpack.c.bf16 %v1551, %v1550
  %v1555 = vpack.c.bf16 %v1553, %v1552
  %v1556 = vld [vmem:[%s4] sm:$0xf]
  %v1557 = vld [vmem:[%s4 + $0x4] sm:$0xf]
  %v1558 = vld [vmem:[%s4 + $0x8] sm:$0xf]
  %v1559 = vld [vmem:[%s4 + $0xc] sm:$0xf]
  %v1560 = vld [vmem:[%s4 + $0x10] sm:$0xf]
  %v1561 = vld [vmem:[%s4 + $0x14] sm:$0xf]
  %v1562 = vld [vmem:[%s4 + $0x18] sm:$0xf]
  %v1563 = vld [vmem:[%s4 + $0x1c] sm:$0xf]
  %v1564 = vld [vmem:[%s4 + $0x20] sm:$0xf]
  %v1565 = vld [vmem:[%s4 + $0x24] sm:$0xf]
  %v1566 = vld [vmem:[%s4 + $0x28] sm:$0xf]
  %v1567 = vld [vmem:[%s4 + $0x2c] sm:$0xf]
  %v1568 = vld [vmem:[%s4 + $0x30] sm:$0xf]
  %v1569 = vld [vmem:[%s4 + $0x34] sm:$0xf]
  %v1570 = vld [vmem:[%s4 + $0x38] sm:$0xf]
  %v1571 = vld [vmem:[%s4 + $0x3c] sm:$0xf]
  %v1572 = vld [vmem:[%s5] sm:$0x1]
  %v1574 = vlaneseq
  %v1575 = vshrl.u32 %v1574, 7
  %v1576 = vsub.s32 0, %v1575
  %v1577 = vrot.slane %v1572, %v1576
  %v1595 = vunpack.c.l.b16 %v1556
  %v1596 = vunpack.c.l.b16 %v1557
  %v1597 = vunpack.c.l.b16 %v1558
  %v1598 = vunpack.c.l.b16 %v1559
  %v1599 = vunpack.c.l.b16 %v1560
  %v1600 = vunpack.c.l.b16 %v1561
  %v1601 = vunpack.c.l.b16 %v1562
  %v1602 = vunpack.c.l.b16 %v1563
  %v1603 = vunpack.c.l.b16 %v1564
  %v1604 = vunpack.c.l.b16 %v1565
  %v1605 = vunpack.c.l.b16 %v1566
  %v1606 = vunpack.c.l.b16 %v1567
  %v1607 = vunpack.c.l.b16 %v1568
  %v1608 = vunpack.c.l.b16 %v1569
  %v1609 = vunpack.c.l.b16 %v1570
  %v1610 = vunpack.c.l.b16 %v1571
  %v1611 = vpack.c.b16 %v1596, %v1595
  %v1612 = vpack.c.b16 %v1598, %v1597
  %v1613 = vpack.c.b16 %v1600, %v1599
  %v1614 = vpack.c.b16 %v1602, %v1601
  %v1615 = vpack.c.b16 %v1604, %v1603
  %v1616 = vpack.c.b16 %v1606, %v1605
  %v1617 = vpack.c.b16 %v1608, %v1607
  %v1618 = vpack.c.b16 %v1610, %v1609
  %1627 = vmatprep.subr.bf16.mxu0 0
  %1628 = vmatpush1.bf16.msra.mxu0 %v1611
  %1629 = vmatprep.subr.bf16.mxu0 0
  %1630 = vmatpush1.bf16.msra.mxu0 %v1612
  %1631 = vmatprep.subr.bf16.mxu0 0
  %1632 = vmatpush1.bf16.msra.mxu0 %v1613
  %1633 = vmatprep.subr.bf16.mxu0 0
  %1634 = vmatpush1.bf16.msra.mxu0 %v1614
  %1635 = vmatprep.subr.bf16.mxu0 0
  %1636 = vmatpush1.bf16.msra.mxu0 %v1615
  %1637 = vmatprep.subr.bf16.mxu0 0
  %1638 = vmatpush1.bf16.msra.mxu0 %v1616
  %1639 = vmatprep.subr.bf16.mxu0 0
  %1640 = vmatpush1.bf16.msra.mxu0 %v1617
  %1641 = vmatprep.subr.bf16.mxu0 0
  %1642 = vmatpush1.bf16.msra.mxu0 %v1618
  %1643 = vmatprep.subr.bf16.mxu0 0
  %1644 = vmatpush1.bf16.msra.mxu0 0
  %1645 = vmatprep.subr.bf16.mxu0 0
  %1646 = vmatpush1.bf16.msra.mxu0 0
  %1647 = vmatprep.subr.bf16.mxu0 0
  %1648 = vmatpush1.bf16.msra.mxu0 0
  %1649 = vmatprep.subr.bf16.mxu0 0
  %1650 = vmatpush1.bf16.msra.mxu0 0
  %1651 = vmatprep.subr.bf16.mxu0 0
  %1652 = vmatpush1.bf16.msra.mxu0 0
  %1653 = vmatprep.subr.bf16.mxu0 0
  %1654 = vmatpush1.bf16.msra.mxu0 0
  %1655 = vmatprep.subr.bf16.mxu0 0
  %1656 = vmatpush1.bf16.msra.mxu0 0
  %1657 = vmatprep.subr.bf16.mxu0 0
  %1658 = vmatpush1.bf16.msra.mxu0 0
  %1659 = vmatprep.mubr.bf16.mxu0 0
  %1660 = vmatmul.mubr.bf16.gmra.mrb[0].mxu0 %v1554
  %v1661 = vpop.f32.mrb[0].mxu0
  %v1662 = vadd.f32 %v1577, %v1661
  %v1663 = vpop.f32.mrb[0].mxu0
  %v1664 = vpop.f32.mrb[0].mxu0
  %v1665 = vadd.f32 %v1577, %v1664
  %v1666 = vpop.f32.mrb[0].mxu0
  %1667 = vmatprep.mubr.bf16.mxu0 0
  %1668 = vmatmul.mubr.bf16.gmra.mrb[0].mxu0 %v1555
  %v1669 = vpop.f32.mrb[0].mxu0
  %v1670 = vadd.f32 %v1577, %v1669
  %v1671 = vpop.f32.mrb[0].mxu0
  %v1672 = vpop.f32.mrb[0].mxu0
  %v1673 = vadd.f32 %v1577, %v1672
  %v1674 = vpop.f32.mrb[0].mxu0
  %1675 = vdwg.mxu0
  %1676 = vst [vmem:[%s8] sm:$0xff] %v1662
  %1677 = vst [vmem:[%s8 + $0x8] sm:$0xff] %v1665
  %1678 = vst [vmem:[%s8 + $0x10] sm:$0xff] %v1670
  %1679 = vst [vmem:[%s8 + $0x18] sm:$0xff] %v1673
  // Predicated region
  $region38: #{dqn_lstm_forward.7} parent=0 // pred_check
    _
  $region39: #{dqn_lstm_forward.7} parent=0 // pred_check_branch
    %1681 = sbr.rel (0) target = $region41
  $region40: #{dqn_lstm_forward.7} parent=0 // pred_region
    _
  $region41: #{dqn_lstm_forward.7} parent=0 // pred_fallthru
    _
  // Predicated region
  $region42: #{dqn_lstm_forward.7} parent=0 // pred_check
    _
  $region43: #{dqn_lstm_forward.7} parent=0 // pred_check_branch
    %1683 = sbr.rel (0) target = $region45
  $region44: #{dqn_lstm_forward.7} parent=0 // pred_region
    _
  $region45: #{dqn_lstm_forward.7} parent=0 // pred_fallthru
    _
  // Predicated region
  $region46: #{dqn_lstm_forward.7} parent=0 // pred_check
    _
  $region47: #{dqn_lstm_forward.7} parent=0 // pred_check_branch
    %1685 = sbr.rel (0) target = $region49
  $region48: #{dqn_lstm_forward.7} parent=0 // pred_region
    _
  $region49: #{dqn_lstm_forward.7} parent=0 // pred_fallthru
    _
  // Predicated region
  $region50: #{dqn_lstm_forward.7} parent=0 // pred_check
    _
  $region51: #{dqn_lstm_forward.7} parent=0 // pred_check_branch
    %1687 = sbr.rel (0) target = $region53
  $region52: #{dqn_lstm_forward.7} parent=0 // pred_region
    _
  $region53: #{dqn_lstm_forward.7} parent=0 // pred_fallthru
    _
  // Predicated region
  $region54: #{dqn_lstm_forward.7} parent=0 // pred_check
    _
  $region55: #{dqn_lstm_forward.7} parent=0 // pred_check_branch
    %1689 = sbr.rel (0) target = $region57
  $region56: #{dqn_lstm_forward.7} parent=0 // pred_region
    _
  $region57: #{dqn_lstm_forward.7} parent=0 // pred_fallthru
    _
  // Predicated region
  $region58: #{dqn_lstm_forward.7} parent=0 // pred_check
    _
  $region59: #{dqn_lstm_forward.7} parent=0 // pred_check_branch
    %1691 = sbr.rel (0) target = $region61
  $region60: #{dqn_lstm_forward.7} parent=0 // pred_region
    _
  $region61: #{dqn_lstm_forward.7} parent=0 // pred_fallthru
    _

</llo_original>
